<compile_context>
chip_gen: v6e
topology: v6e:2x2x1
jax: 0.10.0
libtpu: 0.0.40
codegen_flags: <defaults>
</compile_context>

<pallas_src>
import functools

import jax
import jax.numpy as jnp
from jax.experimental import pallas as pl
from jax.experimental.pallas import tpu as pltpu


# Row-chunk size over the flattened padded plane (keeps per-chunk f32 accumulators
# register-resident; raise toward 256-512 if M-starved on v6e).
_CHUNK = 128


# ----------------------------------------------------------------------------
# Fused Pallas kernel: conv1(3x3)+ReLU -> conv2(3x3)+ReLU -> global avg pool
# ----------------------------------------------------------------------------
def _fused_backbone_kernel(x_ref, w1_ref, w2_ref, b2_ref, o_ref, h1_ref, *,
                           hp_wp, wp, padr, hid, fdim, cin9, bs, chunk, inv_hw):
    """One grid step = `bs` samples; conv1 activations never leave VMEM.

    x_ref : (bs, hp_wp, 9*Cin+1) bf16  im2col of the zero-padded plane; last
                                       channel = interior indicator (carries the
                                       conv1 bias and the GAP mask).
    w1_ref: (9*Cin+1, HID)       bf16  conv1 weights with the bias folded in.
    w2_ref: (3, 3*HID, FDIM)     bf16  conv2 weights grouped per kh (kw along K).
    b2_ref: (1, FDIM)            f32
    o_ref : (bs, 1, FDIM)        f32   pooled features.
    h1_ref: (hp_wp + 2*padr, HID) bf16 scratch: conv1 activations between two
                                       zero halo strips (conv2's zero padding).
    """
    # Zero ONLY the two halo strips (every step — never gate on program_id, so
    # megacore grid sharding stays correct). The interior is fully overwritten.
    strip = jnp.zeros((padr, hid), dtype=h1_ref.dtype)
    h1_ref[0:padr, :] = strip
    h1_ref[padr + hp_wp:padr + hp_wp + padr, :] = strip

    w1 = w1_ref[...]                                   # (9*Cin+1, HID) bf16
    b2 = b2_ref[...]                                   # (1, FDIM)      f32

    starts = tuple(range(0, hp_wp, chunk))             # static chunk boundaries

    for s in range(bs):
        # ---- conv1 (+bias via indicator channel) + ReLU, streamed by row chunk
        #      straight into the VMEM scratch (single K = 9*Cin+1 dot per chunk).
        for start in starts:
            rows = min(chunk, hp_wp - start)
            xs = x_ref[s, start:start + rows, :]                     # (rows, K1) bf16
            h1 = jnp.maximum(
                jnp.dot(xs, w1, preferred_element_type=jnp.float32), 0.0)
            h1_ref[padr + start:padr + start + rows, :] = h1.astype(h1_ref.dtype)

        # ---- conv2: 3 dots of K = 3*HID per chunk (kw taps lane-concatenated),
        #      + f32 bias + ReLU + interior-masked global-average-pool accumulate.
        acc = jnp.zeros((1, fdim), jnp.float32)
        for start in starts:
            rows = min(chunk, hp_wp - start)
            a2 = jnp.zeros((rows, fdim), jnp.float32)
            for kh in range(3):
                r0 = padr + start + (kh - 1) * wp
                trio = jnp.concatenate(
                    [h1_ref[r0 - 1:r0 - 1 + rows, :],                # kw = 0
                     h1_ref[r0:r0 + rows, :],                        # kw = 1
                     h1_ref[r0 + 1:r0 + 1 + rows, :]],               # kw = 2
                    axis=-1)                                         # (rows, 3*HID)
                a2 = a2 + jnp.dot(trio, w2_ref[kh],
                                  preferred_element_type=jnp.float32)
            y = jnp.maximum(a2 + b2, 0.0)                            # f32 elementwise
            # Interior indicator (last im2col channel): zeroes the halo-ring rows
            # of the conv2 output before the pooled sum.
            ind = x_ref[s, start:start + rows, :][:, cin9:cin9 + 1].astype(jnp.float32)
            acc = acc + jnp.sum(y * ind, axis=0, keepdims=True)

        o_ref[s] = (acc * inv_hw).astype(o_ref.dtype)


# ----------------------------------------------------------------------------
# Wrapper: tiny im2col / layout prep (fused by XLA) + single pallas_call
# ----------------------------------------------------------------------------
def _forward_pallas(x_nchw, w1_aug, w2_grp, b2_row):
    n, cin, h, w = x_nchw.shape
    hid = w1_aug.shape[1]
    fdim = w2_grp.shape[2]
    cin9 = 9 * cin
    assert w1_aug.shape[0] == cin9 + 1
    hp, wp = h + 2, w + 2
    hp_wp = hp * wp

    # Scratch halo must cover the +-(wp+1) row shifts of the conv2 taps.
    padr = ((wp + 1 + 7) // 8) * 8
    assert padr >= wp + 1

    # Per-step batch: amortize the fixed per-step overhead with several samples
    # per step, but keep >= 2 grid blocks so v7x's two TensorCores split work.
    bs = max(1, min(8, n // 2)) if n >= 2 else 1
    n_blocks = pl.cdiv(n, bs)
    n_pad = n_blocks * bs

    # ---- im2col of the zero-padded plane (tiny; transpose+pad+concat fuse in XLA).
    x = jnp.transpose(x_nchw, (0, 2, 3, 1)).astype(jnp.float32)       # (N,H,W,C)
    xdp = jnp.pad(x, ((0, 0), (2, 2), (2, 2), (0, 0)))                # (N,H+4,W+4,C)
    taps = [xdp[:, dh:dh + hp, dw:dw + wp, :]
            for dh in range(3) for dw in range(3)]
    feat = jnp.concatenate(taps, axis=-1)                             # (N,Hp,Wp,9C)

    # Interior mask of the padded plane: zero the ring rows (so conv1 output on the
    # ring is exactly 0 and doubles as conv2's zero padding) and append it as the
    # last channel (it carries the conv1 bias in-kernel and masks the GAP).
    pv = (jnp.arange(hp) >= 1) & (jnp.arange(hp) <= h)
    qv = (jnp.arange(wp) >= 1) & (jnp.arange(wp) <= w)
    m2 = (pv[:, None] & qv[None, :]).astype(jnp.float32)              # (Hp,Wp)
    feat = feat * m2[None, :, :, None]
    ind = jnp.broadcast_to(m2[None, :, :, None], (n, hp, wp, 1))
    xin = jnp.concatenate([feat, ind], axis=-1)                       # (N,Hp,Wp,9C+1)
    xin = xin.reshape(n, hp_wp, cin9 + 1).astype(jnp.bfloat16)
    if n_pad > n:
        xin = jnp.pad(xin, ((0, n_pad - n), (0, 0), (0, 0)))

    kernel = functools.partial(
        _fused_backbone_kernel,
        hp_wp=hp_wp, wp=wp, padr=padr, hid=hid, fdim=fdim, cin9=cin9,
        bs=bs, chunk=_CHUNK, inv_hw=1.0 / (h * w))

    out = pl.pallas_call(
        kernel,
        out_shape=jax.ShapeDtypeStruct((n_pad, 1, fdim), jnp.float32),
        grid_spec=pltpu.PrefetchScalarGridSpec(
            num_scalar_prefetch=0,
            grid=(n_blocks,),
            in_specs=[
                pl.BlockSpec((bs, hp_wp, cin9 + 1), lambda b: (b, 0, 0)),  # samples
                pl.BlockSpec((cin9 + 1, hid), lambda b: (0, 0)),           # w1 (revisited)
                pl.BlockSpec((3, 3 * hid, fdim), lambda b: (0, 0, 0)),     # w2 (revisited)
                pl.BlockSpec((1, fdim), lambda b: (0, 0)),                 # b2
            ],
            out_specs=pl.BlockSpec((bs, 1, fdim), lambda b: (b, 0, 0)),
            scratch_shapes=[pltpu.VMEM((hp_wp + 2 * padr, hid), jnp.bfloat16)],
        ),
        compiler_params=pltpu.CompilerParams(
            # Batch blocks are independent -> shard across both TCs on v7x.
            dimension_semantics=("parallel",),
        ),
    )(xin, w1_aug, w2_grp, b2_row)
    return out[:n, 0, :]


_forward_pallas_jit = jax.jit(_forward_pallas)


# ----------------------------------------------------------------------------
# SimpleNet: forward(x) = backbone(x)
# ----------------------------------------------------------------------------
class SimpleNetPallas:
    """Pallas port of SimpleNet with a concrete small CNN backbone."""

    def __init__(self, cin=4, hidden=32, fdim=32, key=jax.random.PRNGKey(0)):
        k1, k2, k3, k4 = jax.random.split(key, 4)
        # Deterministic synthetic parameters in PyTorch conv layout (OIHW).
        self.w1 = jax.random.normal(k1, (hidden, cin, 3, 3), jnp.float32) * 0.1
        self.b1 = jax.random.normal(k2, (hidden,), jnp.float32) * 0.01
        self.w2 = jax.random.normal(k3, (fdim, hidden, 3, 3), jnp.float32) * 0.1
        self.b2 = jax.random.normal(k4, (fdim,), jnp.float32) * 0.01
        self._fdim = fdim

        # Prepacked MXU-friendly weights, hoisted out of forward:
        #   conv1: OIHW -> (kh,kw,Cin,Cout) -> (9*Cin, HID); the bias is appended
        #   as one extra row, paired with the interior-indicator input channel.
        w1_flat = jnp.transpose(self.w1, (2, 3, 1, 0)).reshape(9 * cin, hidden)
        self.w1_aug = jnp.concatenate(
            [w1_flat, self.b1.reshape(1, hidden)], axis=0).astype(jnp.bfloat16)
        #   conv2: OIHW -> (kh,kw,HID,FDIM) -> grouped per kh as (3, 3*HID, FDIM).
        self.w2_grp = (jnp.transpose(self.w2, (2, 3, 1, 0))
                       .reshape(3, 3 * hidden, fdim).astype(jnp.bfloat16))
        self.b2_row = self.b2.reshape(1, fdim).astype(jnp.float32)

    @property
    def fdim(self):
        return self._fdim

    def forward(self, x_nchw):
        # External API stays NCHW (PyTorch convention).
        return _forward_pallas_jit(x_nchw, self.w1_aug, self.w2_grp, self.b2_row)


# ----------------------------------------------------------------------------
# Reference check + demo
# ----------------------------------------------------------------------------
def _reference_forward(net, x_nchw):
    """Pure-JAX f32 reference (lax conv) for correctness validation."""
    x = x_nchw.astype(jnp.float32)

    def conv(x, w, b):
        y = jax.lax.conv_general_dilated(
            x, w, window_strides=(1, 1), padding="SAME",
            dimension_numbers=("NCHW", "OIHW", "NCHW"),
        )
        return jnp.maximum(y + b[None, :, None, None], 0.0)

    x = conv(x, net.w1, net.b1)
    x = conv(x, net.w2, net.b2)
    return jnp.mean(x, axis=(2, 3))  # (N, fdim)


if __name__ == "__main__":
    key = jax.random.PRNGKey(0)
    k_in, k_net = jax.random.split(key)

    # Small shapes consistent with a CNN backbone forward.
    N, C, H, W = 2, 4, 16, 16
    x = jax.random.normal(k_in, (N, C, H, W), jnp.float32)

    net = SimpleNetPallas(cin=C, hidden=32, fdim=32, key=k_net)

    f = net.forward(x)
    f = jax.block_until_ready(f)

    ref = _reference_forward(net, x)
    assert f.shape == (N, net.fdim), f.shape
    # bf16 MXU operands (f32 accumulate) -> relaxed tolerance vs. the f32 reference.
    assert jnp.allclose(f, ref, atol=5e-2, rtol=5e-2), (
        float(jnp.max(jnp.abs(f - ref)))
    )

    print("KERNEL_OK")
</pallas_src>

<mosaic_0001>
module attributes {stable_mosaic.version = 11 : i64} {
  func.func @_fused_backbone_kernel(%arg0: i32, %arg1: memref<1x324x37xbf16, #tpu.memory_space<vmem>>, %arg2: memref<37x32xbf16, #tpu.memory_space<vmem>>, %arg3: memref<3x96x32xbf16, #tpu.memory_space<vmem>>, %arg4: memref<1x32xf32, #tpu.memory_space<vmem>>, %arg5: memref<1x1x32xf32, #tpu.memory_space<vmem>>, %arg6: memref<372x32xbf16, #tpu.memory_space<vmem>>) attributes {dimension_semantics = [#tpu.dimension_semantics<parallel>], iteration_bounds = array<i64: 2>, scalar_prefetch = 0 : i64, scratch_operands = 1 : i64, tpu.core_type = #tpu.core_type<tc>, window_params = [{transform_indices = @transform_0, window_bounds = array<i64: 1, 324, 37>}, {pipeline_mode = #tpu.pipeline_mode<synchronous>, transform_indices = @transform_1, window_bounds = array<i64: 37, 32>}, {pipeline_mode = #tpu.pipeline_mode<synchronous>, transform_indices = @transform_2, window_bounds = array<i64: 3, 96, 32>}, {pipeline_mode = #tpu.pipeline_mode<synchronous>, transform_indices = @transform_3, window_bounds = array<i64: 1, 32>}, {transform_indices = @transform_4, window_bounds = array<i64: 1, 1, 32>}]} {
    %cst = arith.constant 0.000000e+00 : bf16
    %0 = vector.broadcast %cst : bf16 to vector<24x32xbf16>
    %c0 = arith.constant 0 : index
    %c0_0 = arith.constant 0 : index
    %1 = vector.load %arg6[%c0, %c0_0] : memref<372x32xbf16, #tpu.memory_space<vmem>>, vector<24x32xbf16>
    tpu.vector_store %arg6[%c0, %c0_0], %0 {strides = array<i32>} : memref<372x32xbf16, #tpu.memory_space<vmem>>, vector<24x32xbf16>,
    %c348 = arith.constant 348 : index
    %c0_1 = arith.constant 0 : index
    %2 = vector.load %arg6[%c348, %c0_1] : memref<372x32xbf16, #tpu.memory_space<vmem>>, vector<24x32xbf16>
    tpu.vector_store %arg6[%c348, %c0_1], %0 {strides = array<i32>} : memref<372x32xbf16, #tpu.memory_space<vmem>>, vector<24x32xbf16>,
    %c0_2 = arith.constant 0 : index
    %c0_3 = arith.constant 0 : index
    %3 = vector.load %arg2[%c0_2, %c0_3] : memref<37x32xbf16, #tpu.memory_space<vmem>>, vector<37x32xbf16>
    %c0_4 = arith.constant 0 : index
    %c0_5 = arith.constant 0 : index
    %4 = vector.load %arg4[%c0_4, %c0_5] : memref<1x32xf32, #tpu.memory_space<vmem>>, vector<1x32xf32>
    %c0_6 = arith.constant 0 : index
    %c0_7 = arith.constant 0 : index
    %c0_8 = arith.constant 0 : index
    %5 = vector.load %arg1[%c0_6, %c0_7, %c0_8] : memref<1x324x37xbf16, #tpu.memory_space<vmem>>, vector<1x128x37xbf16>
    %6 = vector.shape_cast %5 : vector<1x128x37xbf16> to vector<128x37xbf16>
    %cst_9 = arith.constant dense<0.000000e+00> : vector<128x32xf32>
    %7 = tpu.matmul %6, %3, %cst_9 {dimension_numbers = #tpu.dot_dimension_numbers<[1], [0], [0], [1], [0, 0, 1, 1], [], []>} : vector<128x37xbf16>, vector<37x32xbf16>, vector<128x32xf32> -> vector<128x32xf32>
    %cst_10 = arith.constant 0.000000e+00 : f32
    %8 = vector.broadcast %cst_10 : f32 to vector<128x32xf32>
    %9 = arith.maximumf %7, %8 : vector<128x32xf32>
    %10 = arith.truncf %9 : vector<128x32xf32> to vector<128x32xbf16>
    %c24 = arith.constant 24 : index
    %c0_11 = arith.constant 0 : index
    %11 = vector.load %arg6[%c24, %c0_11] : memref<372x32xbf16, #tpu.memory_space<vmem>>, vector<128x32xbf16>
    tpu.vector_store %arg6[%c24, %c0_11], %10 {strides = array<i32>} : memref<372x32xbf16, #tpu.memory_space<vmem>>, vector<128x32xbf16>,
    %c0_12 = arith.constant 0 : index
    %c128 = arith.constant 128 : index
    %c0_13 = arith.constant 0 : index
    %12 = vector.load %arg1[%c0_12, %c128, %c0_13] : memref<1x324x37xbf16, #tpu.memory_space<vmem>>, vector<1x128x37xbf16>
    %13 = vector.shape_cast %12 : vector<1x128x37xbf16> to vector<128x37xbf16>
    %cst_14 = arith.constant dense<0.000000e+00> : vector<128x32xf32>
    %14 = tpu.matmul %13, %3, %cst_14 {dimension_numbers = #tpu.dot_dimension_numbers<[1], [0], [0], [1], [0, 0, 1, 1], [], []>} : vector<128x37xbf16>, vector<37x32xbf16>, vector<128x32xf32> -> vector<128x32xf32>
    %cst_15 = arith.constant 0.000000e+00 : f32
    %15 = vector.broadcast %cst_15 : f32 to vector<128x32xf32>
    %16 = arith.maximumf %14, %15 : vector<128x32xf32>
    %17 = arith.truncf %16 : vector<128x32xf32> to vector<128x32xbf16>
    %c152 = arith.constant 152 : index
    %c0_16 = arith.constant 0 : index
    %18 = vector.load %arg6[%c152, %c0_16] : memref<372x32xbf16, #tpu.memory_space<vmem>>, vector<128x32xbf16>
    tpu.vector_store %arg6[%c152, %c0_16], %17 {strides = array<i32>} : memref<372x32xbf16, #tpu.memory_space<vmem>>, vector<128x32xbf16>,
    %c0_17 = arith.constant 0 : index
    %c256 = arith.constant 256 : index
    %c0_18 = arith.constant 0 : index
    %19 = vector.load %arg1[%c0_17, %c256, %c0_18] : memref<1x324x37xbf16, #tpu.memory_space<vmem>>, vector<1x68x37xbf16>
    %20 = vector.shape_cast %19 : vector<1x68x37xbf16> to vector<68x37xbf16>
    %cst_19 = arith.constant dense<0.000000e+00> : vector<68x32xf32>
    %21 = tpu.matmul %20, %3, %cst_19 {dimension_numbers = #tpu.dot_dimension_numbers<[1], [0], [0], [1], [0, 0, 1, 1], [], []>} : vector<68x37xbf16>, vector<37x32xbf16>, vector<68x32xf32> -> vector<68x32xf32>
    %cst_20 = arith.constant 0.000000e+00 : f32
    %22 = vector.broadcast %cst_20 : f32 to vector<68x32xf32>
    %23 = arith.maximumf %21, %22 : vector<68x32xf32>
    %24 = arith.truncf %23 : vector<68x32xf32> to vector<68x32xbf16>
    %c280 = arith.constant 280 : index
    %c0_21 = arith.constant 0 : index
    %25 = vector.load %arg6[%c280, %c0_21] : memref<372x32xbf16, #tpu.memory_space<vmem>>, vector<68x32xbf16>
    tpu.vector_store %arg6[%c280, %c0_21], %24 {strides = array<i32>} : memref<372x32xbf16, #tpu.memory_space<vmem>>, vector<68x32xbf16>,
    %cst_22 = arith.constant 0.000000e+00 : f32
    %26 = vector.broadcast %cst_22 : f32 to vector<1x32xf32>
    %cst_23 = arith.constant 0.000000e+00 : f32
    %27 = vector.broadcast %cst_23 : f32 to vector<128x32xf32>
    %c5 = arith.constant 5 : index
    %c0_24 = arith.constant 0 : index
    %28 = vector.load %arg6[%c5, %c0_24] : memref<372x32xbf16, #tpu.memory_space<vmem>>, vector<128x32xbf16>
    %c6 = arith.constant 6 : index
    %c0_25 = arith.constant 0 : index
    %29 = vector.load %arg6[%c6, %c0_25] : memref<372x32xbf16, #tpu.memory_space<vmem>>, vector<128x32xbf16>
    %c7 = arith.constant 7 : index
    %c0_26 = arith.constant 0 : index
    %30 = vector.load %arg6[%c7, %c0_26] : memref<372x32xbf16, #tpu.memory_space<vmem>>, vector<128x32xbf16>
    %31 = tpu.concatenate %28, %29, %30 in 1 : vector<128x32xbf16>, vector<128x32xbf16>, vector<128x32xbf16> -> vector<128x96xbf16>
    %c0_27 = arith.constant 0 : index
    %c0_28 = arith.constant 0 : index
    %c0_29 = arith.constant 0 : index
    %32 = vector.load %arg3[%c0_27, %c0_28, %c0_29] : memref<3x96x32xbf16, #tpu.memory_space<vmem>>, vector<1x96x32xbf16>
    %33 = vector.shape_cast %32 : vector<1x96x32xbf16> to vector<96x32xbf16>
    %cst_30 = arith.constant dense<0.000000e+00> : vector<128x32xf32>
    %34 = tpu.matmul %31, %33, %cst_30 {dimension_numbers = #tpu.dot_dimension_numbers<[1], [0], [0], [1], [0, 0, 1, 1], [], []>} : vector<128x96xbf16>, vector<96x32xbf16>, vector<128x32xf32> -> vector<128x32xf32>
    %35 = arith.addf %27, %34 : vector<128x32xf32>
    %c23 = arith.constant 23 : index
    %c0_31 = arith.constant 0 : index
    %36 = vector.load %arg6[%c23, %c0_31] : memref<372x32xbf16, #tpu.memory_space<vmem>>, vector<128x32xbf16>
    %c24_32 = arith.constant 24 : index
    %c0_33 = arith.constant 0 : index
    %37 = vector.load %arg6[%c24_32, %c0_33] : memref<372x32xbf16, #tpu.memory_space<vmem>>, vector<128x32xbf16>
    %c25 = arith.constant 25 : index
    %c0_34 = arith.constant 0 : index
    %38 = vector.load %arg6[%c25, %c0_34] : memref<372x32xbf16, #tpu.memory_space<vmem>>, vector<128x32xbf16>
    %39 = tpu.concatenate %36, %37, %38 in 1 : vector<128x32xbf16>, vector<128x32xbf16>, vector<128x32xbf16> -> vector<128x96xbf16>
    %c1 = arith.constant 1 : index
    %c0_35 = arith.constant 0 : index
    %c0_36 = arith.constant 0 : index
    %40 = vector.load %arg3[%c1, %c0_35, %c0_36] : memref<3x96x32xbf16, #tpu.memory_space<vmem>>, vector<1x96x32xbf16>
    %41 = vector.shape_cast %40 : vector<1x96x32xbf16> to vector<96x32xbf16>
    %cst_37 = arith.constant dense<0.000000e+00> : vector<128x32xf32>
    %42 = tpu.matmul %39, %41, %cst_37 {dimension_numbers = #tpu.dot_dimension_numbers<[1], [0], [0], [1], [0, 0, 1, 1], [], []>} : vector<128x96xbf16>, vector<96x32xbf16>, vector<128x32xf32> -> vector<128x32xf32>
    %43 = arith.addf %35, %42 : vector<128x32xf32>
    %c41 = arith.constant 41 : index
    %c0_38 = arith.constant 0 : index
    %44 = vector.load %arg6[%c41, %c0_38] : memref<372x32xbf16, #tpu.memory_space<vmem>>, vector<128x32xbf16>
    %c42 = arith.constant 42 : index
    %c0_39 = arith.constant 0 : index
    %45 = vector.load %arg6[%c42, %c0_39] : memref<372x32xbf16, #tpu.memory_space<vmem>>, vector<128x32xbf16>
    %c43 = arith.constant 43 : index
    %c0_40 = arith.constant 0 : index
    %46 = vector.load %arg6[%c43, %c0_40] : memref<372x32xbf16, #tpu.memory_space<vmem>>, vector<128x32xbf16>
    %47 = tpu.concatenate %44, %45, %46 in 1 : vector<128x32xbf16>, vector<128x32xbf16>, vector<128x32xbf16> -> vector<128x96xbf16>
    %c2 = arith.constant 2 : index
    %c0_41 = arith.constant 0 : index
    %c0_42 = arith.constant 0 : index
    %48 = vector.load %arg3[%c2, %c0_41, %c0_42] : memref<3x96x32xbf16, #tpu.memory_space<vmem>>, vector<1x96x32xbf16>
    %49 = vector.shape_cast %48 : vector<1x96x32xbf16> to vector<96x32xbf16>
    %cst_43 = arith.constant dense<0.000000e+00> : vector<128x32xf32>
    %50 = tpu.matmul %47, %49, %cst_43 {dimension_numbers = #tpu.dot_dimension_numbers<[1], [0], [0], [1], [0, 0, 1, 1], [], []>} : vector<128x96xbf16>, vector<96x32xbf16>, vector<128x32xf32> -> vector<128x32xf32>
    %51 = arith.addf %43, %50 : vector<128x32xf32>
    %52 = vector.broadcast %4 : vector<1x32xf32> to vector<128x32xf32>
    %53 = arith.addf %51, %52 : vector<128x32xf32>
    %cst_44 = arith.constant 0.000000e+00 : f32
    %54 = vector.broadcast %cst_44 : f32 to vector<128x32xf32>
    %55 = arith.maximumf %53, %54 : vector<128x32xf32>
    %c0_45 = arith.constant 0 : index
    %c0_46 = arith.constant 0 : index
    %c0_47 = arith.constant 0 : index
    %56 = vector.load %arg1[%c0_45, %c0_46, %c0_47] : memref<1x324x37xbf16, #tpu.memory_space<vmem>>, vector<1x128x37xbf16>
    %57 = vector.shape_cast %56 : vector<1x128x37xbf16> to vector<128x37xbf16>
    %58 = vector.extract_strided_slice %57 {offsets = [0, 36], sizes = [128, 1], strides = [1, 1]} : vector<128x37xbf16> to vector<128x1xbf16>
    %59 = arith.extf %58 : vector<128x1xbf16> to vector<128x1xf32>
    %60 = vector.broadcast %59 : vector<128x1xf32> to vector<128x32xf32>
    %61 = arith.mulf %55, %60 : vector<128x32xf32>
    %cst_48 = arith.constant dense<0.000000e+00> : vector<32xf32>
    %62 = vector.multi_reduction <add>, %61, %cst_48 [0] : vector<128x32xf32> to vector<32xf32>
    %63 = vector.shape_cast %62 : vector<32xf32> to vector<1x32xf32>
    %64 = arith.addf %26, %63 : vector<1x32xf32>
    %cst_49 = arith.constant 0.000000e+00 : f32
    %65 = vector.broadcast %cst_49 : f32 to vector<128x32xf32>
    %c133 = arith.constant 133 : index
    %c0_50 = arith.constant 0 : index
    %66 = vector.load %arg6[%c133, %c0_50] : memref<372x32xbf16, #tpu.memory_space<vmem>>, vector<128x32xbf16>
    %c134 = arith.constant 134 : index
    %c0_51 = arith.constant 0 : index
    %67 = vector.load %arg6[%c134, %c0_51] : memref<372x32xbf16, #tpu.memory_space<vmem>>, vector<128x32xbf16>
    %c135 = arith.constant 135 : index
    %c0_52 = arith.constant 0 : index
    %68 = vector.load %arg6[%c135, %c0_52] : memref<372x32xbf16, #tpu.memory_space<vmem>>, vector<128x32xbf16>
    %69 = tpu.concatenate %66, %67, %68 in 1 : vector<128x32xbf16>, vector<128x32xbf16>, vector<128x32xbf16> -> vector<128x96xbf16>
    %c0_53 = arith.constant 0 : index
    %c0_54 = arith.constant 0 : index
    %c0_55 = arith.constant 0 : index
    %70 = vector.load %arg3[%c0_53, %c0_54, %c0_55] : memref<3x96x32xbf16, #tpu.memory_space<vmem>>, vector<1x96x32xbf16>
    %71 = vector.shape_cast %70 : vector<1x96x32xbf16> to vector<96x32xbf16>
    %cst_56 = arith.constant dense<0.000000e+00> : vector<128x32xf32>
    %72 = tpu.matmul %69, %71, %cst_56 {dimension_numbers = #tpu.dot_dimension_numbers<[1], [0], [0], [1], [0, 0, 1, 1], [], []>} : vector<128x96xbf16>, vector<96x32xbf16>, vector<128x32xf32> -> vector<128x32xf32>
    %73 = arith.addf %65, %72 : vector<128x32xf32>
    %c151 = arith.constant 151 : index
    %c0_57 = arith.constant 0 : index
    %74 = vector.load %arg6[%c151, %c0_57] : memref<372x32xbf16, #tpu.memory_space<vmem>>, vector<128x32xbf16>
    %c152_58 = arith.constant 152 : index
    %c0_59 = arith.constant 0 : index
    %75 = vector.load %arg6[%c152_58, %c0_59] : memref<372x32xbf16, #tpu.memory_space<vmem>>, vector<128x32xbf16>
    %c153 = arith.constant 153 : index
    %c0_60 = arith.constant 0 : index
    %76 = vector.load %arg6[%c153, %c0_60] : memref<372x32xbf16, #tpu.memory_space<vmem>>, vector<128x32xbf16>
    %77 = tpu.concatenate %74, %75, %76 in 1 : vector<128x32xbf16>, vector<128x32xbf16>, vector<128x32xbf16> -> vector<128x96xbf16>
    %c1_61 = arith.constant 1 : index
    %c0_62 = arith.constant 0 : index
    %c0_63 = arith.constant 0 : index
    %78 = vector.load %arg3[%c1_61, %c0_62, %c0_63] : memref<3x96x32xbf16, #tpu.memory_space<vmem>>, vector<1x96x32xbf16>
    %79 = vector.shape_cast %78 : vector<1x96x32xbf16> to vector<96x32xbf16>
    %cst_64 = arith.constant dense<0.000000e+00> : vector<128x32xf32>
    %80 = tpu.matmul %77, %79, %cst_64 {dimension_numbers = #tpu.dot_dimension_numbers<[1], [0], [0], [1], [0, 0, 1, 1], [], []>} : vector<128x96xbf16>, vector<96x32xbf16>, vector<128x32xf32> -> vector<128x32xf32>
    %81 = arith.addf %73, %80 : vector<128x32xf32>
    %c169 = arith.constant 169 : index
    %c0_65 = arith.constant 0 : index
    %82 = vector.load %arg6[%c169, %c0_65] : memref<372x32xbf16, #tpu.memory_space<vmem>>, vector<128x32xbf16>
    %c170 = arith.constant 170 : index
    %c0_66 = arith.constant 0 : index
    %83 = vector.load %arg6[%c170, %c0_66] : memref<372x32xbf16, #tpu.memory_space<vmem>>, vector<128x32xbf16>
    %c171 = arith.constant 171 : index
    %c0_67 = arith.constant 0 : index
    %84 = vector.load %arg6[%c171, %c0_67] : memref<372x32xbf16, #tpu.memory_space<vmem>>, vector<128x32xbf16>
    %85 = tpu.concatenate %82, %83, %84 in 1 : vector<128x32xbf16>, vector<128x32xbf16>, vector<128x32xbf16> -> vector<128x96xbf16>
    %c2_68 = arith.constant 2 : index
    %c0_69 = arith.constant 0 : index
    %c0_70 = arith.constant 0 : index
    %86 = vector.load %arg3[%c2_68, %c0_69, %c0_70] : memref<3x96x32xbf16, #tpu.memory_space<vmem>>, vector<1x96x32xbf16>
    %87 = vector.shape_cast %86 : vector<1x96x32xbf16> to vector<96x32xbf16>
    %cst_71 = arith.constant dense<0.000000e+00> : vector<128x32xf32>
    %88 = tpu.matmul %85, %87, %cst_71 {dimension_numbers = #tpu.dot_dimension_numbers<[1], [0], [0], [1], [0, 0, 1, 1], [], []>} : vector<128x96xbf16>, vector<96x32xbf16>, vector<128x32xf32> -> vector<128x32xf32>
    %89 = arith.addf %81, %88 : vector<128x32xf32>
    %90 = vector.broadcast %4 : vector<1x32xf32> to vector<128x32xf32>
    %91 = arith.addf %89, %90 : vector<128x32xf32>
    %cst_72 = arith.constant 0.000000e+00 : f32
    %92 = vector.broadcast %cst_72 : f32 to vector<128x32xf32>
    %93 = arith.maximumf %91, %92 : vector<128x32xf32>
    %c0_73 = arith.constant 0 : index
    %c128_74 = arith.constant 128 : index
    %c0_75 = arith.constant 0 : index
    %94 = vector.load %arg1[%c0_73, %c128_74, %c0_75] : memref<1x324x37xbf16, #tpu.memory_space<vmem>>, vector<1x128x37xbf16>
    %95 = vector.shape_cast %94 : vector<1x128x37xbf16> to vector<128x37xbf16>
    %96 = vector.extract_strided_slice %95 {offsets = [0, 36], sizes = [128, 1], strides = [1, 1]} : vector<128x37xbf16> to vector<128x1xbf16>
    %97 = arith.extf %96 : vector<128x1xbf16> to vector<128x1xf32>
    %98 = vector.broadcast %97 : vector<128x1xf32> to vector<128x32xf32>
    %99 = arith.mulf %93, %98 : vector<128x32xf32>
    %cst_76 = arith.constant dense<0.000000e+00> : vector<32xf32>
    %100 = vector.multi_reduction <add>, %99, %cst_76 [0] : vector<128x32xf32> to vector<32xf32>
    %101 = vector.shape_cast %100 : vector<32xf32> to vector<1x32xf32>
    %102 = arith.addf %64, %101 : vector<1x32xf32>
    %cst_77 = arith.constant 0.000000e+00 : f32
    %103 = vector.broadcast %cst_77 : f32 to vector<68x32xf32>
    %c261 = arith.constant 261 : index
    %c0_78 = arith.constant 0 : index
    %104 = vector.load %arg6[%c261, %c0_78] : memref<372x32xbf16, #tpu.memory_space<vmem>>, vector<68x32xbf16>
    %c262 = arith.constant 262 : index
    %c0_79 = arith.constant 0 : index
    %105 = vector.load %arg6[%c262, %c0_79] : memref<372x32xbf16, #tpu.memory_space<vmem>>, vector<68x32xbf16>
    %c263 = arith.constant 263 : index
    %c0_80 = arith.constant 0 : index
    %106 = vector.load %arg6[%c263, %c0_80] : memref<372x32xbf16, #tpu.memory_space<vmem>>, vector<68x32xbf16>
    %107 = tpu.concatenate %104, %105, %106 in 1 : vector<68x32xbf16>, vector<68x32xbf16>, vector<68x32xbf16> -> vector<68x96xbf16>
    %c0_81 = arith.constant 0 : index
    %c0_82 = arith.constant 0 : index
    %c0_83 = arith.constant 0 : index
    %108 = vector.load %arg3[%c0_81, %c0_82, %c0_83] : memref<3x96x32xbf16, #tpu.memory_space<vmem>>, vector<1x96x32xbf16>
    %109 = vector.shape_cast %108 : vector<1x96x32xbf16> to vector<96x32xbf16>
    %cst_84 = arith.constant dense<0.000000e+00> : vector<68x32xf32>
    %110 = tpu.matmul %107, %109, %cst_84 {dimension_numbers = #tpu.dot_dimension_numbers<[1], [0], [0], [1], [0, 0, 1, 1], [], []>} : vector<68x96xbf16>, vector<96x32xbf16>, vector<68x32xf32> -> vector<68x32xf32>
    %111 = arith.addf %103, %110 : vector<68x32xf32>
    %c279 = arith.constant 279 : index
    %c0_85 = arith.constant 0 : index
    %112 = vector.load %arg6[%c279, %c0_85] : memref<372x32xbf16, #tpu.memory_space<vmem>>, vector<68x32xbf16>
    %c280_86 = arith.constant 280 : index
    %c0_87 = arith.constant 0 : index
    %113 = vector.load %arg6[%c280_86, %c0_87] : memref<372x32xbf16, #tpu.memory_space<vmem>>, vector<68x32xbf16>
    %c281 = arith.constant 281 : index
    %c0_88 = arith.constant 0 : index
    %114 = vector.load %arg6[%c281, %c0_88] : memref<372x32xbf16, #tpu.memory_space<vmem>>, vector<68x32xbf16>
    %115 = tpu.concatenate %112, %113, %114 in 1 : vector<68x32xbf16>, vector<68x32xbf16>, vector<68x32xbf16> -> vector<68x96xbf16>
    %c1_89 = arith.constant 1 : index
    %c0_90 = arith.constant 0 : index
    %c0_91 = arith.constant 0 : index
    %116 = vector.load %arg3[%c1_89, %c0_90, %c0_91] : memref<3x96x32xbf16, #tpu.memory_space<vmem>>, vector<1x96x32xbf16>
    %117 = vector.shape_cast %116 : vector<1x96x32xbf16> to vector<96x32xbf16>
    %cst_92 = arith.constant dense<0.000000e+00> : vector<68x32xf32>
    %118 = tpu.matmul %115, %117, %cst_92 {dimension_numbers = #tpu.dot_dimension_numbers<[1], [0], [0], [1], [0, 0, 1, 1], [], []>} : vector<68x96xbf16>, vector<96x32xbf16>, vector<68x32xf32> -> vector<68x32xf32>
    %119 = arith.addf %111, %118 : vector<68x32xf32>
    %c297 = arith.constant 297 : index
    %c0_93 = arith.constant 0 : index
    %120 = vector.load %arg6[%c297, %c0_93] : memref<372x32xbf16, #tpu.memory_space<vmem>>, vector<68x32xbf16>
    %c298 = arith.constant 298 : index
    %c0_94 = arith.constant 0 : index
    %121 = vector.load %arg6[%c298, %c0_94] : memref<372x32xbf16, #tpu.memory_space<vmem>>, vector<68x32xbf16>
    %c299 = arith.constant 299 : index
    %c0_95 = arith.constant 0 : index
    %122 = vector.load %arg6[%c299, %c0_95] : memref<372x32xbf16, #tpu.memory_space<vmem>>, vector<68x32xbf16>
    %123 = tpu.concatenate %120, %121, %122 in 1 : vector<68x32xbf16>, vector<68x32xbf16>, vector<68x32xbf16> -> vector<68x96xbf16>
    %c2_96 = arith.constant 2 : index
    %c0_97 = arith.constant 0 : index
    %c0_98 = arith.constant 0 : index
    %124 = vector.load %arg3[%c2_96, %c0_97, %c0_98] : memref<3x96x32xbf16, #tpu.memory_space<vmem>>, vector<1x96x32xbf16>
    %125 = vector.shape_cast %124 : vector<1x96x32xbf16> to vector<96x32xbf16>
    %cst_99 = arith.constant dense<0.000000e+00> : vector<68x32xf32>
    %126 = tpu.matmul %123, %125, %cst_99 {dimension_numbers = #tpu.dot_dimension_numbers<[1], [0], [0], [1], [0, 0, 1, 1], [], []>} : vector<68x96xbf16>, vector<96x32xbf16>, vector<68x32xf32> -> vector<68x32xf32>
    %127 = arith.addf %119, %126 : vector<68x32xf32>
    %128 = vector.broadcast %4 : vector<1x32xf32> to vector<68x32xf32>
    %129 = arith.addf %127, %128 : vector<68x32xf32>
    %cst_100 = arith.constant 0.000000e+00 : f32
    %130 = vector.broadcast %cst_100 : f32 to vector<68x32xf32>
    %131 = arith.maximumf %129, %130 : vector<68x32xf32>
    %c0_101 = arith.constant 0 : index
    %c256_102 = arith.constant 256 : index
    %c0_103 = arith.constant 0 : index
    %132 = vector.load %arg1[%c0_101, %c256_102, %c0_103] : memref<1x324x37xbf16, #tpu.memory_space<vmem>>, vector<1x68x37xbf16>
    %133 = vector.shape_cast %132 : vector<1x68x37xbf16> to vector<68x37xbf16>
    %134 = vector.extract_strided_slice %133 {offsets = [0, 36], sizes = [68, 1], strides = [1, 1]} : vector<68x37xbf16> to vector<68x1xbf16>
    %135 = arith.extf %134 : vector<68x1xbf16> to vector<68x1xf32>
    %136 = vector.broadcast %135 : vector<68x1xf32> to vector<68x32xf32>
    %137 = arith.mulf %131, %136 : vector<68x32xf32>
    %cst_104 = arith.constant dense<0.000000e+00> : vector<32xf32>
    %138 = vector.multi_reduction <add>, %137, %cst_104 [0] : vector<68x32xf32> to vector<32xf32>
    %139 = vector.shape_cast %138 : vector<32xf32> to vector<1x32xf32>
    %140 = arith.addf %102, %139 : vector<1x32xf32>
    %cst_105 = arith.constant 3.906250e-03 : f32
    %141 = vector.broadcast %cst_105 : f32 to vector<1x32xf32>
    %142 = arith.mulf %140, %141 : vector<1x32xf32>
    %c0_106 = arith.constant 0 : index
    %c0_107 = arith.constant 0 : index
    %c0_108 = arith.constant 0 : index
    %143 = vector.load %arg5[%c0_106, %c0_107, %c0_108] : memref<1x1x32xf32, #tpu.memory_space<vmem>>, vector<1x1x32xf32>
    %144 = vector.shape_cast %143 : vector<1x1x32xf32> to vector<1x32xf32>
    %145 = vector.shape_cast %142 : vector<1x32xf32> to vector<1x1x32xf32>
    tpu.vector_store %arg5[%c0_106, %c0_107, %c0_108], %145 {strides = array<i32>} : memref<1x1x32xf32, #tpu.memory_space<vmem>>, vector<1x1x32xf32>,
    return
  }
  func.func @transform_0(%arg0: i32) -> (i32, i32, i32) {
    %c0_i32 = arith.constant 0 : i32
    %c0_i32_0 = arith.constant 0 : i32
    %c0_i32_1 = arith.constant 0 : i32
    return %arg0, %c0_i32, %c0_i32_0 : i32, i32, i32
  }
  func.func @transform_1(%arg0: i32) -> (i32, i32) {
    %c0_i32 = arith.constant 0 : i32
    %c0_i32_0 = arith.constant 0 : i32
    %c0_i32_1 = arith.constant 0 : i32
    return %c0_i32, %c0_i32_0 : i32, i32
  }
  func.func @transform_2(%arg0: i32) -> (i32, i32, i32) {
    %c0_i32 = arith.constant 0 : i32
    %c0_i32_0 = arith.constant 0 : i32
    %c0_i32_1 = arith.constant 0 : i32
    %c0_i32_2 = arith.constant 0 : i32
    return %c0_i32, %c0_i32_0, %c0_i32_1 : i32, i32, i32
  }
  func.func @transform_3(%arg0: i32) -> (i32, i32) {
    %c0_i32 = arith.constant 0 : i32
    %c0_i32_0 = arith.constant 0 : i32
    %c0_i32_1 = arith.constant 0 : i32
    return %c0_i32, %c0_i32_0 : i32, i32
  }
  func.func @transform_4(%arg0: i32) -> (i32, i32, i32) {
    %c0_i32 = arith.constant 0 : i32
    %c0_i32_0 = arith.constant 0 : i32
    %c0_i32_1 = arith.constant 0 : i32
    return %arg0, %c0_i32, %c0_i32_0 : i32, i32, i32
  }
}

</mosaic_0001>

<llo_original>
// kernel: _forward_pallas.1
$region0: #{_forward_pallas.1}
  #allocation0 [shape = 'u32[]', space=smem, size = 0x4, offset = 0x4, fixed_abs, tag = 'smem constant byte address 0x4 - core index']
  #allocation1 [shape = 'u32[144,128]{1,0:T(1,128)}', space=vmem, size = 0x12000, scoped, tag = 'internal scratch']
  #allocation2 [shape = 'bf16[372,32]{1,0:T(8,128)(2,1)}', space=vmem, size = 0x17800, scoped, tag = 'scratch operand']
  %s0 = inlined_call_operand.vmem [shape: bf16[2,324,37], index: 0, kind: input, shape index: {}]
  %s1 = inlined_call_operand.vmem [shape: bf16[37,32], index: 1, kind: input, shape index: {}]
  %s2 = inlined_call_operand.vmem [shape: bf16[3,96,32], index: 2, kind: input, shape index: {}]
  %s3 = inlined_call_operand.vmem [shape: f32[1,32], index: 3, kind: input, shape index: {}]
  %s4 = inlined_call_operand.hbm [shape: f32[2,1,32], index: 4, kind: output, shape index: {}]
  %s5 = sld [smem:[#allocation0]]
  $region49: #{_forward_pallas.1} parent=0
    _
  %s7 = ssub.s32 1, %s5
  %s8 = scalar_select 0, %s7, %s5
  $region1: #{_forward_pallas.1} parent=0
    #allocation3 [shape = 'u8[1024]{0}', space=vmem, size = 0x400, scoped, tag = 'output window, operand 0']
    #allocation4 [shape = 's32[2]{0}', space=sflag, size = 0x8, scoped, tag = 'scoped memory for _forward_pallas.1']
    %9 = vsyncpa [#allocation4], 0
    %s10 = scalar_lea.sflag [#allocation4], 1
    %11 = vsyncpa %s10, 0
    loop: start=0, step=1, limit=4
    $region2: #{_forward_pallas.1} parent=1 // loop_pre_header
      _
    $region3: #{_forward_pallas.1} parent=1 // loop_header
      %s13 = sphi 0, %s17
      %p14 = scmp.ge.s32.totalorder %s13, 4
      %s23 = sphi 0, %s25
      %s26 = sphi 0, %s23
      %s27 = sphi 0, %s26
      %s43 = sphi 0, %s27
      %s47 = sphi 0, %s47
      %s49 = sphi 0, %s47
      %s50 = sphi 0, %s49
      %s64 = sphi 0, %s50
      %s68 = sphi 0, %s68
      %s70 = sphi 0, %s68
      %s71 = sphi 0, %s70
      %s85 = sphi 0, %s71
      %s89 = sphi 0, %s89
      %s91 = sphi 0, %s89
      %s92 = sphi 0, %s91
      %s106 = sphi 0, %s92
      %s112 = sphi 0, %s114
      %s115 = sphi 0, %s112
      %s116 = sphi 0, %s115
      %s132 = sphi 0, %s116
    $region4: #{_forward_pallas.1} parent=1 // loop_header_branch
      %16 = sbr.rel (%p14) target = $region8
    $region5: #{_forward_pallas.1} parent=1 // loop_body
      %s18 = ssub.s32 %s13, 1
      %s19 = ssub.s32 %s13, 2
      %s20 = sadd.s32 %s13, 1
      %s21 = ssub.s32 %s13, %s20
      %p22 = scmp.eq.s32.totalorder %s21, 0
      %s24 = sadd.s32 %s23, 1
      %s25 = scalar_select %p22, %s23, %s24
      %p28 = pneg %p22
      %p29 = scmp.eq.s32.totalorder %s13, 1
      %p30 = por %p28, %p29
      %p31 = scmp.ne.s32.totalorder %s23, %s26
      %p32 = scmp.eq.s32.totalorder %s13, 0
      %p33 = por %p31, %p32
      %p34 = scmp.ne.s32.totalorder %s23, %s26
      %p35 = scmp.eq.s32.totalorder %s18, 1
      %p36 = por %p34, %p35
      %p37 = scmp.ne.s32.totalorder %s26, %s27
      %p38 = scmp.eq.s32.totalorder %s18, 0
      %p39 = por %p37, %p38
      %p40 = scmp.ne.s32.totalorder %s26, %s27
      %p41 = scmp.eq.s32.totalorder %s19, 1
      %p42 = por %p40, %p41
      %p44 = scmp.ne.s32.totalorder %s27, %s43
      %p45 = scmp.eq.s32.totalorder %s19, 0
      %p46 = por %p44, %p45
      %s48 = sadd.s32 %s47, 1
      %p51 = scmp.eq.s32.totalorder %s13, 1
      %p52 = scmp.ne.s32.totalorder %s47, %s49
      %p53 = scmp.eq.s32.totalorder %s13, 0
      %p54 = por %p52, %p53
      %p55 = scmp.ne.s32.totalorder %s47, %s49
      %p56 = scmp.eq.s32.totalorder %s18, 1
      %p57 = por %p55, %p56
      %p58 = scmp.ne.s32.totalorder %s49, %s50
      %p59 = scmp.eq.s32.totalorder %s18, 0
      %p60 = por %p58, %p59
      %p61 = scmp.ne.s32.totalorder %s49, %s50
      %p62 = scmp.eq.s32.totalorder %s19, 1
      %p63 = por %p61, %p62
      %p65 = scmp.ne.s32.totalorder %s50, %s64
      %p66 = scmp.eq.s32.totalorder %s19, 0
      %p67 = por %p65, %p66
      %s69 = sadd.s32 %s68, 1
      %p72 = scmp.eq.s32.totalorder %s13, 1
      %p73 = scmp.ne.s32.totalorder %s68, %s70
      %p74 = scmp.eq.s32.totalorder %s13, 0
      %p75 = por %p73, %p74
      %p76 = scmp.ne.s32.totalorder %s68, %s70
      %p77 = scmp.eq.s32.totalorder %s18, 1
      %p78 = por %p76, %p77
      %p79 = scmp.ne.s32.totalorder %s70, %s71
      %p80 = scmp.eq.s32.totalorder %s18, 0
      %p81 = por %p79, %p80
      %p82 = scmp.ne.s32.totalorder %s70, %s71
      %p83 = scmp.eq.s32.totalorder %s19, 1
      %p84 = por %p82, %p83
      %p86 = scmp.ne.s32.totalorder %s71, %s85
      %p87 = scmp.eq.s32.totalorder %s19, 0
      %p88 = por %p86, %p87
      %s90 = sadd.s32 %s89, 1
      %p93 = scmp.eq.s32.totalorder %s13, 1
      %p94 = scmp.ne.s32.totalorder %s89, %s91
      %p95 = scmp.eq.s32.totalorder %s13, 0
      %p96 = por %p94, %p95
      %p97 = scmp.ne.s32.totalorder %s89, %s91
      %p98 = scmp.eq.s32.totalorder %s18, 1
      %p99 = por %p97, %p98
      %p100 = scmp.ne.s32.totalorder %s91, %s92
      %p101 = scmp.eq.s32.totalorder %s18, 0
      %p102 = por %p100, %p101
      %p103 = scmp.ne.s32.totalorder %s91, %s92
      %p104 = scmp.eq.s32.totalorder %s19, 1
      %p105 = por %p103, %p104
      %p107 = scmp.ne.s32.totalorder %s92, %s106
      %p108 = scmp.eq.s32.totalorder %s19, 0
      %p109 = por %p107, %p108
      %s110 = ssub.s32 %s13, %s20
      %p111 = scmp.eq.s32.totalorder %s110, 0
      %s113 = sadd.s32 %s112, 1
      %s114 = scalar_select %p111, %s112, %s113
      %p117 = pneg %p111
      %p118 = scmp.eq.s32.totalorder %s13, 1
      %p119 = por %p117, %p118
      %p120 = scmp.ne.s32.totalorder %s112, %s115
      %p121 = scmp.eq.s32.totalorder %s13, 0
      %p122 = por %p120, %p121
      %p123 = scmp.ne.s32.totalorder %s112, %s115
      %p124 = scmp.eq.s32.totalorder %s18, 1
      %p125 = por %p123, %p124
      %p126 = scmp.ne.s32.totalorder %s115, %s116
      %p127 = scmp.eq.s32.totalorder %s18, 0
      %p128 = por %p126, %p127
      %p129 = scmp.ne.s32.totalorder %s115, %s116
      %p130 = scmp.eq.s32.totalorder %s19, 1
      %p131 = por %p129, %p130
      %p133 = scmp.ne.s32.totalorder %s116, %s132
      %p134 = scmp.eq.s32.totalorder %s19, 0
      %p135 = por %p133, %p134
      %p136 = scmp.le.s32.totalorder 1, %s13
      %p137 = scmp.lt.s32.totalorder %s13, 3
      %p138 = pnand %p136, %p137
      %p139 = pneg %p138
      // Predicated region
      $region9: #{_forward_pallas.1} parent=5 // pred_check
        _
      $region10: #{_forward_pallas.1} parent=5 // pred_check_branch
        %141 = sbr.rel (%p138) target = $region12
      $region11: #{_forward_pallas.1} parent=5 // pred_region
        %s142 = ssub.s32 %s13, 1
        // Predicated region
        $region13: #{_forward_pallas.1} parent=11 // pred_check
          %p143 = pneg %p60
        $region14: #{_forward_pallas.1} parent=11 // pred_check_branch
          %145 = sbr.rel (%p143) target = $region16
        $region15: #{_forward_pallas.1} parent=11 // pred_region
          _
        $region16: #{_forward_pallas.1} parent=11 // pred_fallthru
          _
        // Predicated region
        $region17: #{_forward_pallas.1} parent=11 // pred_check
          %p146 = pneg %p81
        $region18: #{_forward_pallas.1} parent=11 // pred_check_branch
          %148 = sbr.rel (%p146) target = $region20
        $region19: #{_forward_pallas.1} parent=11 // pred_region
          _
        $region20: #{_forward_pallas.1} parent=11 // pred_fallthru
          _
        // Predicated region
        $region21: #{_forward_pallas.1} parent=11 // pred_check
          %p149 = pneg %p102
        $region22: #{_forward_pallas.1} parent=11 // pred_check_branch
          %151 = sbr.rel (%p149) target = $region24
        $region23: #{_forward_pallas.1} parent=11 // pred_region
          _
        $region24: #{_forward_pallas.1} parent=11 // pred_fallthru
          _
      $region12: #{_forward_pallas.1} parent=5 // pred_fallthru
        _
      %p152 = scmp.lt.s32.totalorder %s13, 2
      // Predicated region
      $region25: #{_forward_pallas.1} parent=5 // pred_check
        %p153 = pneg %p152
      $region26: #{_forward_pallas.1} parent=5 // pred_check_branch
        %155 = sbr.rel (%p153) target = $region28
      $region27: #{_forward_pallas.1} parent=5 // pred_region
        // Predicated region
        $region29: #{_forward_pallas.1} parent=27 // pred_check
          %p156 = pneg %p33
        $region30: #{_forward_pallas.1} parent=27 // pred_check_branch
          %158 = sbr.rel (%p156) target = $region32
        $region31: #{_forward_pallas.1} parent=27 // pred_region
          %p159 = scmp.lt.s32.totalorder %s13, 1
          %s160 = scalar_select %p159, %s13, 1
          %s161 = smul.addr %s160, 41
          %s162 = smul.addr %s161, 4
          %s163 = scalar_lea.vmem %s0, %s162
        $region32: #{_forward_pallas.1} parent=27 // pred_fallthru
          _
      $region28: #{_forward_pallas.1} parent=5 // pred_fallthru
        _
      %p164 = scmp.le.s32.totalorder 1, %s13
      %p165 = scmp.lt.s32.totalorder %s13, 3
      %p166 = pnand %p164, %p165
      %p167 = pneg %p166
      // Predicated region
      $region33: #{_forward_pallas.1} parent=5 // pred_check
        _
      $region34: #{_forward_pallas.1} parent=5 // pred_check_branch
        %169 = sbr.rel (%p166) target = $region36
      $region35: #{_forward_pallas.1} parent=5 // pred_region
        %s170 = ssub.s32 %s13, 1
        %p171 = scmp.lt.s32.totalorder %s18, 1
        %s172 = scalar_select %p171, %s18, 1
        %s173 = smul.addr %s172, 41
        %s174 = smul.addr %s173, 4
        %s175 = scalar_lea.vmem %s0, %s174
        %p176 = pneg %p39
        %p177 = pneg %p36
        %p178 = pneg %p60
        %p179 = pneg %p57
        %p180 = pneg %p81
        %p181 = pneg %p78
        %p182 = pneg %p102
        %p183 = pneg %p99
        %p184 = pneg %p128
        %p185 = pneg %p125
        %s186 = sand.u32 %s115, 1
        %s187 = scalar_lea.sflag [#allocation4], %s186
        %s188 = sand.u32 %s115, 1
        %s189 = scalar_lea.vmem [#allocation3], %s188
        %p190 = scmp.lt.s32.totalorder %s18, 1
        %s191 = scalar_select %p190, %s18, 1
        %s192 = smul.addr %s191, 41
        %s193 = smul.addr %s192, 4
        %s194 = scalar_lea.vmem %s0, %s193
        %vm196 = vcmask 257024
        %197 = vst.msk [vmem:[#allocation2] sm:$0xf] %vm196, 0
        %198 = vst.msk [vmem:[#allocation2 + $0x4] sm:$0xf] %vm196, 0
        %199 = vst.msk [vmem:[#allocation2 + $0x8] sm:$0xf] %vm196, 0
        %vm200 = vcmask 257026
        %201 = vst.msk [vmem:[#allocation2 + $0xac] sm:$0xc] %vm200, 0
        %202 = vst.msk [vmem:[#allocation2 + $0xb0] sm:$0xf] %vm196, 0
        %203 = vst.msk [vmem:[#allocation2 + $0xb4] sm:$0xf] %vm196, 0
        %vm204 = vcmask 254976
        %205 = vst.msk [vmem:[#allocation2 + $0xb8] sm:$0x3] %vm204, 0
        %v206 = vld [vmem:[%s1] sm:$0xf]
        %v207 = vld [vmem:[%s1 + $0x4] sm:$0xf]
        %v208 = vld [vmem:[%s1 + $0x8] sm:$0xf]
        %v209 = vld [vmem:[%s1 + $0xc] sm:$0xf]
        %v210 = vld [vmem:[%s1 + $0x10] sm:$0x7]
        %v211 = vld [vmem:[%s3] sm:$0x1]
        %v212 = vld [vmem:[%s194] sm:$0xf]
        %v213 = vld [vmem:[%s194 + $0x4] sm:$0xf]
        %v214 = vld [vmem:[%s194 + $0x8] sm:$0xf]
        %v215 = vld [vmem:[%s194 + $0xc] sm:$0xf]
        %v216 = vld [vmem:[%s194 + $0x10] sm:$0xf]
        %v217 = vld [vmem:[%s194 + $0x14] sm:$0xf]
        %v218 = vld [vmem:[%s194 + $0x18] sm:$0xf]
        %v219 = vld [vmem:[%s194 + $0x1c] sm:$0xf]
        %v220 = vld [vmem:[%s194 + $0x20] sm:$0xf]
        %v221 = vld [vmem:[%s194 + $0x24] sm:$0xf]
        %v222 = vld [vmem:[%s194 + $0x28] sm:$0xf]
        %v223 = vld [vmem:[%s194 + $0x2c] sm:$0xf]
        %v224 = vld [vmem:[%s194 + $0x30] sm:$0xf]
        %v225 = vld [vmem:[%s194 + $0x34] sm:$0xf]
        %v226 = vld [vmem:[%s194 + $0x38] sm:$0xf]
        %v227 = vld [vmem:[%s194 + $0x3c] sm:$0xf]
        %v244 = vunpack.c.l.b16 %v212
        %v245 = vunpack.c.l.b16 %v213
        %v246 = vunpack.c.l.b16 %v214
        %v247 = vunpack.c.l.b16 %v215
        %v248 = vunpack.c.l.b16 %v216
        %v249 = vunpack.c.l.b16 %v217
        %v250 = vunpack.c.l.b16 %v218
        %v251 = vunpack.c.l.b16 %v219
        %v252 = vunpack.c.l.b16 %v220
        %v253 = vunpack.c.l.b16 %v221
        %v254 = vunpack.c.l.b16 %v222
        %v255 = vunpack.c.l.b16 %v223
        %v256 = vunpack.c.l.b16 %v224
        %v257 = vunpack.c.l.b16 %v225
        %v258 = vunpack.c.l.b16 %v226
        %v259 = vunpack.c.l.b16 %v227
        %v260 = vpack.c.b16 %v245, %v244
        %v261 = vpack.c.b16 %v247, %v246
        %v262 = vpack.c.b16 %v249, %v248
        %v263 = vpack.c.b16 %v251, %v250
        %v264 = vpack.c.b16 %v253, %v252
        %v265 = vpack.c.b16 %v255, %v254
        %v266 = vpack.c.b16 %v257, %v256
        %v267 = vpack.c.b16 %v259, %v258
        %v273 = vunpack.c.l.b16 %v206
        %v274 = vunpack.c.l.b16 %v207
        %v275 = vunpack.c.l.b16 %v208
        %v276 = vunpack.c.l.b16 %v209
        %v277 = vunpack.c.l.b16 %v210
        %v278 = vpack.c.b16 %v274, %v273
        %v279 = vpack.c.b16 %v276, %v275
        %v280 = vpack.c.b16 %v277, %v277
        %vm283 = vcmask 302080
        %v285 = vsel %vm283, %v260, 0
        %v288 = vsel %vm283, %v261, 0
        %v291 = vsel %vm283, %v262, 0
        %v294 = vsel %vm283, %v263, 0
        %v297 = vsel %vm283, %v264, 0
        %v300 = vsel %vm283, %v265, 0
        %v303 = vsel %vm283, %v266, 0
        %v306 = vsel %vm283, %v267, 0
        %vm308 = vcmask 1041408
        %vm309 = vcmask 1042432
        %v310 = vsel %vm308, 4294967295, 65535
        %v311 = vsel %vm309, %v310, 0
        %v313 = vand.u32 %v280, %v311
        %315 = vmatprep.subr.bf16.mxu0 0
        %316 = vmatpush1.bf16.msra.mxu0 0
        %317 = vmatprep.subr.bf16.mxu0 0
        %318 = vmatpush1.bf16.msra.mxu0 0
        %319 = vmatprep.subr.bf16.mxu0 0
        %320 = vmatpush1.bf16.msra.mxu0 0
        %321 = vmatprep.subr.bf16.mxu0 0
        %322 = vmatpush1.bf16.msra.mxu0 0
        %323 = vmatprep.subr.bf16.mxu0 0
        %324 = vmatpush1.bf16.msra.mxu0 0
        %325 = vmatprep.subr.bf16.mxu0 0
        %326 = vmatpush1.bf16.msra.mxu0 %v313
        %327 = vmatprep.subr.bf16.mxu0 0
        %328 = vmatpush1.bf16.msra.mxu0 %v279
        %329 = vmatprep.subr.bf16.mxu0 0
        %330 = vmatpush1.bf16.msra.mxu0 %v278
        %331 = vmatprep.subr.bf16.mxu0 0
        %332 = vmatpush2.bf16.msra.mxu0 0
        %333 = vmatprep.subr.bf16.mxu0 0
        %334 = vmatpush2.bf16.msra.mxu0 0
        %335 = vmatprep.subr.bf16.mxu0 0
        %336 = vmatpush2.bf16.msra.mxu0 0
        %337 = vmatprep.subr.bf16.mxu0 0
        %338 = vmatpush2.bf16.msra.mxu0 0
        %339 = vmatprep.subr.bf16.mxu0 0
        %340 = vmatpush2.bf16.msra.mxu0 0
        %341 = vmatprep.subr.bf16.mxu0 0
        %342 = vmatpush2.bf16.msra.mxu0 0
        %343 = vmatprep.subr.bf16.mxu0 0
        %344 = vmatpush2.bf16.msra.mxu0 0
        %345 = vmatprep.subr.bf16.mxu0 0
        %346 = vmatpush2.bf16.msra.mxu0 0
        %347 = vmatprep.mubr.bf16.mxu0 0
        %348 = vmatmul.mubr.bf16.gmra.mxu0 %v285
        %v349 = vpop.f32.mrf.mxu0
        %v350 = vadd.f32 0.0, %v349
        %v351 = vpop.f32.mrf.mxu0
        %v352 = vpop.f32.mrf.mxu0
        %v353 = vadd.f32 0.0, %v352
        %v354 = vpop.f32.mrf.mxu0
        %355 = vmatprep.mubr.bf16.mxu0 0
        %356 = vmatmul.mubr.bf16.gmra.mxu0 %v288
        %v357 = vpop.f32.mrf.mxu0
        %v358 = vadd.f32 0.0, %v357
        %v359 = vpop.f32.mrf.mxu0
        %v360 = vpop.f32.mrf.mxu0
        %v361 = vadd.f32 0.0, %v360
        %v362 = vpop.f32.mrf.mxu0
        %363 = vmatprep.mubr.bf16.mxu0 0
        %364 = vmatmul.mubr.bf16.gmra.mxu0 %v291
        %v365 = vpop.f32.mrf.mxu0
        %v366 = vadd.f32 0.0, %v365
        %v367 = vpop.f32.mrf.mxu0
        %v368 = vpop.f32.mrf.mxu0
        %v369 = vadd.f32 0.0, %v368
        %v370 = vpop.f32.mrf.mxu0
        %371 = vmatprep.mubr.bf16.mxu0 0
        %372 = vmatmul.mubr.bf16.gmra.mxu0 %v294
        %v373 = vpop.f32.mrf.mxu0
        %v374 = vadd.f32 0.0, %v373
        %v375 = vpop.f32.mrf.mxu0
        %v376 = vpop.f32.mrf.mxu0
        %v377 = vadd.f32 0.0, %v376
        %v378 = vpop.f32.mrf.mxu0
        %379 = vmatprep.mubr.bf16.mxu0 0
        %380 = vmatmul.mubr.bf16.gmra.mxu0 %v297
        %v381 = vpop.f32.mrf.mxu0
        %v382 = vadd.f32 0.0, %v381
        %v383 = vpop.f32.mrf.mxu0
        %v384 = vpop.f32.mrf.mxu0
        %v385 = vadd.f32 0.0, %v384
        %v386 = vpop.f32.mrf.mxu0
        %387 = vmatprep.mubr.bf16.mxu0 0
        %388 = vmatmul.mubr.bf16.gmra.mxu0 %v300
        %v389 = vpop.f32.mrf.mxu0
        %v390 = vadd.f32 0.0, %v389
        %v391 = vpop.f32.mrf.mxu0
        %v392 = vpop.f32.mrf.mxu0
        %v393 = vadd.f32 0.0, %v392
        %v394 = vpop.f32.mrf.mxu0
        %395 = vmatprep.mubr.bf16.mxu0 0
        %396 = vmatmul.mubr.bf16.gmra.mxu0 %v303
        %v397 = vpop.f32.mrf.mxu0
        %v398 = vadd.f32 0.0, %v397
        %v399 = vpop.f32.mrf.mxu0
        %v400 = vpop.f32.mrf.mxu0
        %v401 = vadd.f32 0.0, %v400
        %v402 = vpop.f32.mrf.mxu0
        %403 = vmatprep.mubr.bf16.mxu0 0
        %404 = vmatmul.mubr.bf16.gmra.mxu0 %v306
        %v405 = vpop.f32.mrf.mxu0
        %v406 = vadd.f32 0.0, %v405
        %v407 = vpop.f32.mrf.mxu0
        %v408 = vpop.f32.mrf.mxu0
        %v409 = vadd.f32 0.0, %v408
        %v410 = vpop.f32.mrf.mxu0
        %411 = vdwg.mxu0
        %v412 = vmax.f32 %v350, 0.0
        %v413 = vmax.f32 %v353, 0.0
        %v414 = vmax.f32 %v358, 0.0
        %v415 = vmax.f32 %v361, 0.0
        %v416 = vmax.f32 %v366, 0.0
        %v417 = vmax.f32 %v369, 0.0
        %v418 = vmax.f32 %v374, 0.0
        %v419 = vmax.f32 %v377, 0.0
        %v420 = vmax.f32 %v382, 0.0
        %v421 = vmax.f32 %v385, 0.0
        %v422 = vmax.f32 %v390, 0.0
        %v423 = vmax.f32 %v393, 0.0
        %v424 = vmax.f32 %v398, 0.0
        %v425 = vmax.f32 %v401, 0.0
        %v426 = vmax.f32 %v406, 0.0
        %v427 = vmax.f32 %v409, 0.0
        %v428 = vpack.c.bf16 %v413, %v412
        %v429 = vpack.c.bf16 %v415, %v414
        %v430 = vpack.c.bf16 %v417, %v416
        %v431 = vpack.c.bf16 %v419, %v418
        %v432 = vpack.c.bf16 %v421, %v420
        %v433 = vpack.c.bf16 %v423, %v422
        %v434 = vpack.c.bf16 %v425, %v424
        %v435 = vpack.c.bf16 %v427, %v426
        %v444 = vunpack.c.l.b16 %v428
        %v445 = vunpack.c.h.b16 %v428
        %v446 = vunpack.c.l.b16 %v429
        %v447 = vunpack.c.h.b16 %v429
        %v448 = vunpack.c.l.b16 %v430
        %v449 = vunpack.c.h.b16 %v430
        %v450 = vunpack.c.l.b16 %v431
        %v451 = vunpack.c.h.b16 %v431
        %v452 = vunpack.c.l.b16 %v432
        %v453 = vunpack.c.h.b16 %v432
        %v454 = vunpack.c.l.b16 %v433
        %v455 = vunpack.c.h.b16 %v433
        %v456 = vunpack.c.l.b16 %v434
        %v457 = vunpack.c.h.b16 %v434
        %v458 = vunpack.c.l.b16 %v435
        %v459 = vunpack.c.h.b16 %v435
        %v460 = vpack.c.b16 %v444, %v444
        %v461 = vpack.c.b16 %v445, %v445
        %v462 = vpack.c.b16 %v446, %v446
        %v463 = vpack.c.b16 %v447, %v447
        %v464 = vpack.c.b16 %v448, %v448
        %v465 = vpack.c.b16 %v449, %v449
        %v466 = vpack.c.b16 %v450, %v450
        %v467 = vpack.c.b16 %v451, %v451
        %v468 = vpack.c.b16 %v452, %v452
        %v469 = vpack.c.b16 %v453, %v453
        %v470 = vpack.c.b16 %v454, %v454
        %v471 = vpack.c.b16 %v455, %v455
        %v472 = vpack.c.b16 %v456, %v456
        %v473 = vpack.c.b16 %v457, %v457
        %v474 = vpack.c.b16 %v458, %v458
        %v475 = vpack.c.b16 %v459, %v459
        %492 = vst.msk [vmem:[#allocation2 + $0xc] sm:$0xf] %vm196, %v460
        %493 = vst.msk [vmem:[#allocation2 + $0x10] sm:$0xf] %vm196, %v461
        %494 = vst.msk [vmem:[#allocation2 + $0x14] sm:$0xf] %vm196, %v462
        %495 = vst.msk [vmem:[#allocation2 + $0x18] sm:$0xf] %vm196, %v463
        %496 = vst.msk [vmem:[#allocation2 + $0x1c] sm:$0xf] %vm196, %v464
        %497 = vst.msk [vmem:[#allocation2 + $0x20] sm:$0xf] %vm196, %v465
        %498 = vst.msk [vmem:[#allocation2 + $0x24] sm:$0xf] %vm196, %v466
        %499 = vst.msk [vmem:[#allocation2 + $0x28] sm:$0xf] %vm196, %v467
        %500 = vst.msk [vmem:[#allocation2 + $0x2c] sm:$0xf] %vm196, %v468
        %501 = vst.msk [vmem:[#allocation2 + $0x30] sm:$0xf] %vm196, %v469
        %502 = vst.msk [vmem:[#allocation2 + $0x34] sm:$0xf] %vm196, %v470
        %503 = vst.msk [vmem:[#allocation2 + $0x38] sm:$0xf] %vm196, %v471
        %504 = vst.msk [vmem:[#allocation2 + $0x3c] sm:$0xf] %vm196, %v472
        %505 = vst.msk [vmem:[#allocation2 + $0x40] sm:$0xf] %vm196, %v473
        %506 = vst.msk [vmem:[#allocation2 + $0x44] sm:$0xf] %vm196, %v474
        %507 = vst.msk [vmem:[#allocation2 + $0x48] sm:$0xf] %vm196, %v475
        %v508 = vld [vmem:[%s194 + $0x40] sm:$0xf]
        %v509 = vld [vmem:[%s194 + $0x44] sm:$0xf]
        %v510 = vld [vmem:[%s194 + $0x48] sm:$0xf]
        %v511 = vld [vmem:[%s194 + $0x4c] sm:$0xf]
        %v512 = vld [vmem:[%s194 + $0x50] sm:$0xf]
        %v513 = vld [vmem:[%s194 + $0x54] sm:$0xf]
        %v514 = vld [vmem:[%s194 + $0x58] sm:$0xf]
        %v515 = vld [vmem:[%s194 + $0x5c] sm:$0xf]
        %v516 = vld [vmem:[%s194 + $0x60] sm:$0xf]
        %v517 = vld [vmem:[%s194 + $0x64] sm:$0xf]
        %v518 = vld [vmem:[%s194 + $0x68] sm:$0xf]
        %v519 = vld [vmem:[%s194 + $0x6c] sm:$0xf]
        %v520 = vld [vmem:[%s194 + $0x70] sm:$0xf]
        %v521 = vld [vmem:[%s194 + $0x74] sm:$0xf]
        %v522 = vld [vmem:[%s194 + $0x78] sm:$0xf]
        %v523 = vld [vmem:[%s194 + $0x7c] sm:$0xf]
        %v540 = vunpack.c.l.b16 %v508
        %v541 = vunpack.c.l.b16 %v509
        %v542 = vunpack.c.l.b16 %v510
        %v543 = vunpack.c.l.b16 %v511
        %v544 = vunpack.c.l.b16 %v512
        %v545 = vunpack.c.l.b16 %v513
        %v546 = vunpack.c.l.b16 %v514
        %v547 = vunpack.c.l.b16 %v515
        %v548 = vunpack.c.l.b16 %v516
        %v549 = vunpack.c.l.b16 %v517
        %v550 = vunpack.c.l.b16 %v518
        %v551 = vunpack.c.l.b16 %v519
        %v552 = vunpack.c.l.b16 %v520
        %v553 = vunpack.c.l.b16 %v521
        %v554 = vunpack.c.l.b16 %v522
        %v555 = vunpack.c.l.b16 %v523
        %v556 = vpack.c.b16 %v541, %v540
        %v557 = vpack.c.b16 %v543, %v542
        %v558 = vpack.c.b16 %v545, %v544
        %v559 = vpack.c.b16 %v547, %v546
        %v560 = vpack.c.b16 %v549, %v548
        %v561 = vpack.c.b16 %v551, %v550
        %v562 = vpack.c.b16 %v553, %v552
        %v563 = vpack.c.b16 %v555, %v554
        %v565 = vsel %vm283, %v556, 0
        %v568 = vsel %vm283, %v557, 0
        %v571 = vsel %vm283, %v558, 0
        %v574 = vsel %vm283, %v559, 0
        %v577 = vsel %vm283, %v560, 0
        %v580 = vsel %vm283, %v561, 0
        %v583 = vsel %vm283, %v562, 0
        %v586 = vsel %vm283, %v563, 0
        %588 = vmatprep.subr.bf16.mxu0 0
        %589 = vmatpush1.bf16.msra.mxu0 0
        %590 = vmatprep.subr.bf16.mxu0 0
        %591 = vmatpush1.bf16.msra.mxu0 0
        %592 = vmatprep.subr.bf16.mxu0 0
        %593 = vmatpush1.bf16.msra.mxu0 0
        %594 = vmatprep.subr.bf16.mxu0 0
        %595 = vmatpush1.bf16.msra.mxu0 0
        %596 = vmatprep.subr.bf16.mxu0 0
        %597 = vmatpush1.bf16.msra.mxu0 0
        %598 = vmatprep.subr.bf16.mxu0 0
        %599 = vmatpush1.bf16.msra.mxu0 %v313
        %600 = vmatprep.subr.bf16.mxu0 0
        %601 = vmatpush1.bf16.msra.mxu0 %v279
        %602 = vmatprep.subr.bf16.mxu0 0
        %603 = vmatpush1.bf16.msra.mxu0 %v278
        %604 = vmatprep.subr.bf16.mxu0 0
        %605 = vmatpush2.bf16.msra.mxu0 0
        %606 = vmatprep.subr.bf16.mxu0 0
        %607 = vmatpush2.bf16.msra.mxu0 0
        %608 = vmatprep.subr.bf16.mxu0 0
        %609 = vmatpush2.bf16.msra.mxu0 0
        %610 = vmatprep.subr.bf16.mxu0 0
        %611 = vmatpush2.bf16.msra.mxu0 0
        %612 = vmatprep.subr.bf16.mxu0 0
        %613 = vmatpush2.bf16.msra.mxu0 0
        %614 = vmatprep.subr.bf16.mxu0 0
        %615 = vmatpush2.bf16.msra.mxu0 0
        %616 = vmatprep.subr.bf16.mxu0 0
        %617 = vmatpush2.bf16.msra.mxu0 0
        %618 = vmatprep.subr.bf16.mxu0 0
        %619 = vmatpush2.bf16.msra.mxu0 0
        %620 = vmatprep.mubr.bf16.mxu0 0
        %621 = vmatmul.mubr.bf16.gmra.mxu0 %v565
        %v622 = vpop.f32.mrf.mxu0
        %v623 = vadd.f32 0.0, %v622
        %v624 = vpop.f32.mrf.mxu0
        %v625 = vpop.f32.mrf.mxu0
        %v626 = vadd.f32 0.0, %v625
        %v627 = vpop.f32.mrf.mxu0
        %628 = vmatprep.mubr.bf16.mxu0 0
        %629 = vmatmul.mubr.bf16.gmra.mxu0 %v568
        %v630 = vpop.f32.mrf.mxu0
        %v631 = vadd.f32 0.0, %v630
        %v632 = vpop.f32.mrf.mxu0
        %v633 = vpop.f32.mrf.mxu0
        %v634 = vadd.f32 0.0, %v633
        %v635 = vpop.f32.mrf.mxu0
        %636 = vmatprep.mubr.bf16.mxu0 0
        %637 = vmatmul.mubr.bf16.gmra.mxu0 %v571
        %v638 = vpop.f32.mrf.mxu0
        %v639 = vadd.f32 0.0, %v638
        %v640 = vpop.f32.mrf.mxu0
        %v641 = vpop.f32.mrf.mxu0
        %v642 = vadd.f32 0.0, %v641
        %v643 = vpop.f32.mrf.mxu0
        %644 = vmatprep.mubr.bf16.mxu0 0
        %645 = vmatmul.mubr.bf16.gmra.mxu0 %v574
        %v646 = vpop.f32.mrf.mxu0
        %v647 = vadd.f32 0.0, %v646
        %v648 = vpop.f32.mrf.mxu0
        %v649 = vpop.f32.mrf.mxu0
        %v650 = vadd.f32 0.0, %v649
        %v651 = vpop.f32.mrf.mxu0
        %652 = vmatprep.mubr.bf16.mxu0 0
        %653 = vmatmul.mubr.bf16.gmra.mxu0 %v577
        %v654 = vpop.f32.mrf.mxu0
        %v655 = vadd.f32 0.0, %v654
        %v656 = vpop.f32.mrf.mxu0
        %v657 = vpop.f32.mrf.mxu0
        %v658 = vadd.f32 0.0, %v657
        %v659 = vpop.f32.mrf.mxu0
        %660 = vmatprep.mubr.bf16.mxu0 0
        %661 = vmatmul.mubr.bf16.gmra.mxu0 %v580
        %v662 = vpop.f32.mrf.mxu0
        %v663 = vadd.f32 0.0, %v662
        %v664 = vpop.f32.mrf.mxu0
        %v665 = vpop.f32.mrf.mxu0
        %v666 = vadd.f32 0.0, %v665
        %v667 = vpop.f32.mrf.mxu0
        %668 = vmatprep.mubr.bf16.mxu0 0
        %669 = vmatmul.mubr.bf16.gmra.mxu0 %v583
        %v670 = vpop.f32.mrf.mxu0
        %v671 = vadd.f32 0.0, %v670
        %v672 = vpop.f32.mrf.mxu0
        %v673 = vpop.f32.mrf.mxu0
        %v674 = vadd.f32 0.0, %v673
        %v675 = vpop.f32.mrf.mxu0
        %676 = vmatprep.mubr.bf16.mxu0 0
        %677 = vmatmul.mubr.bf16.gmra.mxu0 %v586
        %v678 = vpop.f32.mrf.mxu0
        %v679 = vadd.f32 0.0, %v678
        %v680 = vpop.f32.mrf.mxu0
        %v681 = vpop.f32.mrf.mxu0
        %v682 = vadd.f32 0.0, %v681
        %v683 = vpop.f32.mrf.mxu0
        %684 = vdwg.mxu0
        %v685 = vmax.f32 %v623, 0.0
        %v686 = vmax.f32 %v626, 0.0
        %v687 = vmax.f32 %v631, 0.0
        %v688 = vmax.f32 %v634, 0.0
        %v689 = vmax.f32 %v639, 0.0
        %v690 = vmax.f32 %v642, 0.0
        %v691 = vmax.f32 %v647, 0.0
        %v692 = vmax.f32 %v650, 0.0
        %v693 = vmax.f32 %v655, 0.0
        %v694 = vmax.f32 %v658, 0.0
        %v695 = vmax.f32 %v663, 0.0
        %v696 = vmax.f32 %v666, 0.0
        %v697 = vmax.f32 %v671, 0.0
        %v698 = vmax.f32 %v674, 0.0
        %v699 = vmax.f32 %v679, 0.0
        %v700 = vmax.f32 %v682, 0.0
        %v701 = vpack.c.bf16 %v686, %v685
        %v702 = vpack.c.bf16 %v688, %v687
        %v703 = vpack.c.bf16 %v690, %v689
        %v704 = vpack.c.bf16 %v692, %v691
        %v705 = vpack.c.bf16 %v694, %v693
        %v706 = vpack.c.bf16 %v696, %v695
        %v707 = vpack.c.bf16 %v698, %v697
        %v708 = vpack.c.bf16 %v700, %v699
        %v717 = vunpack.c.l.b16 %v701
        %v718 = vunpack.c.h.b16 %v701
        %v719 = vunpack.c.l.b16 %v702
        %v720 = vunpack.c.h.b16 %v702
        %v721 = vunpack.c.l.b16 %v703
        %v722 = vunpack.c.h.b16 %v703
        %v723 = vunpack.c.l.b16 %v704
        %v724 = vunpack.c.h.b16 %v704
        %v725 = vunpack.c.l.b16 %v705
        %v726 = vunpack.c.h.b16 %v705
        %v727 = vunpack.c.l.b16 %v706
        %v728 = vunpack.c.h.b16 %v706
        %v729 = vunpack.c.l.b16 %v707
        %v730 = vunpack.c.h.b16 %v707
        %v731 = vunpack.c.l.b16 %v708
        %v732 = vunpack.c.h.b16 %v708
        %v733 = vpack.c.b16 %v717, %v717
        %v734 = vpack.c.b16 %v718, %v718
        %v735 = vpack.c.b16 %v719, %v719
        %v736 = vpack.c.b16 %v720, %v720
        %v737 = vpack.c.b16 %v721, %v721
        %v738 = vpack.c.b16 %v722, %v722
        %v739 = vpack.c.b16 %v723, %v723
        %v740 = vpack.c.b16 %v724, %v724
        %v741 = vpack.c.b16 %v725, %v725
        %v742 = vpack.c.b16 %v726, %v726
        %v743 = vpack.c.b16 %v727, %v727
        %v744 = vpack.c.b16 %v728, %v728
        %v745 = vpack.c.b16 %v729, %v729
        %v746 = vpack.c.b16 %v730, %v730
        %v747 = vpack.c.b16 %v731, %v731
        %v748 = vpack.c.b16 %v732, %v732
        %765 = vst.msk [vmem:[#allocation2 + $0x4c] sm:$0xf] %vm196, %v733
        %766 = vst.msk [vmem:[#allocation2 + $0x50] sm:$0xf] %vm196, %v734
        %767 = vst.msk [vmem:[#allocation2 + $0x54] sm:$0xf] %vm196, %v735
        %768 = vst.msk [vmem:[#allocation2 + $0x58] sm:$0xf] %vm196, %v736
        %769 = vst.msk [vmem:[#allocation2 + $0x5c] sm:$0xf] %vm196, %v737
        %770 = vst.msk [vmem:[#allocation2 + $0x60] sm:$0xf] %vm196, %v738
        %771 = vst.msk [vmem:[#allocation2 + $0x64] sm:$0xf] %vm196, %v739
        %772 = vst.msk [vmem:[#allocation2 + $0x68] sm:$0xf] %vm196, %v740
        %773 = vst.msk [vmem:[#allocation2 + $0x6c] sm:$0xf] %vm196, %v741
        %774 = vst.msk [vmem:[#allocation2 + $0x70] sm:$0xf] %vm196, %v742
        %775 = vst.msk [vmem:[#allocation2 + $0x74] sm:$0xf] %vm196, %v743
        %776 = vst.msk [vmem:[#allocation2 + $0x78] sm:$0xf] %vm196, %v744
        %777 = vst.msk [vmem:[#allocation2 + $0x7c] sm:$0xf] %vm196, %v745
        %778 = vst.msk [vmem:[#allocation2 + $0x80] sm:$0xf] %vm196, %v746
        %779 = vst.msk [vmem:[#allocation2 + $0x84] sm:$0xf] %vm196, %v747
        %780 = vst.msk [vmem:[#allocation2 + $0x88] sm:$0xf] %vm196, %v748
        %v781 = vld [vmem:[%s194 + $0x80] sm:$0xf]
        %v782 = vld [vmem:[%s194 + $0x84] sm:$0xf]
        %v783 = vld [vmem:[%s194 + $0x88] sm:$0xf]
        %v784 = vld [vmem:[%s194 + $0x8c] sm:$0xf]
        %v785 = vld [vmem:[%s194 + $0x90] sm:$0xf]
        %v786 = vld [vmem:[%s194 + $0x94] sm:$0xf]
        %v787 = vld [vmem:[%s194 + $0x98] sm:$0xf]
        %v788 = vld [vmem:[%s194 + $0x9c] sm:$0xf]
        %v789 = vld [vmem:[%s194 + $0xa0] sm:$0x3]
        %v799 = vunpack.c.l.b16 %v781
        %v800 = vunpack.c.l.b16 %v782
        %v801 = vunpack.c.l.b16 %v783
        %v802 = vunpack.c.l.b16 %v784
        %v803 = vunpack.c.l.b16 %v785
        %v804 = vunpack.c.l.b16 %v786
        %v805 = vunpack.c.l.b16 %v787
        %v806 = vunpack.c.l.b16 %v788
        %v807 = vunpack.c.l.b16 %v789
        %v808 = vpack.c.b16 %v800, %v799
        %v809 = vpack.c.b16 %v802, %v801
        %v810 = vpack.c.b16 %v804, %v803
        %v811 = vpack.c.b16 %v806, %v805
        %v812 = vpack.c.b16 %v807, %v807
        %v814 = vsel %vm283, %v808, 0
        %v817 = vsel %vm283, %v809, 0
        %v820 = vsel %vm283, %v810, 0
        %v823 = vsel %vm283, %v811, 0
        %v826 = vsel %vm283, %v812, 0
        %828 = vmatprep.subr.bf16.mxu0 0
        %829 = vmatpush1.bf16.msra.mxu0 0
        %830 = vmatprep.subr.bf16.mxu0 0
        %831 = vmatpush1.bf16.msra.mxu0 0
        %832 = vmatprep.subr.bf16.mxu0 0
        %833 = vmatpush1.bf16.msra.mxu0 0
        %834 = vmatprep.subr.bf16.mxu0 0
        %835 = vmatpush1.bf16.msra.mxu0 0
        %836 = vmatprep.subr.bf16.mxu0 0
        %837 = vmatpush1.bf16.msra.mxu0 0
        %838 = vmatprep.subr.bf16.mxu0 0
        %839 = vmatpush1.bf16.msra.mxu0 %v313
        %840 = vmatprep.subr.bf16.mxu0 0
        %841 = vmatpush1.bf16.msra.mxu0 %v279
        %842 = vmatprep.subr.bf16.mxu0 0
        %843 = vmatpush1.bf16.msra.mxu0 %v278
        %844 = vmatprep.subr.bf16.mxu0 0
        %845 = vmatpush2.bf16.msra.mxu0 0
        %846 = vmatprep.subr.bf16.mxu0 0
        %847 = vmatpush2.bf16.msra.mxu0 0
        %848 = vmatprep.subr.bf16.mxu0 0
        %849 = vmatpush2.bf16.msra.mxu0 0
        %850 = vmatprep.subr.bf16.mxu0 0
        %851 = vmatpush2.bf16.msra.mxu0 0
        %852 = vmatprep.subr.bf16.mxu0 0
        %853 = vmatpush2.bf16.msra.mxu0 0
        %854 = vmatprep.subr.bf16.mxu0 0
        %855 = vmatpush2.bf16.msra.mxu0 0
        %856 = vmatprep.subr.bf16.mxu0 0
        %857 = vmatpush2.bf16.msra.mxu0 0
        %858 = vmatprep.subr.bf16.mxu0 0
        %859 = vmatpush2.bf16.msra.mxu0 0
        %860 = vmatprep.mubr.bf16.mxu0 0
        %861 = vmatmul.mubr.bf16.gmra.mxu0 %v814
        %v862 = vpop.f32.mrf.mxu0
        %v863 = vadd.f32 0.0, %v862
        %v864 = vpop.f32.mrf.mxu0
        %v865 = vpop.f32.mrf.mxu0
        %v866 = vadd.f32 0.0, %v865
        %v867 = vpop.f32.mrf.mxu0
        %868 = vmatprep.mubr.bf16.mxu0 0
        %869 = vmatmul.mubr.bf16.gmra.mxu0 %v817
        %v870 = vpop.f32.mrf.mxu0
        %v871 = vadd.f32 0.0, %v870
        %v872 = vpop.f32.mrf.mxu0
        %v873 = vpop.f32.mrf.mxu0
        %v874 = vadd.f32 0.0, %v873
        %v875 = vpop.f32.mrf.mxu0
        %876 = vmatprep.mubr.bf16.mxu0 0
        %877 = vmatmul.mubr.bf16.gmra.mxu0 %v820
        %v878 = vpop.f32.mrf.mxu0
        %v879 = vadd.f32 0.0, %v878
        %v880 = vpop.f32.mrf.mxu0
        %v881 = vpop.f32.mrf.mxu0
        %v882 = vadd.f32 0.0, %v881
        %v883 = vpop.f32.mrf.mxu0
        %884 = vmatprep.mubr.bf16.mxu0 0
        %885 = vmatmul.mubr.bf16.gmra.mxu0 %v823
        %v886 = vpop.f32.mrf.mxu0
        %v887 = vadd.f32 0.0, %v886
        %v888 = vpop.f32.mrf.mxu0
        %v889 = vpop.f32.mrf.mxu0
        %v890 = vadd.f32 0.0, %v889
        %v891 = vpop.f32.mrf.mxu0
        %892 = vmatprep.mubr.bf16.mxu0 0
        %893 = vmatmul.mubr.bf16.gmra.mxu0 %v826
        %v894 = vpop.f32.mrf.mxu0
        %v895 = vadd.f32 0.0, %v894
        %v896 = vpop.f32.mrf.mxu0
        %v897 = vpop.f32.mrf.mxu0
        %v898 = vpop.f32.mrf.mxu0
        %899 = vdwg.mxu0
        %v900 = vmax.f32 %v863, 0.0
        %v901 = vmax.f32 %v866, 0.0
        %v902 = vmax.f32 %v871, 0.0
        %v903 = vmax.f32 %v874, 0.0
        %v904 = vmax.f32 %v879, 0.0
        %v905 = vmax.f32 %v882, 0.0
        %v906 = vmax.f32 %v887, 0.0
        %v907 = vmax.f32 %v890, 0.0
        %v908 = vmax.f32 %v895, 0.0
        %v909 = vpack.c.bf16 %v901, %v900
        %v910 = vpack.c.bf16 %v903, %v902
        %v911 = vpack.c.bf16 %v905, %v904
        %v912 = vpack.c.bf16 %v907, %v906
        %v913 = vpack.c.bf16 %v908, %v908
        %v919 = vunpack.c.l.b16 %v909
        %v920 = vunpack.c.h.b16 %v909
        %v921 = vunpack.c.l.b16 %v910
        %v922 = vunpack.c.h.b16 %v910
        %v923 = vunpack.c.l.b16 %v911
        %v924 = vunpack.c.h.b16 %v911
        %v925 = vunpack.c.l.b16 %v912
        %v926 = vunpack.c.h.b16 %v912
        %v927 = vunpack.c.l.b16 %v913
        %v928 = vpack.c.b16 %v919, %v919
        %v929 = vpack.c.b16 %v920, %v920
        %v930 = vpack.c.b16 %v921, %v921
        %v931 = vpack.c.b16 %v922, %v922
        %v932 = vpack.c.b16 %v923, %v923
        %v933 = vpack.c.b16 %v924, %v924
        %v934 = vpack.c.b16 %v925, %v925
        %v935 = vpack.c.b16 %v926, %v926
        %v936 = vpack.c.b16 %v927, %v927
        %946 = vst.msk [vmem:[#allocation2 + $0x8c] sm:$0xf] %vm196, %v928
        %947 = vst.msk [vmem:[#allocation2 + $0x90] sm:$0xf] %vm196, %v929
        %948 = vst.msk [vmem:[#allocation2 + $0x94] sm:$0xf] %vm196, %v930
        %949 = vst.msk [vmem:[#allocation2 + $0x98] sm:$0xf] %vm196, %v931
        %950 = vst.msk [vmem:[#allocation2 + $0x9c] sm:$0xf] %vm196, %v932
        %951 = vst.msk [vmem:[#allocation2 + $0xa0] sm:$0xf] %vm196, %v933
        %952 = vst.msk [vmem:[#allocation2 + $0xa4] sm:$0xf] %vm196, %v934
        %953 = vst.msk [vmem:[#allocation2 + $0xa8] sm:$0xf] %vm196, %v935
        %954 = vst.msk [vmem:[#allocation2 + $0xac] sm:$0x3] %vm204, %v936
        %v955 = vld [vmem:[#allocation2] sm:$0xc]
        %v956 = vld [vmem:[#allocation2 + $0x4] sm:$0xf]
        %v957 = vld [vmem:[#allocation2 + $0x8] sm:$0xf]
        %v958 = vld [vmem:[#allocation2 + $0xc] sm:$0xf]
        %v959 = vld [vmem:[#allocation2 + $0x10] sm:$0xf]
        %v960 = vld [vmem:[#allocation2 + $0x14] sm:$0xf]
        %v961 = vld [vmem:[#allocation2 + $0x18] sm:$0xf]
        %v962 = vld [vmem:[#allocation2 + $0x1c] sm:$0xf]
        %v963 = vld [vmem:[#allocation2 + $0x20] sm:$0xf]
        %v964 = vld [vmem:[#allocation2 + $0x24] sm:$0xf]
        %v965 = vld [vmem:[#allocation2 + $0x28] sm:$0xf]
        %v966 = vld [vmem:[#allocation2 + $0x2c] sm:$0xf]
        %v967 = vld [vmem:[#allocation2 + $0x30] sm:$0xf]
        %v968 = vld [vmem:[#allocation2 + $0x34] sm:$0xf]
        %v969 = vld [vmem:[#allocation2 + $0x38] sm:$0xf]
        %v970 = vld [vmem:[#allocation2 + $0x3c] sm:$0xf]
        %v971 = vld [vmem:[#allocation2 + $0x40] sm:$0x7]
        %v972 = vld [vmem:[#allocation2] sm:$0x8]
        %v973 = vld [vmem:[#allocation2 + $0x40] sm:$0xf]
        %v991 = vunpack.c.l.b16 %v955
        %v992 = vunpack.c.l.b16 %v956
        %v993 = vunpack.c.l.b16 %v957
        %v994 = vunpack.c.l.b16 %v958
        %v995 = vunpack.c.l.b16 %v959
        %v996 = vunpack.c.l.b16 %v960
        %v997 = vunpack.c.l.b16 %v961
        %v998 = vunpack.c.l.b16 %v962
        %v999 = vunpack.c.l.b16 %v963
        %v1000 = vunpack.c.l.b16 %v964
        %v1001 = vunpack.c.l.b16 %v965
        %v1002 = vunpack.c.l.b16 %v966
        %v1003 = vunpack.c.l.b16 %v967
        %v1004 = vunpack.c.l.b16 %v968
        %v1005 = vunpack.c.l.b16 %v969
        %v1006 = vunpack.c.l.b16 %v970
        %v1007 = vunpack.c.l.b16 %v971
        %v1008 = vpack.c.b16 %v992, %v991
        %v1009 = vpack.c.b16 %v994, %v993
        %v1010 = vpack.c.b16 %v996, %v995
        %v1011 = vpack.c.b16 %v998, %v997
        %v1012 = vpack.c.b16 %v1000, %v999
        %v1013 = vpack.c.b16 %v1002, %v1001
        %v1014 = vpack.c.b16 %v1004, %v1003
        %v1015 = vpack.c.b16 %v1006, %v1005
        %v1016 = vpack.c.b16 %v1007, %v1007
        %v1018 = vunpack.c.l.b16 %v972
        %v1019 = vpack.c.b16 %v992, %v1018
        %vm1020 = vsmask.f32 7424
        %v1022 = vshrl.u32 %v1019, 16
        %v1024 = vshll.u32 %v1019, 16
        %v1026 = vrot.slane %v1024, 1
        %v1027 = vor.u32 %v1022, %v1026
        %v1029 = vshll.u32 %v1009, 16
        %v1031 = vrot.slane %v1029, 1
        %v1032 = vsel %vm1020, %v1027, %v1031
        %v1033 = vshrl.u32 %v1009, 16
        %v1035 = vor.u32 %v1033, %v1031
        %v1037 = vshll.u32 %v1010, 16
        %v1039 = vrot.slane %v1037, 1
        %v1040 = vsel %vm1020, %v1035, %v1039
        %v1041 = vshrl.u32 %v1010, 16
        %v1043 = vor.u32 %v1041, %v1039
        %v1045 = vshll.u32 %v1011, 16
        %v1047 = vrot.slane %v1045, 1
        %v1048 = vsel %vm1020, %v1043, %v1047
        %v1049 = vshrl.u32 %v1011, 16
        %v1051 = vor.u32 %v1049, %v1047
        %v1053 = vshll.u32 %v1012, 16
        %v1055 = vrot.slane %v1053, 1
        %v1056 = vsel %vm1020, %v1051, %v1055
        %v1057 = vshrl.u32 %v1012, 16
        %v1059 = vor.u32 %v1057, %v1055
        %v1061 = vshll.u32 %v1013, 16
        %v1063 = vrot.slane %v1061, 1
        %v1064 = vsel %vm1020, %v1059, %v1063
        %v1065 = vshrl.u32 %v1013, 16
        %v1067 = vor.u32 %v1065, %v1063
        %v1069 = vshll.u32 %v1014, 16
        %v1071 = vrot.slane %v1069, 1
        %v1072 = vsel %vm1020, %v1067, %v1071
        %v1073 = vshrl.u32 %v1014, 16
        %v1075 = vor.u32 %v1073, %v1071
        %v1077 = vshll.u32 %v1015, 16
        %v1079 = vrot.slane %v1077, 1
        %v1080 = vsel %vm1020, %v1075, %v1079
        %v1081 = vshrl.u32 %v1015, 16
        %v1083 = vor.u32 %v1081, %v1079
        %v1085 = vshll.u32 %v1016, 16
        %v1087 = vrot.slane %v1085, 1
        %v1088 = vsel %vm1020, %v1083, %v1087
        %v1089 = vshrl.u32 %v1016, 16
        %v1091 = vor.u32 %v1089, %v1087
        %1092 = vrot.lane.b32.xlu0 %v1032, 32
        %v1093 = vpop.permute.xlu0 %1092
        %1094 = vrot.lane.b32.xlu0 %v1040, 32
        %v1095 = vpop.permute.xlu0 %1094
        %1096 = vrot.lane.b32.xlu0 %v1048, 32
        %v1097 = vpop.permute.xlu0 %1096
        %1098 = vrot.lane.b32.xlu0 %v1056, 32
        %v1099 = vpop.permute.xlu0 %1098
        %1100 = vrot.lane.b32.xlu0 %v1064, 32
        %v1101 = vpop.permute.xlu0 %1100
        %1102 = vrot.lane.b32.xlu0 %v1072, 32
        %v1103 = vpop.permute.xlu0 %1102
        %1104 = vrot.lane.b32.xlu0 %v1080, 32
        %v1105 = vpop.permute.xlu0 %1104
        %1106 = vrot.lane.b32.xlu0 %v1088, 32
        %v1107 = vpop.permute.xlu0 %1106
        %1108 = vrot.lane.b32.xlu0 %v1091, 32
        %v1109 = vpop.permute.xlu0 %1108
        %v1111 = vunpack.c.l.b16 %v973
        %v1112 = vpack.c.b16 %v1111, %v1111
        %vm1113 = vcmask 1046528
        %v1114 = vrot.slane %v1019, 1
        %v1115 = vrot.slane %v1009, 1
        %v1116 = vsel %vm1113, %v1114, %v1115
        %v1117 = vrot.slane %v1010, 1
        %v1118 = vsel %vm1113, %v1115, %v1117
        %v1119 = vrot.slane %v1011, 1
        %v1120 = vsel %vm1113, %v1117, %v1119
        %v1121 = vrot.slane %v1012, 1
        %v1122 = vsel %vm1113, %v1119, %v1121
        %v1123 = vrot.slane %v1013, 1
        %v1124 = vsel %vm1113, %v1121, %v1123
        %v1125 = vrot.slane %v1014, 1
        %v1126 = vsel %vm1113, %v1123, %v1125
        %v1127 = vrot.slane %v1015, 1
        %v1128 = vsel %vm1113, %v1125, %v1127
        %v1129 = vrot.slane %v1112, 1
        %v1130 = vsel %vm1113, %v1127, %v1129
        %1131 = vrot.lane.b32.xlu0 %v1116, 64
        %v1132 = vpop.permute.xlu0 %1131
        %1133 = vrot.lane.b32.xlu0 %v1118, 64
        %v1134 = vpop.permute.xlu0 %1133
        %1135 = vrot.lane.b32.xlu0 %v1120, 64
        %v1136 = vpop.permute.xlu0 %1135
        %1137 = vrot.lane.b32.xlu0 %v1122, 64
        %v1138 = vpop.permute.xlu0 %1137
        %1139 = vrot.lane.b32.xlu0 %v1124, 64
        %v1140 = vpop.permute.xlu0 %1139
        %1141 = vrot.lane.b32.xlu0 %v1126, 64
        %v1142 = vpop.permute.xlu0 %1141
        %1143 = vrot.lane.b32.xlu0 %v1128, 64
        %v1144 = vpop.permute.xlu0 %1143
        %1145 = vrot.lane.b32.xlu0 %v1130, 64
        %v1146 = vpop.permute.xlu0 %1145
        %1147 = vrot.lane.b32.xlu0 %v1129, 64
        %v1148 = vpop.permute.xlu0 %1147
        %vm1149 = vcmask 261120
        %v1152 = vsel %vm1149, %v1008, %v1093
        %v1154 = vsel %vm1149, %v1009, %v1095
        %v1156 = vsel %vm1149, %v1010, %v1097
        %v1158 = vsel %vm1149, %v1011, %v1099
        %v1160 = vsel %vm1149, %v1012, %v1101
        %v1162 = vsel %vm1149, %v1013, %v1103
        %v1164 = vsel %vm1149, %v1014, %v1105
        %v1166 = vsel %vm1149, %v1015, %v1107
        %v1168 = vsel %vm1149, %v1016, %v1109
        %vm1169 = vcmask 523264
        %v1171 = vsel %vm1169, %v1152, %v1132
        %v1173 = vsel %vm1169, %v1154, %v1134
        %v1175 = vsel %vm1169, %v1156, %v1136
        %v1177 = vsel %vm1169, %v1158, %v1138
        %v1179 = vsel %vm1169, %v1160, %v1140
        %v1181 = vsel %vm1169, %v1162, %v1142
        %v1183 = vsel %vm1169, %v1164, %v1144
        %v1185 = vsel %vm1169, %v1166, %v1146
        %v1187 = vsel %vm1169, %v1168, %v1148
        %v1188 = vld [vmem:[%s2] sm:$0xf]
        %v1189 = vld [vmem:[%s2 + $0x4] sm:$0xf]
        %v1190 = vld [vmem:[%s2 + $0x8] sm:$0xf]
        %v1191 = vld [vmem:[%s2 + $0xc] sm:$0xf]
        %v1192 = vld [vmem:[%s2 + $0x10] sm:$0xf]
        %v1193 = vld [vmem:[%s2 + $0x14] sm:$0xf]
        %v1194 = vld [vmem:[%s2 + $0x18] sm:$0xf]
        %v1195 = vld [vmem:[%s2 + $0x1c] sm:$0xf]
        %v1196 = vld [vmem:[%s2 + $0x20] sm:$0xf]
        %v1197 = vld [vmem:[%s2 + $0x24] sm:$0xf]
        %v1198 = vld [vmem:[%s2 + $0x28] sm:$0xf]
        %v1199 = vld [vmem:[%s2 + $0x2c] sm:$0xf]
        %v1200 = vld [vmem:[#allocation2 + $0x8] sm:$0x8]
        %v1201 = vld [vmem:[#allocation2 + $0x44] sm:$0xf]
        %v1202 = vld [vmem:[#allocation2 + $0x48] sm:$0xf]
        %v1203 = vld [vmem:[#allocation2 + $0x4c] sm:$0x1]
        %v1207 = vunpack.c.l.b16 %v1200
        %v1208 = vunpack.c.l.b16 %v1201
        %v1209 = vunpack.c.l.b16 %v1202
        %v1210 = vpack.c.b16 %v994, %v1207
        %v1211 = vpack.c.b16 %v1208, %v1111
        %v1212 = vpack.c.b16 %v1209, %v1209
        %v1213 = vpack.c.b16 %v995, %v994
        %v1214 = vpack.c.b16 %v997, %v996
        %v1215 = vpack.c.b16 %v999, %v998
        %v1216 = vpack.c.b16 %v1001, %v1000
        %v1217 = vpack.c.b16 %v1003, %v1002
        %v1218 = vpack.c.b16 %v1005, %v1004
        %v1219 = vpack.c.b16 %v1111, %v1006
        %v1220 = vpack.c.b16 %v1209, %v1208
        %vm1221 = vsmask.f32 3328
        %v1223 = vshrl.u32 %v1213, 16
        %v1225 = vrot.slane %v1223, 4
        %v1226 = vshll.u32 %v1213, 16
        %v1228 = vrot.slane %v1226, 5
        %v1229 = vor.u32 %v1225, %v1228
        %v1231 = vshrl.u32 %v1214, 16
        %v1233 = vrot.slane %v1231, 4
        %v1234 = vshll.u32 %v1214, 16
        %v1236 = vrot.slane %v1234, 5
        %v1237 = vor.u32 %v1233, %v1236
        %v1238 = vsel %vm1221, %v1229, %v1237
        %v1240 = vshrl.u32 %v1215, 16
        %v1242 = vrot.slane %v1240, 4
        %v1243 = vshll.u32 %v1215, 16
        %v1245 = vrot.slane %v1243, 5
        %v1246 = vor.u32 %v1242, %v1245
        %v1247 = vsel %vm1221, %v1237, %v1246
        %v1249 = vshrl.u32 %v1216, 16
        %v1251 = vrot.slane %v1249, 4
        %v1252 = vshll.u32 %v1216, 16
        %v1254 = vrot.slane %v1252, 5
        %v1255 = vor.u32 %v1251, %v1254
        %v1256 = vsel %vm1221, %v1246, %v1255
        %v1258 = vshrl.u32 %v1217, 16
        %v1260 = vrot.slane %v1258, 4
        %v1261 = vshll.u32 %v1217, 16
        %v1263 = vrot.slane %v1261, 5
        %v1264 = vor.u32 %v1260, %v1263
        %v1265 = vsel %vm1221, %v1255, %v1264
        %v1267 = vshrl.u32 %v1218, 16
        %v1269 = vrot.slane %v1267, 4
        %v1270 = vshll.u32 %v1218, 16
        %v1272 = vrot.slane %v1270, 5
        %v1273 = vor.u32 %v1269, %v1272
        %v1274 = vsel %vm1221, %v1264, %v1273
        %v1276 = vshrl.u32 %v1219, 16
        %v1278 = vrot.slane %v1276, 4
        %v1279 = vshll.u32 %v1219, 16
        %v1281 = vrot.slane %v1279, 5
        %v1282 = vor.u32 %v1278, %v1281
        %v1283 = vsel %vm1221, %v1273, %v1282
        %v1285 = vshrl.u32 %v1220, 16
        %v1287 = vrot.slane %v1285, 4
        %v1288 = vshll.u32 %v1220, 16
        %v1290 = vrot.slane %v1288, 5
        %v1291 = vor.u32 %v1287, %v1290
        %v1292 = vsel %vm1221, %v1282, %v1291
        %1293 = vrot.lane.b32.xlu0 %v1229, 32
        %v1294 = vpop.permute.xlu0 %1293
        %1295 = vrot.lane.b32.xlu0 %v1238, 32
        %v1296 = vpop.permute.xlu0 %1295
        %1297 = vrot.lane.b32.xlu0 %v1247, 32
        %v1298 = vpop.permute.xlu0 %1297
        %1299 = vrot.lane.b32.xlu0 %v1256, 32
        %v1300 = vpop.permute.xlu0 %1299
        %1301 = vrot.lane.b32.xlu0 %v1265, 32
        %v1302 = vpop.permute.xlu0 %1301
        %1303 = vrot.lane.b32.xlu0 %v1274, 32
        %v1304 = vpop.permute.xlu0 %1303
        %1305 = vrot.lane.b32.xlu0 %v1283, 32
        %v1306 = vpop.permute.xlu0 %1305
        %1307 = vrot.lane.b32.xlu0 %v1292, 32
        %v1308 = vpop.permute.xlu0 %1307
        %1309 = vrot.lane.b32.xlu0 %v1291, 32
        %v1310 = vpop.permute.xlu0 %1309
        %v1312 = vunpack.c.l.b16 %v1203
        %v1313 = vpack.c.b16 %v1312, %v1312
        %vm1314 = vcmask 1042432
        %v1315 = vrot.slane %v1213, 5
        %v1316 = vrot.slane %v1214, 5
        %v1317 = vsel %vm1314, %v1315, %v1316
        %v1318 = vrot.slane %v1215, 5
        %v1319 = vsel %vm1314, %v1316, %v1318
        %v1320 = vrot.slane %v1216, 5
        %v1321 = vsel %vm1314, %v1318, %v1320
        %v1322 = vrot.slane %v1217, 5
        %v1323 = vsel %vm1314, %v1320, %v1322
        %v1324 = vrot.slane %v1218, 5
        %v1325 = vsel %vm1314, %v1322, %v1324
        %v1326 = vrot.slane %v1219, 5
        %v1327 = vsel %vm1314, %v1324, %v1326
        %v1328 = vrot.slane %v1220, 5
        %v1329 = vsel %vm1314, %v1326, %v1328
        %v1330 = vrot.slane %v1313, 5
        %v1331 = vsel %vm1314, %v1328, %v1330
        %1332 = vrot.lane.b32.xlu0 %v1315, 64
        %v1333 = vpop.permute.xlu0 %1332
        %1334 = vrot.lane.b32.xlu0 %v1317, 64
        %v1335 = vpop.permute.xlu0 %1334
        %1336 = vrot.lane.b32.xlu0 %v1319, 64
        %v1337 = vpop.permute.xlu0 %1336
        %1338 = vrot.lane.b32.xlu0 %v1321, 64
        %v1339 = vpop.permute.xlu0 %1338
        %1340 = vrot.lane.b32.xlu0 %v1323, 64
        %v1341 = vpop.permute.xlu0 %1340
        %1342 = vrot.lane.b32.xlu0 %v1325, 64
        %v1343 = vpop.permute.xlu0 %1342
        %1344 = vrot.lane.b32.xlu0 %v1327, 64
        %v1345 = vpop.permute.xlu0 %1344
        %1346 = vrot.lane.b32.xlu0 %v1329, 64
        %v1347 = vpop.permute.xlu0 %1346
        %1348 = vrot.lane.b32.xlu0 %v1331, 64
        %v1349 = vpop.permute.xlu0 %1348
        %v1352 = vsel %vm1149, %v1210, %v1294
        %v1354 = vsel %vm1149, %v1010, %v1296
        %v1356 = vsel %vm1149, %v1011, %v1298
        %v1358 = vsel %vm1149, %v1012, %v1300
        %v1360 = vsel %vm1149, %v1013, %v1302
        %v1362 = vsel %vm1149, %v1014, %v1304
        %v1364 = vsel %vm1149, %v1015, %v1306
        %v1367 = vsel %vm1149, %v1211, %v1308
        %v1370 = vsel %vm1149, %v1212, %v1310
        %v1372 = vsel %vm1169, %v1352, %v1333
        %v1374 = vsel %vm1169, %v1354, %v1335
        %v1376 = vsel %vm1169, %v1356, %v1337
        %v1378 = vsel %vm1169, %v1358, %v1339
        %v1380 = vsel %vm1169, %v1360, %v1341
        %v1382 = vsel %vm1169, %v1362, %v1343
        %v1384 = vsel %vm1169, %v1364, %v1345
        %v1386 = vsel %vm1169, %v1367, %v1347
        %v1388 = vsel %vm1169, %v1370, %v1349
        %s1389 = scalar_lea.vmem %s2, 48
        %v1390 = vld [vmem:[%s1389] sm:$0xf]
        %v1391 = vld [vmem:[%s1389 + $0x4] sm:$0xf]
        %v1392 = vld [vmem:[%s1389 + $0x8] sm:$0xf]
        %v1393 = vld [vmem:[%s1389 + $0xc] sm:$0xf]
        %v1394 = vld [vmem:[%s1389 + $0x10] sm:$0xf]
        %v1395 = vld [vmem:[%s1389 + $0x14] sm:$0xf]
        %v1396 = vld [vmem:[%s1389 + $0x18] sm:$0xf]
        %v1397 = vld [vmem:[%s1389 + $0x1c] sm:$0xf]
        %v1398 = vld [vmem:[%s1389 + $0x20] sm:$0xf]
        %v1399 = vld [vmem:[%s1389 + $0x24] sm:$0xf]
        %v1400 = vld [vmem:[%s1389 + $0x28] sm:$0xf]
        %v1401 = vld [vmem:[%s1389 + $0x2c] sm:$0xf]
        %vm1402 = vsmask.f32 4352
        %v1403 = vshrl.u32 %v1372, 16
        %v1405 = vrot.slane %v1403, 3
        %v1406 = vshll.u32 %v1372, 16
        %v1408 = vrot.slane %v1406, 4
        %v1409 = vor.u32 %v1405, %v1408
        %v1410 = vshrl.u32 %v1374, 16
        %v1412 = vrot.slane %v1410, 3
        %v1413 = vshll.u32 %v1374, 16
        %v1415 = vrot.slane %v1413, 4
        %v1416 = vor.u32 %v1412, %v1415
        %v1417 = vsel %vm1402, %v1409, %v1416
        %v1418 = vshrl.u32 %v1376, 16
        %v1420 = vrot.slane %v1418, 3
        %v1421 = vshll.u32 %v1376, 16
        %v1423 = vrot.slane %v1421, 4
        %v1424 = vor.u32 %v1420, %v1423
        %v1425 = vsel %vm1402, %v1416, %v1424
        %v1426 = vshrl.u32 %v1378, 16
        %v1428 = vrot.slane %v1426, 3
        %v1429 = vshll.u32 %v1378, 16
        %v1431 = vrot.slane %v1429, 4
        %v1432 = vor.u32 %v1428, %v1431
        %v1433 = vsel %vm1402, %v1424, %v1432
        %v1434 = vshrl.u32 %v1380, 16
        %v1436 = vrot.slane %v1434, 3
        %v1437 = vshll.u32 %v1380, 16
        %v1439 = vrot.slane %v1437, 4
        %v1440 = vor.u32 %v1436, %v1439
        %v1441 = vsel %vm1402, %v1432, %v1440
        %v1442 = vshrl.u32 %v1382, 16
        %v1444 = vrot.slane %v1442, 3
        %v1445 = vshll.u32 %v1382, 16
        %v1447 = vrot.slane %v1445, 4
        %v1448 = vor.u32 %v1444, %v1447
        %v1449 = vsel %vm1402, %v1440, %v1448
        %v1450 = vshrl.u32 %v1384, 16
        %v1452 = vrot.slane %v1450, 3
        %v1453 = vshll.u32 %v1384, 16
        %v1455 = vrot.slane %v1453, 4
        %v1456 = vor.u32 %v1452, %v1455
        %v1457 = vsel %vm1402, %v1448, %v1456
        %v1458 = vshrl.u32 %v1386, 16
        %v1460 = vrot.slane %v1458, 3
        %v1461 = vshll.u32 %v1386, 16
        %v1463 = vrot.slane %v1461, 4
        %v1464 = vor.u32 %v1460, %v1463
        %v1465 = vsel %vm1402, %v1456, %v1464
        %v1466 = vshrl.u32 %v1388, 16
        %v1468 = vrot.slane %v1466, 3
        %v1469 = vshll.u32 %v1388, 16
        %v1471 = vrot.slane %v1469, 4
        %v1472 = vor.u32 %v1468, %v1471
        %v1473 = vsel %vm1402, %v1464, %v1472
        %v1486 = vunpack.c.l.b16 %v1390
        %v1487 = vunpack.c.l.b16 %v1391
        %v1488 = vunpack.c.l.b16 %v1392
        %v1489 = vunpack.c.l.b16 %v1393
        %v1490 = vunpack.c.l.b16 %v1394
        %v1491 = vunpack.c.l.b16 %v1395
        %v1492 = vunpack.c.l.b16 %v1396
        %v1493 = vunpack.c.l.b16 %v1397
        %v1494 = vunpack.c.l.b16 %v1398
        %v1495 = vunpack.c.l.b16 %v1399
        %v1496 = vunpack.c.l.b16 %v1400
        %v1497 = vunpack.c.l.b16 %v1401
        %v1498 = vpack.c.b16 %v1487, %v1486
        %v1499 = vpack.c.b16 %v1489, %v1488
        %v1500 = vpack.c.b16 %v1491, %v1490
        %v1501 = vpack.c.b16 %v1493, %v1492
        %v1502 = vpack.c.b16 %v1495, %v1494
        %v1503 = vpack.c.b16 %v1497, %v1496
        %vm1510 = vcmask 785408
        %v1512 = vsel %vm1510, %v1417, 0
        %v1515 = vsel %vm1510, %v1425, 0
        %v1518 = vsel %vm1510, %v1433, 0
        %v1521 = vsel %vm1510, %v1441, 0
        %v1524 = vsel %vm1510, %v1449, 0
        %v1527 = vsel %vm1510, %v1457, 0
        %v1530 = vsel %vm1510, %v1465, 0
        %v1533 = vsel %vm1510, %v1473, 0
        %1535 = vmatprep.subr.bf16.mxu0 0
        %1536 = vmatpush1.bf16.msra.mxu0 0
        %1537 = vmatprep.subr.bf16.mxu0 0
        %1538 = vmatpush1.bf16.msra.mxu0 0
        %1539 = vmatprep.subr.bf16.mxu0 0
        %1540 = vmatpush1.bf16.msra.mxu0 %v1503
        %1541 = vmatprep.subr.bf16.mxu0 0
        %1542 = vmatpush1.bf16.msra.mxu0 %v1502
        %1543 = vmatprep.subr.bf16.mxu0 0
        %1544 = vmatpush1.bf16.msra.mxu0 %v1501
        %1545 = vmatprep.subr.bf16.mxu0 0
        %1546 = vmatpush1.bf16.msra.mxu0 %v1500
        %1547 = vmatprep.subr.bf16.mxu0 0
        %1548 = vmatpush1.bf16.msra.mxu0 %v1499
        %1549 = vmatprep.subr.bf16.mxu0 0
        %1550 = vmatpush1.bf16.msra.mxu0 %v1498
        %1551 = vmatprep.subr.bf16.mxu0 0
        %1552 = vmatpush2.bf16.msra.mxu0 0
        %1553 = vmatprep.subr.bf16.mxu0 0
        %1554 = vmatpush2.bf16.msra.mxu0 0
        %1555 = vmatprep.subr.bf16.mxu0 0
        %1556 = vmatpush2.bf16.msra.mxu0 0
        %1557 = vmatprep.subr.bf16.mxu0 0
        %1558 = vmatpush2.bf16.msra.mxu0 0
        %1559 = vmatprep.subr.bf16.mxu0 0
        %1560 = vmatpush2.bf16.msra.mxu0 0
        %1561 = vmatprep.subr.bf16.mxu0 0
        %1562 = vmatpush2.bf16.msra.mxu0 0
        %1563 = vmatprep.subr.bf16.mxu0 0
        %1564 = vmatpush2.bf16.msra.mxu0 0
        %1565 = vmatprep.subr.bf16.mxu0 0
        %1566 = vmatpush2.bf16.msra.mxu0 0
        %1567 = vmatprep.mubr.bf16.mxu0 0
        %1568 = vmatmul.mubr.bf16.gmra.mxu0 %v1512
        %v1569 = vpop.f32.mrf.mxu0
        %v1570 = vadd.f32 0.0, %v1569
        %v1571 = vpop.f32.mrf.mxu0
        %v1572 = vpop.f32.mrf.mxu0
        %v1573 = vadd.f32 0.0, %v1572
        %v1574 = vpop.f32.mrf.mxu0
        %1575 = vmatprep.mubr.bf16.mxu0 0
        %1576 = vmatmul.mubr.bf16.gmra.mxu0 %v1515
        %v1577 = vpop.f32.mrf.mxu0
        %v1578 = vadd.f32 0.0, %v1577
        %v1579 = vpop.f32.mrf.mxu0
        %v1580 = vpop.f32.mrf.mxu0
        %v1581 = vadd.f32 0.0, %v1580
        %v1582 = vpop.f32.mrf.mxu0
        %1583 = vmatprep.mubr.bf16.mxu0 0
        %1584 = vmatmul.mubr.bf16.gmra.mxu0 %v1518
        %v1585 = vpop.f32.mrf.mxu0
        %v1586 = vadd.f32 0.0, %v1585
        %v1587 = vpop.f32.mrf.mxu0
        %v1588 = vpop.f32.mrf.mxu0
        %v1589 = vadd.f32 0.0, %v1588
        %v1590 = vpop.f32.mrf.mxu0
        %1591 = vmatprep.mubr.bf16.mxu0 0
        %1592 = vmatmul.mubr.bf16.gmra.mxu0 %v1521
        %v1593 = vpop.f32.mrf.mxu0
        %v1594 = vadd.f32 0.0, %v1593
        %v1595 = vpop.f32.mrf.mxu0
        %v1596 = vpop.f32.mrf.mxu0
        %v1597 = vadd.f32 0.0, %v1596
        %v1598 = vpop.f32.mrf.mxu0
        %1599 = vmatprep.mubr.bf16.mxu0 0
        %1600 = vmatmul.mubr.bf16.gmra.mxu0 %v1524
        %v1601 = vpop.f32.mrf.mxu0
        %v1602 = vadd.f32 0.0, %v1601
        %v1603 = vpop.f32.mrf.mxu0
        %v1604 = vpop.f32.mrf.mxu0
        %v1605 = vadd.f32 0.0, %v1604
        %v1606 = vpop.f32.mrf.mxu0
        %1607 = vmatprep.mubr.bf16.mxu0 0
        %1608 = vmatmul.mubr.bf16.gmra.mxu0 %v1527
        %v1609 = vpop.f32.mrf.mxu0
        %v1610 = vadd.f32 0.0, %v1609
        %v1611 = vpop.f32.mrf.mxu0
        %v1612 = vpop.f32.mrf.mxu0
        %v1613 = vadd.f32 0.0, %v1612
        %v1614 = vpop.f32.mrf.mxu0
        %1615 = vmatprep.mubr.bf16.mxu0 0
        %1616 = vmatmul.mubr.bf16.gmra.mxu0 %v1530
        %v1617 = vpop.f32.mrf.mxu0
        %v1618 = vadd.f32 0.0, %v1617
        %v1619 = vpop.f32.mrf.mxu0
        %v1620 = vpop.f32.mrf.mxu0
        %v1621 = vadd.f32 0.0, %v1620
        %v1622 = vpop.f32.mrf.mxu0
        %1623 = vmatprep.mubr.bf16.mxu0 0
        %1624 = vmatmul.mubr.bf16.gmra.mxu0 %v1533
        %v1625 = vpop.f32.mrf.mxu0
        %v1626 = vadd.f32 0.0, %v1625
        %v1627 = vpop.f32.mrf.mxu0
        %v1628 = vpop.f32.mrf.mxu0
        %v1629 = vadd.f32 0.0, %v1628
        %v1630 = vpop.f32.mrf.mxu0
        %1631 = vdwg.mxu0
        %vm1632 = vsmask.f32 5376
        %v1633 = vshrl.u32 %v1171, 16
        %v1635 = vrot.slane %v1633, 2
        %v1636 = vshll.u32 %v1171, 16
        %v1638 = vrot.slane %v1636, 3
        %v1639 = vor.u32 %v1635, %v1638
        %v1640 = vshrl.u32 %v1173, 16
        %v1642 = vrot.slane %v1640, 2
        %v1643 = vshll.u32 %v1173, 16
        %v1645 = vrot.slane %v1643, 3
        %v1646 = vor.u32 %v1642, %v1645
        %v1647 = vsel %vm1632, %v1639, %v1646
        %v1648 = vshrl.u32 %v1175, 16
        %v1650 = vrot.slane %v1648, 2
        %v1651 = vshll.u32 %v1175, 16
        %v1653 = vrot.slane %v1651, 3
        %v1654 = vor.u32 %v1650, %v1653
        %v1655 = vsel %vm1632, %v1646, %v1654
        %v1656 = vshrl.u32 %v1177, 16
        %v1658 = vrot.slane %v1656, 2
        %v1659 = vshll.u32 %v1177, 16
        %v1661 = vrot.slane %v1659, 3
        %v1662 = vor.u32 %v1658, %v1661
        %v1663 = vsel %vm1632, %v1654, %v1662
        %v1664 = vshrl.u32 %v1179, 16
        %v1666 = vrot.slane %v1664, 2
        %v1667 = vshll.u32 %v1179, 16
        %v1669 = vrot.slane %v1667, 3
        %v1670 = vor.u32 %v1666, %v1669
        %v1671 = vsel %vm1632, %v1662, %v1670
        %v1672 = vshrl.u32 %v1181, 16
        %v1674 = vrot.slane %v1672, 2
        %v1675 = vshll.u32 %v1181, 16
        %v1677 = vrot.slane %v1675, 3
        %v1678 = vor.u32 %v1674, %v1677
        %v1679 = vsel %vm1632, %v1670, %v1678
        %v1680 = vshrl.u32 %v1183, 16
        %v1682 = vrot.slane %v1680, 2
        %v1683 = vshll.u32 %v1183, 16
        %v1685 = vrot.slane %v1683, 3
        %v1686 = vor.u32 %v1682, %v1685
        %v1687 = vsel %vm1632, %v1678, %v1686
        %v1688 = vshrl.u32 %v1185, 16
        %v1690 = vrot.slane %v1688, 2
        %v1691 = vshll.u32 %v1185, 16
        %v1693 = vrot.slane %v1691, 3
        %v1694 = vor.u32 %v1690, %v1693
        %v1695 = vsel %vm1632, %v1686, %v1694
        %v1696 = vshrl.u32 %v1187, 16
        %v1698 = vrot.slane %v1696, 2
        %v1699 = vshll.u32 %v1187, 16
        %v1701 = vrot.slane %v1699, 3
        %v1702 = vor.u32 %v1698, %v1701
        %v1703 = vsel %vm1632, %v1694, %v1702
        %v1716 = vunpack.c.l.b16 %v1188
        %v1717 = vunpack.c.l.b16 %v1189
        %v1718 = vunpack.c.l.b16 %v1190
        %v1719 = vunpack.c.l.b16 %v1191
        %v1720 = vunpack.c.l.b16 %v1192
        %v1721 = vunpack.c.l.b16 %v1193
        %v1722 = vunpack.c.l.b16 %v1194
        %v1723 = vunpack.c.l.b16 %v1195
        %v1724 = vunpack.c.l.b16 %v1196
        %v1725 = vunpack.c.l.b16 %v1197
        %v1726 = vunpack.c.l.b16 %v1198
        %v1727 = vunpack.c.l.b16 %v1199
        %v1728 = vpack.c.b16 %v1717, %v1716
        %v1729 = vpack.c.b16 %v1719, %v1718
        %v1730 = vpack.c.b16 %v1721, %v1720
        %v1731 = vpack.c.b16 %v1723, %v1722
        %v1732 = vpack.c.b16 %v1725, %v1724
        %v1733 = vpack.c.b16 %v1727, %v1726
        %v1741 = vsel %vm1510, %v1647, 0
        %v1744 = vsel %vm1510, %v1655, 0
        %v1747 = vsel %vm1510, %v1663, 0
        %v1750 = vsel %vm1510, %v1671, 0
        %v1753 = vsel %vm1510, %v1679, 0
        %v1756 = vsel %vm1510, %v1687, 0
        %v1759 = vsel %vm1510, %v1695, 0
        %v1762 = vsel %vm1510, %v1703, 0
        %1764 = vmatprep.subr.bf16.mxu0 0
        %1765 = vmatpush1.bf16.msra.mxu0 0
        %1766 = vmatprep.subr.bf16.mxu0 0
        %1767 = vmatpush1.bf16.msra.mxu0 0
        %1768 = vmatprep.subr.bf16.mxu0 0
        %1769 = vmatpush1.bf16.msra.mxu0 %v1733
        %1770 = vmatprep.subr.bf16.mxu0 0
        %1771 = vmatpush1.bf16.msra.mxu0 %v1732
        %1772 = vmatprep.subr.bf16.mxu0 0
        %1773 = vmatpush1.bf16.msra.mxu0 %v1731
        %1774 = vmatprep.subr.bf16.mxu0 0
        %1775 = vmatpush1.bf16.msra.mxu0 %v1730
        %1776 = vmatprep.subr.bf16.mxu0 0
        %1777 = vmatpush1.bf16.msra.mxu0 %v1729
        %1778 = vmatprep.subr.bf16.mxu0 0
        %1779 = vmatpush1.bf16.msra.mxu0 %v1728
        %1780 = vmatprep.subr.bf16.mxu0 0
        %1781 = vmatpush2.bf16.msra.mxu0 0
        %1782 = vmatprep.subr.bf16.mxu0 0
        %1783 = vmatpush2.bf16.msra.mxu0 0
        %1784 = vmatprep.subr.bf16.mxu0 0
        %1785 = vmatpush2.bf16.msra.mxu0 0
        %1786 = vmatprep.subr.bf16.mxu0 0
        %1787 = vmatpush2.bf16.msra.mxu0 0
        %1788 = vmatprep.subr.bf16.mxu0 0
        %1789 = vmatpush2.bf16.msra.mxu0 0
        %1790 = vmatprep.subr.bf16.mxu0 0
        %1791 = vmatpush2.bf16.msra.mxu0 0
        %1792 = vmatprep.subr.bf16.mxu0 0
        %1793 = vmatpush2.bf16.msra.mxu0 0
        %1794 = vmatprep.subr.bf16.mxu0 0
        %1795 = vmatpush2.bf16.msra.mxu0 0
        %1796 = vmatprep.mubr.bf16.mxu0 0
        %1797 = vmatmul.mubr.bf16.gmra.mxu0 %v1741
        %v1798 = vpop.f32.mrf.mxu0
        %v1799 = vadd.f32 %v1570, %v1798
        %v1800 = vpop.f32.mrf.mxu0
        %v1801 = vpop.f32.mrf.mxu0
        %v1802 = vadd.f32 %v1573, %v1801
        %v1803 = vpop.f32.mrf.mxu0
        %1804 = vmatprep.mubr.bf16.mxu0 0
        %1805 = vmatmul.mubr.bf16.gmra.mxu0 %v1744
        %v1806 = vpop.f32.mrf.mxu0
        %v1807 = vadd.f32 %v1578, %v1806
        %v1808 = vpop.f32.mrf.mxu0
        %v1809 = vpop.f32.mrf.mxu0
        %v1810 = vadd.f32 %v1581, %v1809
        %v1811 = vpop.f32.mrf.mxu0
        %1812 = vmatprep.mubr.bf16.mxu0 0
        %1813 = vmatmul.mubr.bf16.gmra.mxu0 %v1747
        %v1814 = vpop.f32.mrf.mxu0
        %v1815 = vadd.f32 %v1586, %v1814
        %v1816 = vpop.f32.mrf.mxu0
        %v1817 = vpop.f32.mrf.mxu0
        %v1818 = vadd.f32 %v1589, %v1817
        %v1819 = vpop.f32.mrf.mxu0
        %1820 = vmatprep.mubr.bf16.mxu0 0
        %1821 = vmatmul.mubr.bf16.gmra.mxu0 %v1750
        %v1822 = vpop.f32.mrf.mxu0
        %v1823 = vadd.f32 %v1594, %v1822
        %v1824 = vpop.f32.mrf.mxu0
        %v1825 = vpop.f32.mrf.mxu0
        %v1826 = vadd.f32 %v1597, %v1825
        %v1827 = vpop.f32.mrf.mxu0
        %1828 = vmatprep.mubr.bf16.mxu0 0
        %1829 = vmatmul.mubr.bf16.gmra.mxu0 %v1753
        %v1830 = vpop.f32.mrf.mxu0
        %v1831 = vadd.f32 %v1602, %v1830
        %v1832 = vpop.f32.mrf.mxu0
        %v1833 = vpop.f32.mrf.mxu0
        %v1834 = vadd.f32 %v1605, %v1833
        %v1835 = vpop.f32.mrf.mxu0
        %1836 = vmatprep.mubr.bf16.mxu0 0
        %1837 = vmatmul.mubr.bf16.gmra.mxu0 %v1756
        %v1838 = vpop.f32.mrf.mxu0
        %v1839 = vadd.f32 %v1610, %v1838
        %v1840 = vpop.f32.mrf.mxu0
        %v1841 = vpop.f32.mrf.mxu0
        %v1842 = vadd.f32 %v1613, %v1841
        %v1843 = vpop.f32.mrf.mxu0
        %1844 = vmatprep.mubr.bf16.mxu0 0
        %1845 = vmatmul.mubr.bf16.gmra.mxu0 %v1759
        %v1846 = vpop.f32.mrf.mxu0
        %v1847 = vadd.f32 %v1618, %v1846
        %v1848 = vpop.f32.mrf.mxu0
        %v1849 = vpop.f32.mrf.mxu0
        %v1850 = vadd.f32 %v1621, %v1849
        %v1851 = vpop.f32.mrf.mxu0
        %1852 = vmatprep.mubr.bf16.mxu0 0
        %1853 = vmatmul.mubr.bf16.gmra.mxu0 %v1762
        %v1854 = vpop.f32.mrf.mxu0
        %v1855 = vadd.f32 %v1626, %v1854
        %v1856 = vpop.f32.mrf.mxu0
        %v1857 = vpop.f32.mrf.mxu0
        %v1858 = vadd.f32 %v1629, %v1857
        %v1859 = vpop.f32.mrf.mxu0
        %1860 = vdwg.mxu0
        %v1861 = vld [vmem:[#allocation2 + $0x14] sm:$0xf]
        %v1862 = vld [vmem:[#allocation2 + $0x18] sm:$0xf]
        %v1863 = vld [vmem:[#allocation2 + $0x1c] sm:$0xf]
        %v1864 = vld [vmem:[#allocation2 + $0x20] sm:$0xf]
        %v1865 = vld [vmem:[#allocation2 + $0x24] sm:$0xf]
        %v1866 = vld [vmem:[#allocation2 + $0x28] sm:$0xf]
        %v1867 = vld [vmem:[#allocation2 + $0x2c] sm:$0xf]
        %v1868 = vld [vmem:[#allocation2 + $0x30] sm:$0xf]
        %v1869 = vld [vmem:[#allocation2 + $0x34] sm:$0xf]
        %v1870 = vld [vmem:[#allocation2 + $0x38] sm:$0xf]
        %v1871 = vld [vmem:[#allocation2 + $0x3c] sm:$0xf]
        %v1872 = vld [vmem:[#allocation2 + $0x40] sm:$0xf]
        %v1873 = vld [vmem:[#allocation2 + $0x44] sm:$0xf]
        %v1874 = vld [vmem:[#allocation2 + $0x48] sm:$0xf]
        %v1875 = vld [vmem:[#allocation2 + $0x4c] sm:$0xf]
        %v1876 = vld [vmem:[#allocation2 + $0x50] sm:$0xf]
        %v1877 = vld [vmem:[#allocation2 + $0x54] sm:$0x1]
        %v1878 = vld [vmem:[#allocation2 + $0x14] sm:$0xe]
        %v1879 = vld [vmem:[#allocation2 + $0x54] sm:$0x3]
        %v1897 = vunpack.c.l.b16 %v1861
        %v1898 = vunpack.c.l.b16 %v1862
        %v1899 = vunpack.c.l.b16 %v1863
        %v1900 = vunpack.c.l.b16 %v1864
        %v1901 = vunpack.c.l.b16 %v1865
        %v1902 = vunpack.c.l.b16 %v1866
        %v1903 = vunpack.c.l.b16 %v1867
        %v1904 = vunpack.c.l.b16 %v1868
        %v1905 = vunpack.c.l.b16 %v1869
        %v1906 = vunpack.c.l.b16 %v1870
        %v1907 = vunpack.c.l.b16 %v1871
        %v1908 = vunpack.c.l.b16 %v1872
        %v1909 = vunpack.c.l.b16 %v1873
        %v1910 = vunpack.c.l.b16 %v1874
        %v1911 = vunpack.c.l.b16 %v1875
        %v1912 = vunpack.c.l.b16 %v1876
        %v1913 = vunpack.c.l.b16 %v1877
        %v1914 = vpack.c.b16 %v1898, %v1897
        %v1915 = vpack.c.b16 %v1900, %v1899
        %v1916 = vpack.c.b16 %v1902, %v1901
        %v1917 = vpack.c.b16 %v1904, %v1903
        %v1918 = vpack.c.b16 %v1906, %v1905
        %v1919 = vpack.c.b16 %v1908, %v1907
        %v1920 = vpack.c.b16 %v1910, %v1909
        %v1921 = vpack.c.b16 %v1912, %v1911
        %v1922 = vpack.c.b16 %v1913, %v1913
        %v1924 = vunpack.c.l.b16 %v1878
        %v1925 = vpack.c.b16 %v1898, %v1924
        %v1927 = vshrl.u32 %v1925, 16
        %v1929 = vshll.u32 %v1925, 16
        %v1931 = vrot.slane %v1929, 1
        %v1932 = vor.u32 %v1927, %v1931
        %v1934 = vshll.u32 %v1915, 16
        %v1936 = vrot.slane %v1934, 1
        %v1937 = vsel %vm1020, %v1932, %v1936
        %v1938 = vshrl.u32 %v1915, 16
        %v1940 = vor.u32 %v1938, %v1936
        %v1942 = vshll.u32 %v1916, 16
        %v1944 = vrot.slane %v1942, 1
        %v1945 = vsel %vm1020, %v1940, %v1944
        %v1946 = vshrl.u32 %v1916, 16
        %v1948 = vor.u32 %v1946, %v1944
        %v1950 = vshll.u32 %v1917, 16
        %v1952 = vrot.slane %v1950, 1
        %v1953 = vsel %vm1020, %v1948, %v1952
        %v1954 = vshrl.u32 %v1917, 16
        %v1956 = vor.u32 %v1954, %v1952
        %v1958 = vshll.u32 %v1918, 16
        %v1960 = vrot.slane %v1958, 1
        %v1961 = vsel %vm1020, %v1956, %v1960
        %v1962 = vshrl.u32 %v1918, 16
        %v1964 = vor.u32 %v1962, %v1960
        %v1966 = vshll.u32 %v1919, 16
        %v1968 = vrot.slane %v1966, 1
        %v1969 = vsel %vm1020, %v1964, %v1968
        %v1970 = vshrl.u32 %v1919, 16
        %v1972 = vor.u32 %v1970, %v1968
        %v1974 = vshll.u32 %v1920, 16
        %v1976 = vrot.slane %v1974, 1
        %v1977 = vsel %vm1020, %v1972, %v1976
        %v1978 = vshrl.u32 %v1920, 16
        %v1980 = vor.u32 %v1978, %v1976
        %v1982 = vshll.u32 %v1921, 16
        %v1984 = vrot.slane %v1982, 1
        %v1985 = vsel %vm1020, %v1980, %v1984
        %v1986 = vshrl.u32 %v1921, 16
        %v1988 = vor.u32 %v1986, %v1984
        %v1990 = vshll.u32 %v1922, 16
        %v1992 = vrot.slane %v1990, 1
        %v1993 = vsel %vm1020, %v1988, %v1992
        %v1994 = vshrl.u32 %v1922, 16
        %1996 = vrot.lane.b32.xlu0 %v1937, 32
        %v1997 = vpop.permute.xlu0 %1996
        %1998 = vrot.lane.b32.xlu0 %v1945, 32
        %v1999 = vpop.permute.xlu0 %1998
        %2000 = vrot.lane.b32.xlu0 %v1953, 32
        %v2001 = vpop.permute.xlu0 %2000
        %2002 = vrot.lane.b32.xlu0 %v1961, 32
        %v2003 = vpop.permute.xlu0 %2002
        %2004 = vrot.lane.b32.xlu0 %v1969, 32
        %v2005 = vpop.permute.xlu0 %2004
        %2006 = vrot.lane.b32.xlu0 %v1977, 32
        %v2007 = vpop.permute.xlu0 %2006
        %2008 = vrot.lane.b32.xlu0 %v1985, 32
        %v2009 = vpop.permute.xlu0 %2008
        %2010 = vrot.lane.b32.xlu0 %v1993, 32
        %v2011 = vpop.permute.xlu0 %2010
        %2012 = vrot.lane.b32.xlu0 %v1994, 32
        %v2013 = vpop.permute.xlu0 %2012
        %v2015 = vunpack.c.l.b16 %v1879
        %v2016 = vpack.c.b16 %v2015, %v2015
        %v2017 = vrot.slane %v1925, 1
        %v2018 = vrot.slane %v1915, 1
        %v2019 = vsel %vm1113, %v2017, %v2018
        %v2020 = vrot.slane %v1916, 1
        %v2021 = vsel %vm1113, %v2018, %v2020
        %v2022 = vrot.slane %v1917, 1
        %v2023 = vsel %vm1113, %v2020, %v2022
        %v2024 = vrot.slane %v1918, 1
        %v2025 = vsel %vm1113, %v2022, %v2024
        %v2026 = vrot.slane %v1919, 1
        %v2027 = vsel %vm1113, %v2024, %v2026
        %v2028 = vrot.slane %v1920, 1
        %v2029 = vsel %vm1113, %v2026, %v2028
        %v2030 = vrot.slane %v1921, 1
        %v2031 = vsel %vm1113, %v2028, %v2030
        %v2032 = vrot.slane %v2016, 1
        %v2033 = vsel %vm1113, %v2030, %v2032
        %2034 = vrot.lane.b32.xlu0 %v2019, 64
        %v2035 = vpop.permute.xlu0 %2034
        %2036 = vrot.lane.b32.xlu0 %v2021, 64
        %v2037 = vpop.permute.xlu0 %2036
        %2038 = vrot.lane.b32.xlu0 %v2023, 64
        %v2039 = vpop.permute.xlu0 %2038
        %2040 = vrot.lane.b32.xlu0 %v2025, 64
        %v2041 = vpop.permute.xlu0 %2040
        %2042 = vrot.lane.b32.xlu0 %v2027, 64
        %v2043 = vpop.permute.xlu0 %2042
        %2044 = vrot.lane.b32.xlu0 %v2029, 64
        %v2045 = vpop.permute.xlu0 %2044
        %2046 = vrot.lane.b32.xlu0 %v2031, 64
        %v2047 = vpop.permute.xlu0 %2046
        %2048 = vrot.lane.b32.xlu0 %v2033, 64
        %v2049 = vpop.permute.xlu0 %2048
        %2050 = vrot.lane.b32.xlu0 %v2032, 64
        %v2051 = vpop.permute.xlu0 %2050
        %v2054 = vsel %vm1149, %v1914, %v1997
        %v2056 = vsel %vm1149, %v1915, %v1999
        %v2058 = vsel %vm1149, %v1916, %v2001
        %v2060 = vsel %vm1149, %v1917, %v2003
        %v2062 = vsel %vm1149, %v1918, %v2005
        %v2064 = vsel %vm1149, %v1919, %v2007
        %v2066 = vsel %vm1149, %v1920, %v2009
        %v2068 = vsel %vm1149, %v1921, %v2011
        %v2070 = vsel %vm1149, %v1922, %v2013
        %v2072 = vsel %vm1169, %v2054, %v2035
        %v2074 = vsel %vm1169, %v2056, %v2037
        %v2076 = vsel %vm1169, %v2058, %v2039
        %v2078 = vsel %vm1169, %v2060, %v2041
        %v2080 = vsel %vm1169, %v2062, %v2043
        %v2082 = vsel %vm1169, %v2064, %v2045
        %v2084 = vsel %vm1169, %v2066, %v2047
        %v2086 = vsel %vm1169, %v2068, %v2049
        %v2088 = vsel %vm1169, %v2070, %v2051
        %s2089 = scalar_lea.vmem %s2, 96
        %v2090 = vld [vmem:[%s2089] sm:$0xf]
        %v2091 = vld [vmem:[%s2089 + $0x4] sm:$0xf]
        %v2092 = vld [vmem:[%s2089 + $0x8] sm:$0xf]
        %v2093 = vld [vmem:[%s2089 + $0xc] sm:$0xf]
        %v2094 = vld [vmem:[%s2089 + $0x10] sm:$0xf]
        %v2095 = vld [vmem:[%s2089 + $0x14] sm:$0xf]
        %v2096 = vld [vmem:[%s2089 + $0x18] sm:$0xf]
        %v2097 = vld [vmem:[%s2089 + $0x1c] sm:$0xf]
        %v2098 = vld [vmem:[%s2089 + $0x20] sm:$0xf]
        %v2099 = vld [vmem:[%s2089 + $0x24] sm:$0xf]
        %v2100 = vld [vmem:[%s2089 + $0x28] sm:$0xf]
        %v2101 = vld [vmem:[%s2089 + $0x2c] sm:$0xf]
        %v2102 = vshrl.u32 %v2072, 16
        %v2104 = vshll.u32 %v2072, 16
        %v2106 = vrot.slane %v2104, 1
        %v2107 = vor.u32 %v2102, %v2106
        %v2108 = vshll.u32 %v2074, 16
        %v2110 = vrot.slane %v2108, 1
        %v2111 = vsel %vm1020, %v2107, %v2110
        %v2112 = vshrl.u32 %v2074, 16
        %v2114 = vor.u32 %v2112, %v2110
        %v2115 = vshll.u32 %v2076, 16
        %v2117 = vrot.slane %v2115, 1
        %v2118 = vsel %vm1020, %v2114, %v2117
        %v2119 = vshrl.u32 %v2076, 16
        %v2121 = vor.u32 %v2119, %v2117
        %v2122 = vshll.u32 %v2078, 16
        %v2124 = vrot.slane %v2122, 1
        %v2125 = vsel %vm1020, %v2121, %v2124
        %v2126 = vshrl.u32 %v2078, 16
        %v2128 = vor.u32 %v2126, %v2124
        %v2129 = vshll.u32 %v2080, 16
        %v2131 = vrot.slane %v2129, 1
        %v2132 = vsel %vm1020, %v2128, %v2131
        %v2133 = vshrl.u32 %v2080, 16
        %v2135 = vor.u32 %v2133, %v2131
        %v2136 = vshll.u32 %v2082, 16
        %v2138 = vrot.slane %v2136, 1
        %v2139 = vsel %vm1020, %v2135, %v2138
        %v2140 = vshrl.u32 %v2082, 16
        %v2142 = vor.u32 %v2140, %v2138
        %v2143 = vshll.u32 %v2084, 16
        %v2145 = vrot.slane %v2143, 1
        %v2146 = vsel %vm1020, %v2142, %v2145
        %v2147 = vshrl.u32 %v2084, 16
        %v2149 = vor.u32 %v2147, %v2145
        %v2150 = vshll.u32 %v2086, 16
        %v2152 = vrot.slane %v2150, 1
        %v2153 = vsel %vm1020, %v2149, %v2152
        %v2154 = vshrl.u32 %v2086, 16
        %v2156 = vor.u32 %v2154, %v2152
        %v2157 = vshll.u32 %v2088, 16
        %v2159 = vrot.slane %v2157, 1
        %v2160 = vsel %vm1020, %v2156, %v2159
        %v2173 = vunpack.c.l.b16 %v2090
        %v2174 = vunpack.c.l.b16 %v2091
        %v2175 = vunpack.c.l.b16 %v2092
        %v2176 = vunpack.c.l.b16 %v2093
        %v2177 = vunpack.c.l.b16 %v2094
        %v2178 = vunpack.c.l.b16 %v2095
        %v2179 = vunpack.c.l.b16 %v2096
        %v2180 = vunpack.c.l.b16 %v2097
        %v2181 = vunpack.c.l.b16 %v2098
        %v2182 = vunpack.c.l.b16 %v2099
        %v2183 = vunpack.c.l.b16 %v2100
        %v2184 = vunpack.c.l.b16 %v2101
        %v2185 = vpack.c.b16 %v2174, %v2173
        %v2186 = vpack.c.b16 %v2176, %v2175
        %v2187 = vpack.c.b16 %v2178, %v2177
        %v2188 = vpack.c.b16 %v2180, %v2179
        %v2189 = vpack.c.b16 %v2182, %v2181
        %v2190 = vpack.c.b16 %v2184, %v2183
        %v2198 = vsel %vm1510, %v2111, 0
        %v2201 = vsel %vm1510, %v2118, 0
        %v2204 = vsel %vm1510, %v2125, 0
        %v2207 = vsel %vm1510, %v2132, 0
        %v2210 = vsel %vm1510, %v2139, 0
        %v2213 = vsel %vm1510, %v2146, 0
        %v2216 = vsel %vm1510, %v2153, 0
        %v2219 = vsel %vm1510, %v2160, 0
        %2221 = vmatprep.subr.bf16.mxu0 0
        %2222 = vmatpush1.bf16.msra.mxu0 0
        %2223 = vmatprep.subr.bf16.mxu0 0
        %2224 = vmatpush1.bf16.msra.mxu0 0
        %2225 = vmatprep.subr.bf16.mxu0 0
        %2226 = vmatpush1.bf16.msra.mxu0 %v2190
        %2227 = vmatprep.subr.bf16.mxu0 0
        %2228 = vmatpush1.bf16.msra.mxu0 %v2189
        %2229 = vmatprep.subr.bf16.mxu0 0
        %2230 = vmatpush1.bf16.msra.mxu0 %v2188
        %2231 = vmatprep.subr.bf16.mxu0 0
        %2232 = vmatpush1.bf16.msra.mxu0 %v2187
        %2233 = vmatprep.subr.bf16.mxu0 0
        %2234 = vmatpush1.bf16.msra.mxu0 %v2186
        %2235 = vmatprep.subr.bf16.mxu0 0
        %2236 = vmatpush1.bf16.msra.mxu0 %v2185
        %2237 = vmatprep.subr.bf16.mxu0 0
        %2238 = vmatpush2.bf16.msra.mxu0 0
        %2239 = vmatprep.subr.bf16.mxu0 0
        %2240 = vmatpush2.bf16.msra.mxu0 0
        %2241 = vmatprep.subr.bf16.mxu0 0
        %2242 = vmatpush2.bf16.msra.mxu0 0
        %2243 = vmatprep.subr.bf16.mxu0 0
        %2244 = vmatpush2.bf16.msra.mxu0 0
        %2245 = vmatprep.subr.bf16.mxu0 0
        %2246 = vmatpush2.bf16.msra.mxu0 0
        %2247 = vmatprep.subr.bf16.mxu0 0
        %2248 = vmatpush2.bf16.msra.mxu0 0
        %2249 = vmatprep.subr.bf16.mxu0 0
        %2250 = vmatpush2.bf16.msra.mxu0 0
        %2251 = vmatprep.subr.bf16.mxu0 0
        %2252 = vmatpush2.bf16.msra.mxu0 0
        %2253 = vmatprep.mubr.bf16.mxu0 0
        %2254 = vmatmul.mubr.bf16.gmra.mxu0 %v2198
        %v2255 = vpop.f32.mrf.mxu0
        %v2256 = vadd.f32 0.0, %v2255
        %v2257 = vpop.f32.mrf.mxu0
        %v2258 = vpop.f32.mrf.mxu0
        %v2259 = vadd.f32 0.0, %v2258
        %v2260 = vpop.f32.mrf.mxu0
        %2261 = vmatprep.mubr.bf16.mxu0 0
        %2262 = vmatmul.mubr.bf16.gmra.mxu0 %v2201
        %v2263 = vpop.f32.mrf.mxu0
        %v2264 = vadd.f32 0.0, %v2263
        %v2265 = vpop.f32.mrf.mxu0
        %v2266 = vpop.f32.mrf.mxu0
        %v2267 = vadd.f32 0.0, %v2266
        %v2268 = vpop.f32.mrf.mxu0
        %2269 = vmatprep.mubr.bf16.mxu0 0
        %2270 = vmatmul.mubr.bf16.gmra.mxu0 %v2204
        %v2271 = vpop.f32.mrf.mxu0
        %v2272 = vadd.f32 0.0, %v2271
        %v2273 = vpop.f32.mrf.mxu0
        %v2274 = vpop.f32.mrf.mxu0
        %v2275 = vadd.f32 0.0, %v2274
        %v2276 = vpop.f32.mrf.mxu0
        %2277 = vmatprep.mubr.bf16.mxu0 0
        %2278 = vmatmul.mubr.bf16.gmra.mxu0 %v2207
        %v2279 = vpop.f32.mrf.mxu0
        %v2280 = vadd.f32 0.0, %v2279
        %v2281 = vpop.f32.mrf.mxu0
        %v2282 = vpop.f32.mrf.mxu0
        %v2283 = vadd.f32 0.0, %v2282
        %v2284 = vpop.f32.mrf.mxu0
        %2285 = vmatprep.mubr.bf16.mxu0 0
        %2286 = vmatmul.mubr.bf16.gmra.mxu0 %v2210
        %v2287 = vpop.f32.mrf.mxu0
        %v2288 = vadd.f32 0.0, %v2287
        %v2289 = vpop.f32.mrf.mxu0
        %v2290 = vpop.f32.mrf.mxu0
        %v2291 = vadd.f32 0.0, %v2290
        %v2292 = vpop.f32.mrf.mxu0
        %2293 = vmatprep.mubr.bf16.mxu0 0
        %2294 = vmatmul.mubr.bf16.gmra.mxu0 %v2213
        %v2295 = vpop.f32.mrf.mxu0
        %v2296 = vadd.f32 0.0, %v2295
        %v2297 = vpop.f32.mrf.mxu0
        %v2298 = vpop.f32.mrf.mxu0
        %v2299 = vadd.f32 0.0, %v2298
        %v2300 = vpop.f32.mrf.mxu0
        %2301 = vmatprep.mubr.bf16.mxu0 0
        %2302 = vmatmul.mubr.bf16.gmra.mxu0 %v2216
        %v2303 = vpop.f32.mrf.mxu0
        %v2304 = vadd.f32 0.0, %v2303
        %v2305 = vpop.f32.mrf.mxu0
        %v2306 = vpop.f32.mrf.mxu0
        %v2307 = vadd.f32 0.0, %v2306
        %v2308 = vpop.f32.mrf.mxu0
        %2309 = vmatprep.mubr.bf16.mxu0 0
        %2310 = vmatmul.mubr.bf16.gmra.mxu0 %v2219
        %v2311 = vpop.f32.mrf.mxu0
        %v2312 = vadd.f32 0.0, %v2311
        %v2313 = vpop.f32.mrf.mxu0
        %v2314 = vpop.f32.mrf.mxu0
        %v2315 = vadd.f32 0.0, %v2314
        %v2316 = vpop.f32.mrf.mxu0
        %2317 = vdwg.mxu0
        %v2318 = vadd.f32 %v1799, %v2256
        %v2319 = vadd.f32 %v1802, %v2259
        %v2320 = vadd.f32 %v1807, %v2264
        %v2321 = vadd.f32 %v1810, %v2267
        %v2322 = vadd.f32 %v1815, %v2272
        %v2323 = vadd.f32 %v1818, %v2275
        %v2324 = vadd.f32 %v1823, %v2280
        %v2325 = vadd.f32 %v1826, %v2283
        %v2326 = vadd.f32 %v1831, %v2288
        %v2327 = vadd.f32 %v1834, %v2291
        %v2328 = vadd.f32 %v1839, %v2296
        %v2329 = vadd.f32 %v1842, %v2299
        %v2330 = vadd.f32 %v1847, %v2304
        %v2331 = vadd.f32 %v1850, %v2307
        %v2332 = vadd.f32 %v1855, %v2312
        %v2333 = vadd.f32 %v1858, %v2315
        %v2335 = vlaneseq
        %v2336 = vshrl.u32 %v2335, 7
        %v2337 = vsub.s32 0, %v2336
        %v2338 = vrot.slane %v211, %v2337
        %v2340 = vadd.f32 %v2318, %v2338
        %v2341 = vadd.f32 %v2319, %v2338
        %v2342 = vadd.f32 %v2320, %v2338
        %v2343 = vadd.f32 %v2321, %v2338
        %v2344 = vadd.f32 %v2322, %v2338
        %v2345 = vadd.f32 %v2323, %v2338
        %v2346 = vadd.f32 %v2324, %v2338
        %v2347 = vadd.f32 %v2325, %v2338
        %v2348 = vadd.f32 %v2326, %v2338
        %v2349 = vadd.f32 %v2327, %v2338
        %v2350 = vadd.f32 %v2328, %v2338
        %v2351 = vadd.f32 %v2329, %v2338
        %v2352 = vadd.f32 %v2330, %v2338
        %v2353 = vadd.f32 %v2331, %v2338
        %v2354 = vadd.f32 %v2332, %v2338
        %v2355 = vadd.f32 %v2333, %v2338
        %v2356 = vmax.f32 %v2340, 0.0
        %v2357 = vmax.f32 %v2341, 0.0
        %v2358 = vmax.f32 %v2342, 0.0
        %v2359 = vmax.f32 %v2343, 0.0
        %v2360 = vmax.f32 %v2344, 0.0
        %v2361 = vmax.f32 %v2345, 0.0
        %v2362 = vmax.f32 %v2346, 0.0
        %v2363 = vmax.f32 %v2347, 0.0
        %v2364 = vmax.f32 %v2348, 0.0
        %v2365 = vmax.f32 %v2349, 0.0
        %v2366 = vmax.f32 %v2350, 0.0
        %v2367 = vmax.f32 %v2351, 0.0
        %v2368 = vmax.f32 %v2352, 0.0
        %v2369 = vmax.f32 %v2353, 0.0
        %v2370 = vmax.f32 %v2354, 0.0
        %v2371 = vmax.f32 %v2355, 0.0
        %v2372 = vld [vmem:[%s194] sm:$0xf]
        %v2373 = vld [vmem:[%s194 + $0x4] sm:$0xf]
        %v2374 = vld [vmem:[%s194 + $0x8] sm:$0xf]
        %v2375 = vld [vmem:[%s194 + $0xc] sm:$0xf]
        %v2376 = vld [vmem:[%s194 + $0x10] sm:$0xf]
        %v2377 = vld [vmem:[%s194 + $0x14] sm:$0xf]
        %v2378 = vld [vmem:[%s194 + $0x18] sm:$0xf]
        %v2379 = vld [vmem:[%s194 + $0x1c] sm:$0xf]
        %v2380 = vld [vmem:[%s194 + $0x20] sm:$0xf]
        %v2381 = vld [vmem:[%s194 + $0x24] sm:$0xf]
        %v2382 = vld [vmem:[%s194 + $0x28] sm:$0xf]
        %v2383 = vld [vmem:[%s194 + $0x2c] sm:$0xf]
        %v2384 = vld [vmem:[%s194 + $0x30] sm:$0xf]
        %v2385 = vld [vmem:[%s194 + $0x34] sm:$0xf]
        %v2386 = vld [vmem:[%s194 + $0x38] sm:$0xf]
        %v2387 = vld [vmem:[%s194 + $0x3c] sm:$0xf]
        %v2388 = vunpack.c.l.bf16 %v2372
        %v2389 = vunpack.c.l.bf16 %v2373
        %v2390 = vunpack.c.l.bf16 %v2374
        %v2391 = vunpack.c.l.bf16 %v2375
        %v2392 = vunpack.c.l.bf16 %v2376
        %v2393 = vunpack.c.l.bf16 %v2377
        %v2394 = vunpack.c.l.bf16 %v2378
        %v2395 = vunpack.c.l.bf16 %v2379
        %v2396 = vunpack.c.l.bf16 %v2380
        %v2397 = vunpack.c.l.bf16 %v2381
        %v2398 = vunpack.c.l.bf16 %v2382
        %v2399 = vunpack.c.l.bf16 %v2383
        %v2400 = vunpack.c.l.bf16 %v2384
        %v2401 = vunpack.c.l.bf16 %v2385
        %v2402 = vunpack.c.l.bf16 %v2386
        %v2403 = vunpack.c.l.bf16 %v2387
        %2405 = vset.pattern.permute.xlu0 36
        %2406 = vperm.xlu0 %2405, %v2388
        %v2407 = vpop.permute.xlu0 %2406
        %2410 = vset.pattern.permute.xlu0 36
        %2411 = vperm.xlu0 %2410, %v2389
        %v2412 = vpop.permute.xlu0 %2411
        %2415 = vset.pattern.permute.xlu0 36
        %2416 = vperm.xlu0 %2415, %v2390
        %v2417 = vpop.permute.xlu0 %2416
        %2420 = vset.pattern.permute.xlu0 36
        %2421 = vperm.xlu0 %2420, %v2391
        %v2422 = vpop.permute.xlu0 %2421
        %2425 = vset.pattern.permute.xlu0 36
        %2426 = vperm.xlu0 %2425, %v2392
        %v2427 = vpop.permute.xlu0 %2426
        %2430 = vset.pattern.permute.xlu0 36
        %2431 = vperm.xlu0 %2430, %v2393
        %v2432 = vpop.permute.xlu0 %2431
        %2435 = vset.pattern.permute.xlu0 36
        %2436 = vperm.xlu0 %2435, %v2394
        %v2437 = vpop.permute.xlu0 %2436
        %2440 = vset.pattern.permute.xlu0 36
        %2441 = vperm.xlu0 %2440, %v2395
        %v2442 = vpop.permute.xlu0 %2441
        %2445 = vset.pattern.permute.xlu0 36
        %2446 = vperm.xlu0 %2445, %v2396
        %v2447 = vpop.permute.xlu0 %2446
        %2450 = vset.pattern.permute.xlu0 36
        %2451 = vperm.xlu0 %2450, %v2397
        %v2452 = vpop.permute.xlu0 %2451
        %2455 = vset.pattern.permute.xlu0 36
        %2456 = vperm.xlu0 %2455, %v2398
        %v2457 = vpop.permute.xlu0 %2456
        %2460 = vset.pattern.permute.xlu0 36
        %2461 = vperm.xlu0 %2460, %v2399
        %v2462 = vpop.permute.xlu0 %2461
        %2465 = vset.pattern.permute.xlu0 36
        %2466 = vperm.xlu0 %2465, %v2400
        %v2467 = vpop.permute.xlu0 %2466
        %2470 = vset.pattern.permute.xlu0 36
        %2471 = vperm.xlu0 %2470, %v2401
        %v2472 = vpop.permute.xlu0 %2471
        %2475 = vset.pattern.permute.xlu0 36
        %2476 = vperm.xlu0 %2475, %v2402
        %v2477 = vpop.permute.xlu0 %2476
        %2480 = vset.pattern.permute.xlu0 36
        %2481 = vperm.xlu0 %2480, %v2403
        %v2482 = vpop.permute.xlu0 %2481
        %v2484 = vmul.f32 %v2356, %v2407
        %v2485 = vmul.f32 %v2357, %v2412
        %v2486 = vmul.f32 %v2358, %v2417
        %v2487 = vmul.f32 %v2359, %v2422
        %v2488 = vmul.f32 %v2360, %v2427
        %v2489 = vmul.f32 %v2361, %v2432
        %v2490 = vmul.f32 %v2362, %v2437
        %v2491 = vmul.f32 %v2363, %v2442
        %v2492 = vmul.f32 %v2364, %v2447
        %v2493 = vmul.f32 %v2365, %v2452
        %v2494 = vmul.f32 %v2366, %v2457
        %v2495 = vmul.f32 %v2367, %v2462
        %v2496 = vmul.f32 %v2368, %v2467
        %v2497 = vmul.f32 %v2369, %v2472
        %v2498 = vmul.f32 %v2370, %v2477
        %v2499 = vmul.f32 %v2371, %v2482
        %v2500 = vsel %vm1149, %v2484, 0.0
        %v2501 = vsel %vm1149, %v2485, 0.0
        %v2502 = vadd.f32 %v2500, %v2501
        %v2503 = vsel %vm1149, %v2486, 0.0
        %v2504 = vadd.f32 %v2502, %v2503
        %v2505 = vsel %vm1149, %v2487, 0.0
        %v2506 = vadd.f32 %v2504, %v2505
        %v2507 = vsel %vm1149, %v2488, 0.0
        %v2508 = vadd.f32 %v2506, %v2507
        %v2509 = vsel %vm1149, %v2489, 0.0
        %v2510 = vadd.f32 %v2508, %v2509
        %v2511 = vsel %vm1149, %v2490, 0.0
        %v2512 = vadd.f32 %v2510, %v2511
        %v2513 = vsel %vm1149, %v2491, 0.0
        %v2514 = vadd.f32 %v2512, %v2513
        %v2515 = vsel %vm1149, %v2492, 0.0
        %v2516 = vadd.f32 %v2514, %v2515
        %v2517 = vsel %vm1149, %v2493, 0.0
        %v2518 = vadd.f32 %v2516, %v2517
        %v2519 = vsel %vm1149, %v2494, 0.0
        %v2520 = vadd.f32 %v2518, %v2519
        %v2521 = vsel %vm1149, %v2495, 0.0
        %v2522 = vadd.f32 %v2520, %v2521
        %v2523 = vsel %vm1149, %v2496, 0.0
        %v2524 = vadd.f32 %v2522, %v2523
        %v2525 = vsel %vm1149, %v2497, 0.0
        %v2526 = vadd.f32 %v2524, %v2525
        %v2527 = vsel %vm1149, %v2498, 0.0
        %v2528 = vadd.f32 %v2526, %v2527
        %v2529 = vsel %vm1149, %v2499, 0.0
        %v2530 = vadd.f32 %v2528, %v2529
        %v2531 = vrot.slane %v2530, 4
        %v2532 = vadd.f32 %v2530, %v2531
        %v2533 = vrot.slane %v2532, 2
        %v2534 = vadd.f32 %v2532, %v2533
        %v2535 = vrot.slane %v2534, 1
        %v2536 = vadd.f32 %v2534, %v2535
        %v2537 = vadd.f32 %v2536, 0.0
        %v2538 = vld [vmem:[#allocation2 + $0x40] sm:$0xc]
        %v2539 = vld [vmem:[#allocation2 + $0x44] sm:$0xf]
        %v2540 = vld [vmem:[#allocation2 + $0x48] sm:$0xf]
        %v2541 = vld [vmem:[#allocation2 + $0x4c] sm:$0xf]
        %v2542 = vld [vmem:[#allocation2 + $0x50] sm:$0xf]
        %v2543 = vld [vmem:[#allocation2 + $0x54] sm:$0xf]
        %v2544 = vld [vmem:[#allocation2 + $0x58] sm:$0xf]
        %v2545 = vld [vmem:[#allocation2 + $0x5c] sm:$0xf]
        %v2546 = vld [vmem:[#allocation2 + $0x60] sm:$0xf]
        %v2547 = vld [vmem:[#allocation2 + $0x64] sm:$0xf]
        %v2548 = vld [vmem:[#allocation2 + $0x68] sm:$0xf]
        %v2549 = vld [vmem:[#allocation2 + $0x6c] sm:$0xf]
        %v2550 = vld [vmem:[#allocation2 + $0x70] sm:$0xf]
        %v2551 = vld [vmem:[#allocation2 + $0x74] sm:$0xf]
        %v2552 = vld [vmem:[#allocation2 + $0x78] sm:$0xf]
        %v2553 = vld [vmem:[#allocation2 + $0x7c] sm:$0xf]
        %v2554 = vld [vmem:[#allocation2 + $0x80] sm:$0x7]
        %v2555 = vld [vmem:[#allocation2 + $0x40] sm:$0x8]
        %v2556 = vld [vmem:[#allocation2 + $0x80] sm:$0xf]
        %v2574 = vunpack.c.l.b16 %v2538
        %v2575 = vunpack.c.l.b16 %v2539
        %v2576 = vunpack.c.l.b16 %v2540
        %v2577 = vunpack.c.l.b16 %v2541
        %v2578 = vunpack.c.l.b16 %v2542
        %v2579 = vunpack.c.l.b16 %v2543
        %v2580 = vunpack.c.l.b16 %v2544
        %v2581 = vunpack.c.l.b16 %v2545
        %v2582 = vunpack.c.l.b16 %v2546
        %v2583 = vunpack.c.l.b16 %v2547
        %v2584 = vunpack.c.l.b16 %v2548
        %v2585 = vunpack.c.l.b16 %v2549
        %v2586 = vunpack.c.l.b16 %v2550
        %v2587 = vunpack.c.l.b16 %v2551
        %v2588 = vunpack.c.l.b16 %v2552
        %v2589 = vunpack.c.l.b16 %v2553
        %v2590 = vunpack.c.l.b16 %v2554
        %v2591 = vpack.c.b16 %v2575, %v2574
        %v2592 = vpack.c.b16 %v2577, %v2576
        %v2593 = vpack.c.b16 %v2579, %v2578
        %v2594 = vpack.c.b16 %v2581, %v2580
        %v2595 = vpack.c.b16 %v2583, %v2582
        %v2596 = vpack.c.b16 %v2585, %v2584
        %v2597 = vpack.c.b16 %v2587, %v2586
        %v2598 = vpack.c.b16 %v2589, %v2588
        %v2599 = vpack.c.b16 %v2590, %v2590
        %v2601 = vunpack.c.l.b16 %v2555
        %v2602 = vpack.c.b16 %v2575, %v2601
        %v2604 = vshrl.u32 %v2602, 16
        %v2606 = vshll.u32 %v2602, 16
        %v2608 = vrot.slane %v2606, 1
        %v2609 = vor.u32 %v2604, %v2608
        %v2611 = vshll.u32 %v2592, 16
        %v2613 = vrot.slane %v2611, 1
        %v2614 = vsel %vm1020, %v2609, %v2613
        %v2615 = vshrl.u32 %v2592, 16
        %v2617 = vor.u32 %v2615, %v2613
        %v2619 = vshll.u32 %v2593, 16
        %v2621 = vrot.slane %v2619, 1
        %v2622 = vsel %vm1020, %v2617, %v2621
        %v2623 = vshrl.u32 %v2593, 16
        %v2625 = vor.u32 %v2623, %v2621
        %v2627 = vshll.u32 %v2594, 16
        %v2629 = vrot.slane %v2627, 1
        %v2630 = vsel %vm1020, %v2625, %v2629
        %v2631 = vshrl.u32 %v2594, 16
        %v2633 = vor.u32 %v2631, %v2629
        %v2635 = vshll.u32 %v2595, 16
        %v2637 = vrot.slane %v2635, 1
        %v2638 = vsel %vm1020, %v2633, %v2637
        %v2639 = vshrl.u32 %v2595, 16
        %v2641 = vor.u32 %v2639, %v2637
        %v2643 = vshll.u32 %v2596, 16
        %v2645 = vrot.slane %v2643, 1
        %v2646 = vsel %vm1020, %v2641, %v2645
        %v2647 = vshrl.u32 %v2596, 16
        %v2649 = vor.u32 %v2647, %v2645
        %v2651 = vshll.u32 %v2597, 16
        %v2653 = vrot.slane %v2651, 1
        %v2654 = vsel %vm1020, %v2649, %v2653
        %v2655 = vshrl.u32 %v2597, 16
        %v2657 = vor.u32 %v2655, %v2653
        %v2659 = vshll.u32 %v2598, 16
        %v2661 = vrot.slane %v2659, 1
        %v2662 = vsel %vm1020, %v2657, %v2661
        %v2663 = vshrl.u32 %v2598, 16
        %v2665 = vor.u32 %v2663, %v2661
        %v2667 = vshll.u32 %v2599, 16
        %v2669 = vrot.slane %v2667, 1
        %v2670 = vsel %vm1020, %v2665, %v2669
        %v2671 = vshrl.u32 %v2599, 16
        %v2673 = vor.u32 %v2671, %v2669
        %2674 = vrot.lane.b32.xlu0 %v2614, 32
        %v2675 = vpop.permute.xlu0 %2674
        %2676 = vrot.lane.b32.xlu0 %v2622, 32
        %v2677 = vpop.permute.xlu0 %2676
        %2678 = vrot.lane.b32.xlu0 %v2630, 32
        %v2679 = vpop.permute.xlu0 %2678
        %2680 = vrot.lane.b32.xlu0 %v2638, 32
        %v2681 = vpop.permute.xlu0 %2680
        %2682 = vrot.lane.b32.xlu0 %v2646, 32
        %v2683 = vpop.permute.xlu0 %2682
        %2684 = vrot.lane.b32.xlu0 %v2654, 32
        %v2685 = vpop.permute.xlu0 %2684
        %2686 = vrot.lane.b32.xlu0 %v2662, 32
        %v2687 = vpop.permute.xlu0 %2686
        %2688 = vrot.lane.b32.xlu0 %v2670, 32
        %v2689 = vpop.permute.xlu0 %2688
        %2690 = vrot.lane.b32.xlu0 %v2673, 32
        %v2691 = vpop.permute.xlu0 %2690
        %v2693 = vunpack.c.l.b16 %v2556
        %v2694 = vpack.c.b16 %v2693, %v2693
        %v2695 = vrot.slane %v2602, 1
        %v2696 = vrot.slane %v2592, 1
        %v2697 = vsel %vm1113, %v2695, %v2696
        %v2698 = vrot.slane %v2593, 1
        %v2699 = vsel %vm1113, %v2696, %v2698
        %v2700 = vrot.slane %v2594, 1
        %v2701 = vsel %vm1113, %v2698, %v2700
        %v2702 = vrot.slane %v2595, 1
        %v2703 = vsel %vm1113, %v2700, %v2702
        %v2704 = vrot.slane %v2596, 1
        %v2705 = vsel %vm1113, %v2702, %v2704
        %v2706 = vrot.slane %v2597, 1
        %v2707 = vsel %vm1113, %v2704, %v2706
        %v2708 = vrot.slane %v2598, 1
        %v2709 = vsel %vm1113, %v2706, %v2708
        %v2710 = vrot.slane %v2694, 1
        %v2711 = vsel %vm1113, %v2708, %v2710
        %2712 = vrot.lane.b32.xlu0 %v2697, 64
        %v2713 = vpop.permute.xlu0 %2712
        %2714 = vrot.lane.b32.xlu0 %v2699, 64
        %v2715 = vpop.permute.xlu0 %2714
        %2716 = vrot.lane.b32.xlu0 %v2701, 64
        %v2717 = vpop.permute.xlu0 %2716
        %2718 = vrot.lane.b32.xlu0 %v2703, 64
        %v2719 = vpop.permute.xlu0 %2718
        %2720 = vrot.lane.b32.xlu0 %v2705, 64
        %v2721 = vpop.permute.xlu0 %2720
        %2722 = vrot.lane.b32.xlu0 %v2707, 64
        %v2723 = vpop.permute.xlu0 %2722
        %2724 = vrot.lane.b32.xlu0 %v2709, 64
        %v2725 = vpop.permute.xlu0 %2724
        %2726 = vrot.lane.b32.xlu0 %v2711, 64
        %v2727 = vpop.permute.xlu0 %2726
        %2728 = vrot.lane.b32.xlu0 %v2710, 64
        %v2729 = vpop.permute.xlu0 %2728
        %v2732 = vsel %vm1149, %v2591, %v2675
        %v2734 = vsel %vm1149, %v2592, %v2677
        %v2736 = vsel %vm1149, %v2593, %v2679
        %v2738 = vsel %vm1149, %v2594, %v2681
        %v2740 = vsel %vm1149, %v2595, %v2683
        %v2742 = vsel %vm1149, %v2596, %v2685
        %v2744 = vsel %vm1149, %v2597, %v2687
        %v2746 = vsel %vm1149, %v2598, %v2689
        %v2748 = vsel %vm1149, %v2599, %v2691
        %v2750 = vsel %vm1169, %v2732, %v2713
        %v2752 = vsel %vm1169, %v2734, %v2715
        %v2754 = vsel %vm1169, %v2736, %v2717
        %v2756 = vsel %vm1169, %v2738, %v2719
        %v2758 = vsel %vm1169, %v2740, %v2721
        %v2760 = vsel %vm1169, %v2742, %v2723
        %v2762 = vsel %vm1169, %v2744, %v2725
        %v2764 = vsel %vm1169, %v2746, %v2727
        %v2766 = vsel %vm1169, %v2748, %v2729
        %v2767 = vld [vmem:[#allocation2 + $0x48] sm:$0x8]
        %v2768 = vld [vmem:[#allocation2 + $0x84] sm:$0xf]
        %v2769 = vld [vmem:[#allocation2 + $0x88] sm:$0xf]
        %v2770 = vld [vmem:[#allocation2 + $0x8c] sm:$0x1]
        %v2774 = vunpack.c.l.b16 %v2767
        %v2775 = vunpack.c.l.b16 %v2768
        %v2776 = vunpack.c.l.b16 %v2769
        %v2777 = vpack.c.b16 %v2577, %v2774
        %v2778 = vpack.c.b16 %v2775, %v2693
        %v2779 = vpack.c.b16 %v2776, %v2776
        %v2780 = vpack.c.b16 %v2578, %v2577
        %v2781 = vpack.c.b16 %v2580, %v2579
        %v2782 = vpack.c.b16 %v2582, %v2581
        %v2783 = vpack.c.b16 %v2584, %v2583
        %v2784 = vpack.c.b16 %v2586, %v2585
        %v2785 = vpack.c.b16 %v2588, %v2587
        %v2786 = vpack.c.b16 %v2693, %v2589
        %v2787 = vpack.c.b16 %v2776, %v2775
        %v2789 = vshrl.u32 %v2780, 16
        %v2791 = vrot.slane %v2789, 4
        %v2792 = vshll.u32 %v2780, 16
        %v2794 = vrot.slane %v2792, 5
        %v2795 = vor.u32 %v2791, %v2794
        %v2797 = vshrl.u32 %v2781, 16
        %v2799 = vrot.slane %v2797, 4
        %v2800 = vshll.u32 %v2781, 16
        %v2802 = vrot.slane %v2800, 5
        %v2803 = vor.u32 %v2799, %v2802
        %v2804 = vsel %vm1221, %v2795, %v2803
        %v2806 = vshrl.u32 %v2782, 16
        %v2808 = vrot.slane %v2806, 4
        %v2809 = vshll.u32 %v2782, 16
        %v2811 = vrot.slane %v2809, 5
        %v2812 = vor.u32 %v2808, %v2811
        %v2813 = vsel %vm1221, %v2803, %v2812
        %v2815 = vshrl.u32 %v2783, 16
        %v2817 = vrot.slane %v2815, 4
        %v2818 = vshll.u32 %v2783, 16
        %v2820 = vrot.slane %v2818, 5
        %v2821 = vor.u32 %v2817, %v2820
        %v2822 = vsel %vm1221, %v2812, %v2821
        %v2824 = vshrl.u32 %v2784, 16
        %v2826 = vrot.slane %v2824, 4
        %v2827 = vshll.u32 %v2784, 16
        %v2829 = vrot.slane %v2827, 5
        %v2830 = vor.u32 %v2826, %v2829
        %v2831 = vsel %vm1221, %v2821, %v2830
        %v2833 = vshrl.u32 %v2785, 16
        %v2835 = vrot.slane %v2833, 4
        %v2836 = vshll.u32 %v2785, 16
        %v2838 = vrot.slane %v2836, 5
        %v2839 = vor.u32 %v2835, %v2838
        %v2840 = vsel %vm1221, %v2830, %v2839
        %v2842 = vshrl.u32 %v2786, 16
        %v2844 = vrot.slane %v2842, 4
        %v2845 = vshll.u32 %v2786, 16
        %v2847 = vrot.slane %v2845, 5
        %v2848 = vor.u32 %v2844, %v2847
        %v2849 = vsel %vm1221, %v2839, %v2848
        %v2851 = vshrl.u32 %v2787, 16
        %v2853 = vrot.slane %v2851, 4
        %v2854 = vshll.u32 %v2787, 16
        %v2856 = vrot.slane %v2854, 5
        %v2857 = vor.u32 %v2853, %v2856
        %v2858 = vsel %vm1221, %v2848, %v2857
        %2859 = vrot.lane.b32.xlu0 %v2795, 32
        %v2860 = vpop.permute.xlu0 %2859
        %2861 = vrot.lane.b32.xlu0 %v2804, 32
        %v2862 = vpop.permute.xlu0 %2861
        %2863 = vrot.lane.b32.xlu0 %v2813, 32
        %v2864 = vpop.permute.xlu0 %2863
        %2865 = vrot.lane.b32.xlu0 %v2822, 32
        %v2866 = vpop.permute.xlu0 %2865
        %2867 = vrot.lane.b32.xlu0 %v2831, 32
        %v2868 = vpop.permute.xlu0 %2867
        %2869 = vrot.lane.b32.xlu0 %v2840, 32
        %v2870 = vpop.permute.xlu0 %2869
        %2871 = vrot.lane.b32.xlu0 %v2849, 32
        %v2872 = vpop.permute.xlu0 %2871
        %2873 = vrot.lane.b32.xlu0 %v2858, 32
        %v2874 = vpop.permute.xlu0 %2873
        %2875 = vrot.lane.b32.xlu0 %v2857, 32
        %v2876 = vpop.permute.xlu0 %2875
        %v2878 = vunpack.c.l.b16 %v2770
        %v2879 = vpack.c.b16 %v2878, %v2878
        %v2880 = vrot.slane %v2780, 5
        %v2881 = vrot.slane %v2781, 5
        %v2882 = vsel %vm1314, %v2880, %v2881
        %v2883 = vrot.slane %v2782, 5
        %v2884 = vsel %vm1314, %v2881, %v2883
        %v2885 = vrot.slane %v2783, 5
        %v2886 = vsel %vm1314, %v2883, %v2885
        %v2887 = vrot.slane %v2784, 5
        %v2888 = vsel %vm1314, %v2885, %v2887
        %v2889 = vrot.slane %v2785, 5
        %v2890 = vsel %vm1314, %v2887, %v2889
        %v2891 = vrot.slane %v2786, 5
        %v2892 = vsel %vm1314, %v2889, %v2891
        %v2893 = vrot.slane %v2787, 5
        %v2894 = vsel %vm1314, %v2891, %v2893
        %v2895 = vrot.slane %v2879, 5
        %v2896 = vsel %vm1314, %v2893, %v2895
        %2897 = vrot.lane.b32.xlu0 %v2880, 64
        %v2898 = vpop.permute.xlu0 %2897
        %2899 = vrot.lane.b32.xlu0 %v2882, 64
        %v2900 = vpop.permute.xlu0 %2899
        %2901 = vrot.lane.b32.xlu0 %v2884, 64
        %v2902 = vpop.permute.xlu0 %2901
        %2903 = vrot.lane.b32.xlu0 %v2886, 64
        %v2904 = vpop.permute.xlu0 %2903
        %2905 = vrot.lane.b32.xlu0 %v2888, 64
        %v2906 = vpop.permute.xlu0 %2905
        %2907 = vrot.lane.b32.xlu0 %v2890, 64
        %v2908 = vpop.permute.xlu0 %2907
        %2909 = vrot.lane.b32.xlu0 %v2892, 64
        %v2910 = vpop.permute.xlu0 %2909
        %2911 = vrot.lane.b32.xlu0 %v2894, 64
        %v2912 = vpop.permute.xlu0 %2911
        %2913 = vrot.lane.b32.xlu0 %v2896, 64
        %v2914 = vpop.permute.xlu0 %2913
        %v2917 = vsel %vm1149, %v2777, %v2860
        %v2919 = vsel %vm1149, %v2593, %v2862
        %v2921 = vsel %vm1149, %v2594, %v2864
        %v2923 = vsel %vm1149, %v2595, %v2866
        %v2925 = vsel %vm1149, %v2596, %v2868
        %v2927 = vsel %vm1149, %v2597, %v2870
        %v2929 = vsel %vm1149, %v2598, %v2872
        %v2932 = vsel %vm1149, %v2778, %v2874
        %v2935 = vsel %vm1149, %v2779, %v2876
        %v2937 = vsel %vm1169, %v2917, %v2898
        %v2939 = vsel %vm1169, %v2919, %v2900
        %v2941 = vsel %vm1169, %v2921, %v2902
        %v2943 = vsel %vm1169, %v2923, %v2904
        %v2945 = vsel %vm1169, %v2925, %v2906
        %v2947 = vsel %vm1169, %v2927, %v2908
        %v2949 = vsel %vm1169, %v2929, %v2910
        %v2951 = vsel %vm1169, %v2932, %v2912
        %v2953 = vsel %vm1169, %v2935, %v2914
        %v2954 = vshrl.u32 %v2937, 16
        %v2956 = vrot.slane %v2954, 3
        %v2957 = vshll.u32 %v2937, 16
        %v2959 = vrot.slane %v2957, 4
        %v2960 = vor.u32 %v2956, %v2959
        %v2961 = vshrl.u32 %v2939, 16
        %v2963 = vrot.slane %v2961, 3
        %v2964 = vshll.u32 %v2939, 16
        %v2966 = vrot.slane %v2964, 4
        %v2967 = vor.u32 %v2963, %v2966
        %v2968 = vsel %vm1402, %v2960, %v2967
        %v2969 = vshrl.u32 %v2941, 16
        %v2971 = vrot.slane %v2969, 3
        %v2972 = vshll.u32 %v2941, 16
        %v2974 = vrot.slane %v2972, 4
        %v2975 = vor.u32 %v2971, %v2974
        %v2976 = vsel %vm1402, %v2967, %v2975
        %v2977 = vshrl.u32 %v2943, 16
        %v2979 = vrot.slane %v2977, 3
        %v2980 = vshll.u32 %v2943, 16
        %v2982 = vrot.slane %v2980, 4
        %v2983 = vor.u32 %v2979, %v2982
        %v2984 = vsel %vm1402, %v2975, %v2983
        %v2985 = vshrl.u32 %v2945, 16
        %v2987 = vrot.slane %v2985, 3
        %v2988 = vshll.u32 %v2945, 16
        %v2990 = vrot.slane %v2988, 4
        %v2991 = vor.u32 %v2987, %v2990
        %v2992 = vsel %vm1402, %v2983, %v2991
        %v2993 = vshrl.u32 %v2947, 16
        %v2995 = vrot.slane %v2993, 3
        %v2996 = vshll.u32 %v2947, 16
        %v2998 = vrot.slane %v2996, 4
        %v2999 = vor.u32 %v2995, %v2998
        %v3000 = vsel %vm1402, %v2991, %v2999
        %v3001 = vshrl.u32 %v2949, 16
        %v3003 = vrot.slane %v3001, 3
        %v3004 = vshll.u32 %v2949, 16
        %v3006 = vrot.slane %v3004, 4
        %v3007 = vor.u32 %v3003, %v3006
        %v3008 = vsel %vm1402, %v2999, %v3007
        %v3009 = vshrl.u32 %v2951, 16
        %v3011 = vrot.slane %v3009, 3
        %v3012 = vshll.u32 %v2951, 16
        %v3014 = vrot.slane %v3012, 4
        %v3015 = vor.u32 %v3011, %v3014
        %v3016 = vsel %vm1402, %v3007, %v3015
        %v3017 = vshrl.u32 %v2953, 16
        %v3019 = vrot.slane %v3017, 3
        %v3020 = vshll.u32 %v2953, 16
        %v3022 = vrot.slane %v3020, 4
        %v3023 = vor.u32 %v3019, %v3022
        %v3024 = vsel %vm1402, %v3015, %v3023
        %v3026 = vsel %vm1510, %v2968, 0
        %v3029 = vsel %vm1510, %v2976, 0
        %v3032 = vsel %vm1510, %v2984, 0
        %v3035 = vsel %vm1510, %v2992, 0
        %v3038 = vsel %vm1510, %v3000, 0
        %v3041 = vsel %vm1510, %v3008, 0
        %v3044 = vsel %vm1510, %v3016, 0
        %v3047 = vsel %vm1510, %v3024, 0
        %3049 = vmatprep.subr.bf16.mxu0 0
        %3050 = vmatpush1.bf16.msra.mxu0 0
        %3051 = vmatprep.subr.bf16.mxu0 0
        %3052 = vmatpush1.bf16.msra.mxu0 0
        %3053 = vmatprep.subr.bf16.mxu0 0
        %3054 = vmatpush1.bf16.msra.mxu0 %v1503
        %3055 = vmatprep.subr.bf16.mxu0 0
        %3056 = vmatpush1.bf16.msra.mxu0 %v1502
        %3057 = vmatprep.subr.bf16.mxu0 0
        %3058 = vmatpush1.bf16.msra.mxu0 %v1501
        %3059 = vmatprep.subr.bf16.mxu0 0
        %3060 = vmatpush1.bf16.msra.mxu0 %v1500
        %3061 = vmatprep.subr.bf16.mxu0 0
        %3062 = vmatpush1.bf16.msra.mxu0 %v1499
        %3063 = vmatprep.subr.bf16.mxu0 0
        %3064 = vmatpush1.bf16.msra.mxu0 %v1498
        %3065 = vmatprep.subr.bf16.mxu0 0
        %3066 = vmatpush2.bf16.msra.mxu0 0
        %3067 = vmatprep.subr.bf16.mxu0 0
        %3068 = vmatpush2.bf16.msra.mxu0 0
        %3069 = vmatprep.subr.bf16.mxu0 0
        %3070 = vmatpush2.bf16.msra.mxu0 0
        %3071 = vmatprep.subr.bf16.mxu0 0
        %3072 = vmatpush2.bf16.msra.mxu0 0
        %3073 = vmatprep.subr.bf16.mxu0 0
        %3074 = vmatpush2.bf16.msra.mxu0 0
        %3075 = vmatprep.subr.bf16.mxu0 0
        %3076 = vmatpush2.bf16.msra.mxu0 0
        %3077 = vmatprep.subr.bf16.mxu0 0
        %3078 = vmatpush2.bf16.msra.mxu0 0
        %3079 = vmatprep.subr.bf16.mxu0 0
        %3080 = vmatpush2.bf16.msra.mxu0 0
        %3081 = vmatprep.mubr.bf16.mxu0 0
        %3082 = vmatmul.mubr.bf16.gmra.mxu0 %v3026
        %v3083 = vpop.f32.mrf.mxu0
        %v3084 = vadd.f32 0.0, %v3083
        %v3085 = vpop.f32.mrf.mxu0
        %v3086 = vpop.f32.mrf.mxu0
        %v3087 = vadd.f32 0.0, %v3086
        %v3088 = vpop.f32.mrf.mxu0
        %3089 = vmatprep.mubr.bf16.mxu0 0
        %3090 = vmatmul.mubr.bf16.gmra.mxu0 %v3029
        %v3091 = vpop.f32.mrf.mxu0
        %v3092 = vadd.f32 0.0, %v3091
        %v3093 = vpop.f32.mrf.mxu0
        %v3094 = vpop.f32.mrf.mxu0
        %v3095 = vadd.f32 0.0, %v3094
        %v3096 = vpop.f32.mrf.mxu0
        %3097 = vmatprep.mubr.bf16.mxu0 0
        %3098 = vmatmul.mubr.bf16.gmra.mxu0 %v3032
        %v3099 = vpop.f32.mrf.mxu0
        %v3100 = vadd.f32 0.0, %v3099
        %v3101 = vpop.f32.mrf.mxu0
        %v3102 = vpop.f32.mrf.mxu0
        %v3103 = vadd.f32 0.0, %v3102
        %v3104 = vpop.f32.mrf.mxu0
        %3105 = vmatprep.mubr.bf16.mxu0 0
        %3106 = vmatmul.mubr.bf16.gmra.mxu0 %v3035
        %v3107 = vpop.f32.mrf.mxu0
        %v3108 = vadd.f32 0.0, %v3107
        %v3109 = vpop.f32.mrf.mxu0
        %v3110 = vpop.f32.mrf.mxu0
        %v3111 = vadd.f32 0.0, %v3110
        %v3112 = vpop.f32.mrf.mxu0
        %3113 = vmatprep.mubr.bf16.mxu0 0
        %3114 = vmatmul.mubr.bf16.gmra.mxu0 %v3038
        %v3115 = vpop.f32.mrf.mxu0
        %v3116 = vadd.f32 0.0, %v3115
        %v3117 = vpop.f32.mrf.mxu0
        %v3118 = vpop.f32.mrf.mxu0
        %v3119 = vadd.f32 0.0, %v3118
        %v3120 = vpop.f32.mrf.mxu0
        %3121 = vmatprep.mubr.bf16.mxu0 0
        %3122 = vmatmul.mubr.bf16.gmra.mxu0 %v3041
        %v3123 = vpop.f32.mrf.mxu0
        %v3124 = vadd.f32 0.0, %v3123
        %v3125 = vpop.f32.mrf.mxu0
        %v3126 = vpop.f32.mrf.mxu0
        %v3127 = vadd.f32 0.0, %v3126
        %v3128 = vpop.f32.mrf.mxu0
        %3129 = vmatprep.mubr.bf16.mxu0 0
        %3130 = vmatmul.mubr.bf16.gmra.mxu0 %v3044
        %v3131 = vpop.f32.mrf.mxu0
        %v3132 = vadd.f32 0.0, %v3131
        %v3133 = vpop.f32.mrf.mxu0
        %v3134 = vpop.f32.mrf.mxu0
        %v3135 = vadd.f32 0.0, %v3134
        %v3136 = vpop.f32.mrf.mxu0
        %3137 = vmatprep.mubr.bf16.mxu0 0
        %3138 = vmatmul.mubr.bf16.gmra.mxu0 %v3047
        %v3139 = vpop.f32.mrf.mxu0
        %v3140 = vadd.f32 0.0, %v3139
        %v3141 = vpop.f32.mrf.mxu0
        %v3142 = vpop.f32.mrf.mxu0
        %v3143 = vadd.f32 0.0, %v3142
        %v3144 = vpop.f32.mrf.mxu0
        %3145 = vdwg.mxu0
        %v3146 = vshrl.u32 %v2750, 16
        %v3148 = vrot.slane %v3146, 2
        %v3149 = vshll.u32 %v2750, 16
        %v3151 = vrot.slane %v3149, 3
        %v3152 = vor.u32 %v3148, %v3151
        %v3153 = vshrl.u32 %v2752, 16
        %v3155 = vrot.slane %v3153, 2
        %v3156 = vshll.u32 %v2752, 16
        %v3158 = vrot.slane %v3156, 3
        %v3159 = vor.u32 %v3155, %v3158
        %v3160 = vsel %vm1632, %v3152, %v3159
        %v3161 = vshrl.u32 %v2754, 16
        %v3163 = vrot.slane %v3161, 2
        %v3164 = vshll.u32 %v2754, 16
        %v3166 = vrot.slane %v3164, 3
        %v3167 = vor.u32 %v3163, %v3166
        %v3168 = vsel %vm1632, %v3159, %v3167
        %v3169 = vshrl.u32 %v2756, 16
        %v3171 = vrot.slane %v3169, 2
        %v3172 = vshll.u32 %v2756, 16
        %v3174 = vrot.slane %v3172, 3
        %v3175 = vor.u32 %v3171, %v3174
        %v3176 = vsel %vm1632, %v3167, %v3175
        %v3177 = vshrl.u32 %v2758, 16
        %v3179 = vrot.slane %v3177, 2
        %v3180 = vshll.u32 %v2758, 16
        %v3182 = vrot.slane %v3180, 3
        %v3183 = vor.u32 %v3179, %v3182
        %v3184 = vsel %vm1632, %v3175, %v3183
        %v3185 = vshrl.u32 %v2760, 16
        %v3187 = vrot.slane %v3185, 2
        %v3188 = vshll.u32 %v2760, 16
        %v3190 = vrot.slane %v3188, 3
        %v3191 = vor.u32 %v3187, %v3190
        %v3192 = vsel %vm1632, %v3183, %v3191
        %v3193 = vshrl.u32 %v2762, 16
        %v3195 = vrot.slane %v3193, 2
        %v3196 = vshll.u32 %v2762, 16
        %v3198 = vrot.slane %v3196, 3
        %v3199 = vor.u32 %v3195, %v3198
        %v3200 = vsel %vm1632, %v3191, %v3199
        %v3201 = vshrl.u32 %v2764, 16
        %v3203 = vrot.slane %v3201, 2
        %v3204 = vshll.u32 %v2764, 16
        %v3206 = vrot.slane %v3204, 3
        %v3207 = vor.u32 %v3203, %v3206
        %v3208 = vsel %vm1632, %v3199, %v3207
        %v3209 = vshrl.u32 %v2766, 16
        %v3211 = vrot.slane %v3209, 2
        %v3212 = vshll.u32 %v2766, 16
        %v3214 = vrot.slane %v3212, 3
        %v3215 = vor.u32 %v3211, %v3214
        %v3216 = vsel %vm1632, %v3207, %v3215
        %v3218 = vsel %vm1510, %v3160, 0
        %v3221 = vsel %vm1510, %v3168, 0
        %v3224 = vsel %vm1510, %v3176, 0
        %v3227 = vsel %vm1510, %v3184, 0
        %v3230 = vsel %vm1510, %v3192, 0
        %v3233 = vsel %vm1510, %v3200, 0
        %v3236 = vsel %vm1510, %v3208, 0
        %v3239 = vsel %vm1510, %v3216, 0
        %3241 = vmatprep.subr.bf16.mxu0 0
        %3242 = vmatpush1.bf16.msra.mxu0 0
        %3243 = vmatprep.subr.bf16.mxu0 0
        %3244 = vmatpush1.bf16.msra.mxu0 0
        %3245 = vmatprep.subr.bf16.mxu0 0
        %3246 = vmatpush1.bf16.msra.mxu0 %v1733
        %3247 = vmatprep.subr.bf16.mxu0 0
        %3248 = vmatpush1.bf16.msra.mxu0 %v1732
        %3249 = vmatprep.subr.bf16.mxu0 0
        %3250 = vmatpush1.bf16.msra.mxu0 %v1731
        %3251 = vmatprep.subr.bf16.mxu0 0
        %3252 = vmatpush1.bf16.msra.mxu0 %v1730
        %3253 = vmatprep.subr.bf16.mxu0 0
        %3254 = vmatpush1.bf16.msra.mxu0 %v1729
        %3255 = vmatprep.subr.bf16.mxu0 0
        %3256 = vmatpush1.bf16.msra.mxu0 %v1728
        %3257 = vmatprep.subr.bf16.mxu0 0
        %3258 = vmatpush2.bf16.msra.mxu0 0
        %3259 = vmatprep.subr.bf16.mxu0 0
        %3260 = vmatpush2.bf16.msra.mxu0 0
        %3261 = vmatprep.subr.bf16.mxu0 0
        %3262 = vmatpush2.bf16.msra.mxu0 0
        %3263 = vmatprep.subr.bf16.mxu0 0
        %3264 = vmatpush2.bf16.msra.mxu0 0
        %3265 = vmatprep.subr.bf16.mxu0 0
        %3266 = vmatpush2.bf16.msra.mxu0 0
        %3267 = vmatprep.subr.bf16.mxu0 0
        %3268 = vmatpush2.bf16.msra.mxu0 0
        %3269 = vmatprep.subr.bf16.mxu0 0
        %3270 = vmatpush2.bf16.msra.mxu0 0
        %3271 = vmatprep.subr.bf16.mxu0 0
        %3272 = vmatpush2.bf16.msra.mxu0 0
        %3273 = vmatprep.mubr.bf16.mxu0 0
        %3274 = vmatmul.mubr.bf16.gmra.mxu0 %v3218
        %v3275 = vpop.f32.mrf.mxu0
        %v3276 = vadd.f32 %v3084, %v3275
        %v3277 = vpop.f32.mrf.mxu0
        %v3278 = vpop.f32.mrf.mxu0
        %v3279 = vadd.f32 %v3087, %v3278
        %v3280 = vpop.f32.mrf.mxu0
        %3281 = vmatprep.mubr.bf16.mxu0 0
        %3282 = vmatmul.mubr.bf16.gmra.mxu0 %v3221
        %v3283 = vpop.f32.mrf.mxu0
        %v3284 = vadd.f32 %v3092, %v3283
        %v3285 = vpop.f32.mrf.mxu0
        %v3286 = vpop.f32.mrf.mxu0
        %v3287 = vadd.f32 %v3095, %v3286
        %v3288 = vpop.f32.mrf.mxu0
        %3289 = vmatprep.mubr.bf16.mxu0 0
        %3290 = vmatmul.mubr.bf16.gmra.mxu0 %v3224
        %v3291 = vpop.f32.mrf.mxu0
        %v3292 = vadd.f32 %v3100, %v3291
        %v3293 = vpop.f32.mrf.mxu0
        %v3294 = vpop.f32.mrf.mxu0
        %v3295 = vadd.f32 %v3103, %v3294
        %v3296 = vpop.f32.mrf.mxu0
        %3297 = vmatprep.mubr.bf16.mxu0 0
        %3298 = vmatmul.mubr.bf16.gmra.mxu0 %v3227
        %v3299 = vpop.f32.mrf.mxu0
        %v3300 = vadd.f32 %v3108, %v3299
        %v3301 = vpop.f32.mrf.mxu0
        %v3302 = vpop.f32.mrf.mxu0
        %v3303 = vadd.f32 %v3111, %v3302
        %v3304 = vpop.f32.mrf.mxu0
        %3305 = vmatprep.mubr.bf16.mxu0 0
        %3306 = vmatmul.mubr.bf16.gmra.mxu0 %v3230
        %v3307 = vpop.f32.mrf.mxu0
        %v3308 = vadd.f32 %v3116, %v3307
        %v3309 = vpop.f32.mrf.mxu0
        %v3310 = vpop.f32.mrf.mxu0
        %v3311 = vadd.f32 %v3119, %v3310
        %v3312 = vpop.f32.mrf.mxu0
        %3313 = vmatprep.mubr.bf16.mxu0 0
        %3314 = vmatmul.mubr.bf16.gmra.mxu0 %v3233
        %v3315 = vpop.f32.mrf.mxu0
        %v3316 = vadd.f32 %v3124, %v3315
        %v3317 = vpop.f32.mrf.mxu0
        %v3318 = vpop.f32.mrf.mxu0
        %v3319 = vadd.f32 %v3127, %v3318
        %v3320 = vpop.f32.mrf.mxu0
        %3321 = vmatprep.mubr.bf16.mxu0 0
        %3322 = vmatmul.mubr.bf16.gmra.mxu0 %v3236
        %v3323 = vpop.f32.mrf.mxu0
        %v3324 = vadd.f32 %v3132, %v3323
        %v3325 = vpop.f32.mrf.mxu0
        %v3326 = vpop.f32.mrf.mxu0
        %v3327 = vadd.f32 %v3135, %v3326
        %v3328 = vpop.f32.mrf.mxu0
        %3329 = vmatprep.mubr.bf16.mxu0 0
        %3330 = vmatmul.mubr.bf16.gmra.mxu0 %v3239
        %v3331 = vpop.f32.mrf.mxu0
        %v3332 = vadd.f32 %v3140, %v3331
        %v3333 = vpop.f32.mrf.mxu0
        %v3334 = vpop.f32.mrf.mxu0
        %v3335 = vadd.f32 %v3143, %v3334
        %v3336 = vpop.f32.mrf.mxu0
        %3337 = vdwg.mxu0
        %v3338 = vld [vmem:[#allocation2 + $0x54] sm:$0xf]
        %v3339 = vld [vmem:[#allocation2 + $0x58] sm:$0xf]
        %v3340 = vld [vmem:[#allocation2 + $0x5c] sm:$0xf]
        %v3341 = vld [vmem:[#allocation2 + $0x60] sm:$0xf]
        %v3342 = vld [vmem:[#allocation2 + $0x64] sm:$0xf]
        %v3343 = vld [vmem:[#allocation2 + $0x68] sm:$0xf]
        %v3344 = vld [vmem:[#allocation2 + $0x6c] sm:$0xf]
        %v3345 = vld [vmem:[#allocation2 + $0x70] sm:$0xf]
        %v3346 = vld [vmem:[#allocation2 + $0x74] sm:$0xf]
        %v3347 = vld [vmem:[#allocation2 + $0x78] sm:$0xf]
        %v3348 = vld [vmem:[#allocation2 + $0x7c] sm:$0xf]
        %v3349 = vld [vmem:[#allocation2 + $0x80] sm:$0xf]
        %v3350 = vld [vmem:[#allocation2 + $0x84] sm:$0xf]
        %v3351 = vld [vmem:[#allocation2 + $0x88] sm:$0xf]
        %v3352 = vld [vmem:[#allocation2 + $0x8c] sm:$0xf]
        %v3353 = vld [vmem:[#allocation2 + $0x90] sm:$0xf]
        %v3354 = vld [vmem:[#allocation2 + $0x94] sm:$0x1]
        %v3355 = vld [vmem:[#allocation2 + $0x54] sm:$0xe]
        %v3356 = vld [vmem:[#allocation2 + $0x94] sm:$0x3]
        %v3374 = vunpack.c.l.b16 %v3338
        %v3375 = vunpack.c.l.b16 %v3339
        %v3376 = vunpack.c.l.b16 %v3340
        %v3377 = vunpack.c.l.b16 %v3341
        %v3378 = vunpack.c.l.b16 %v3342
        %v3379 = vunpack.c.l.b16 %v3343
        %v3380 = vunpack.c.l.b16 %v3344
        %v3381 = vunpack.c.l.b16 %v3345
        %v3382 = vunpack.c.l.b16 %v3346
        %v3383 = vunpack.c.l.b16 %v3347
        %v3384 = vunpack.c.l.b16 %v3348
        %v3385 = vunpack.c.l.b16 %v3349
        %v3386 = vunpack.c.l.b16 %v3350
        %v3387 = vunpack.c.l.b16 %v3351
        %v3388 = vunpack.c.l.b16 %v3352
        %v3389 = vunpack.c.l.b16 %v3353
        %v3390 = vunpack.c.l.b16 %v3354
        %v3391 = vpack.c.b16 %v3375, %v3374
        %v3392 = vpack.c.b16 %v3377, %v3376
        %v3393 = vpack.c.b16 %v3379, %v3378
        %v3394 = vpack.c.b16 %v3381, %v3380
        %v3395 = vpack.c.b16 %v3383, %v3382
        %v3396 = vpack.c.b16 %v3385, %v3384
        %v3397 = vpack.c.b16 %v3387, %v3386
        %v3398 = vpack.c.b16 %v3389, %v3388
        %v3399 = vpack.c.b16 %v3390, %v3390
        %v3401 = vunpack.c.l.b16 %v3355
        %v3402 = vpack.c.b16 %v3375, %v3401
        %v3404 = vshrl.u32 %v3402, 16
        %v3406 = vshll.u32 %v3402, 16
        %v3408 = vrot.slane %v3406, 1
        %v3409 = vor.u32 %v3404, %v3408
        %v3411 = vshll.u32 %v3392, 16
        %v3413 = vrot.slane %v3411, 1
        %v3414 = vsel %vm1020, %v3409, %v3413
        %v3415 = vshrl.u32 %v3392, 16
        %v3417 = vor.u32 %v3415, %v3413
        %v3419 = vshll.u32 %v3393, 16
        %v3421 = vrot.slane %v3419, 1
        %v3422 = vsel %vm1020, %v3417, %v3421
        %v3423 = vshrl.u32 %v3393, 16
        %v3425 = vor.u32 %v3423, %v3421
        %v3427 = vshll.u32 %v3394, 16
        %v3429 = vrot.slane %v3427, 1
        %v3430 = vsel %vm1020, %v3425, %v3429
        %v3431 = vshrl.u32 %v3394, 16
        %v3433 = vor.u32 %v3431, %v3429
        %v3435 = vshll.u32 %v3395, 16
        %v3437 = vrot.slane %v3435, 1
        %v3438 = vsel %vm1020, %v3433, %v3437
        %v3439 = vshrl.u32 %v3395, 16
        %v3441 = vor.u32 %v3439, %v3437
        %v3443 = vshll.u32 %v3396, 16
        %v3445 = vrot.slane %v3443, 1
        %v3446 = vsel %vm1020, %v3441, %v3445
        %v3447 = vshrl.u32 %v3396, 16
        %v3449 = vor.u32 %v3447, %v3445
        %v3451 = vshll.u32 %v3397, 16
        %v3453 = vrot.slane %v3451, 1
        %v3454 = vsel %vm1020, %v3449, %v3453
        %v3455 = vshrl.u32 %v3397, 16
        %v3457 = vor.u32 %v3455, %v3453
        %v3459 = vshll.u32 %v3398, 16
        %v3461 = vrot.slane %v3459, 1
        %v3462 = vsel %vm1020, %v3457, %v3461
        %v3463 = vshrl.u32 %v3398, 16
        %v3465 = vor.u32 %v3463, %v3461
        %v3467 = vshll.u32 %v3399, 16
        %v3469 = vrot.slane %v3467, 1
        %v3470 = vsel %vm1020, %v3465, %v3469
        %v3471 = vshrl.u32 %v3399, 16
        %3473 = vrot.lane.b32.xlu0 %v3414, 32
        %v3474 = vpop.permute.xlu0 %3473
        %3475 = vrot.lane.b32.xlu0 %v3422, 32
        %v3476 = vpop.permute.xlu0 %3475
        %3477 = vrot.lane.b32.xlu0 %v3430, 32
        %v3478 = vpop.permute.xlu0 %3477
        %3479 = vrot.lane.b32.xlu0 %v3438, 32
        %v3480 = vpop.permute.xlu0 %3479
        %3481 = vrot.lane.b32.xlu0 %v3446, 32
        %v3482 = vpop.permute.xlu0 %3481
        %3483 = vrot.lane.b32.xlu0 %v3454, 32
        %v3484 = vpop.permute.xlu0 %3483
        %3485 = vrot.lane.b32.xlu0 %v3462, 32
        %v3486 = vpop.permute.xlu0 %3485
        %3487 = vrot.lane.b32.xlu0 %v3470, 32
        %v3488 = vpop.permute.xlu0 %3487
        %3489 = vrot.lane.b32.xlu0 %v3471, 32
        %v3490 = vpop.permute.xlu0 %3489
        %v3492 = vunpack.c.l.b16 %v3356
        %v3493 = vpack.c.b16 %v3492, %v3492
        %v3494 = vrot.slane %v3402, 1
        %v3495 = vrot.slane %v3392, 1
        %v3496 = vsel %vm1113, %v3494, %v3495
        %v3497 = vrot.slane %v3393, 1
        %v3498 = vsel %vm1113, %v3495, %v3497
        %v3499 = vrot.slane %v3394, 1
        %v3500 = vsel %vm1113, %v3497, %v3499
        %v3501 = vrot.slane %v3395, 1
        %v3502 = vsel %vm1113, %v3499, %v3501
        %v3503 = vrot.slane %v3396, 1
        %v3504 = vsel %vm1113, %v3501, %v3503
        %v3505 = vrot.slane %v3397, 1
        %v3506 = vsel %vm1113, %v3503, %v3505
        %v3507 = vrot.slane %v3398, 1
        %v3508 = vsel %vm1113, %v3505, %v3507
        %v3509 = vrot.slane %v3493, 1
        %v3510 = vsel %vm1113, %v3507, %v3509
        %3511 = vrot.lane.b32.xlu0 %v3496, 64
        %v3512 = vpop.permute.xlu0 %3511
        %3513 = vrot.lane.b32.xlu0 %v3498, 64
        %v3514 = vpop.permute.xlu0 %3513
        %3515 = vrot.lane.b32.xlu0 %v3500, 64
        %v3516 = vpop.permute.xlu0 %3515
        %3517 = vrot.lane.b32.xlu0 %v3502, 64
        %v3518 = vpop.permute.xlu0 %3517
        %3519 = vrot.lane.b32.xlu0 %v3504, 64
        %v3520 = vpop.permute.xlu0 %3519
        %3521 = vrot.lane.b32.xlu0 %v3506, 64
        %v3522 = vpop.permute.xlu0 %3521
        %3523 = vrot.lane.b32.xlu0 %v3508, 64
        %v3524 = vpop.permute.xlu0 %3523
        %3525 = vrot.lane.b32.xlu0 %v3510, 64
        %v3526 = vpop.permute.xlu0 %3525
        %3527 = vrot.lane.b32.xlu0 %v3509, 64
        %v3528 = vpop.permute.xlu0 %3527
        %v3531 = vsel %vm1149, %v3391, %v3474
        %v3533 = vsel %vm1149, %v3392, %v3476
        %v3535 = vsel %vm1149, %v3393, %v3478
        %v3537 = vsel %vm1149, %v3394, %v3480
        %v3539 = vsel %vm1149, %v3395, %v3482
        %v3541 = vsel %vm1149, %v3396, %v3484
        %v3543 = vsel %vm1149, %v3397, %v3486
        %v3545 = vsel %vm1149, %v3398, %v3488
        %v3547 = vsel %vm1149, %v3399, %v3490
        %v3549 = vsel %vm1169, %v3531, %v3512
        %v3551 = vsel %vm1169, %v3533, %v3514
        %v3553 = vsel %vm1169, %v3535, %v3516
        %v3555 = vsel %vm1169, %v3537, %v3518
        %v3557 = vsel %vm1169, %v3539, %v3520
        %v3559 = vsel %vm1169, %v3541, %v3522
        %v3561 = vsel %vm1169, %v3543, %v3524
        %v3563 = vsel %vm1169, %v3545, %v3526
        %v3565 = vsel %vm1169, %v3547, %v3528
        %v3566 = vshrl.u32 %v3549, 16
        %v3568 = vshll.u32 %v3549, 16
        %v3570 = vrot.slane %v3568, 1
        %v3571 = vor.u32 %v3566, %v3570
        %v3572 = vshll.u32 %v3551, 16
        %v3574 = vrot.slane %v3572, 1
        %v3575 = vsel %vm1020, %v3571, %v3574
        %v3576 = vshrl.u32 %v3551, 16
        %v3578 = vor.u32 %v3576, %v3574
        %v3579 = vshll.u32 %v3553, 16
        %v3581 = vrot.slane %v3579, 1
        %v3582 = vsel %vm1020, %v3578, %v3581
        %v3583 = vshrl.u32 %v3553, 16
        %v3585 = vor.u32 %v3583, %v3581
        %v3586 = vshll.u32 %v3555, 16
        %v3588 = vrot.slane %v3586, 1
        %v3589 = vsel %vm1020, %v3585, %v3588
        %v3590 = vshrl.u32 %v3555, 16
        %v3592 = vor.u32 %v3590, %v3588
        %v3593 = vshll.u32 %v3557, 16
        %v3595 = vrot.slane %v3593, 1
        %v3596 = vsel %vm1020, %v3592, %v3595
        %v3597 = vshrl.u32 %v3557, 16
        %v3599 = vor.u32 %v3597, %v3595
        %v3600 = vshll.u32 %v3559, 16
        %v3602 = vrot.slane %v3600, 1
        %v3603 = vsel %vm1020, %v3599, %v3602
        %v3604 = vshrl.u32 %v3559, 16
        %v3606 = vor.u32 %v3604, %v3602
        %v3607 = vshll.u32 %v3561, 16
        %v3609 = vrot.slane %v3607, 1
        %v3610 = vsel %vm1020, %v3606, %v3609
        %v3611 = vshrl.u32 %v3561, 16
        %v3613 = vor.u32 %v3611, %v3609
        %v3614 = vshll.u32 %v3563, 16
        %v3616 = vrot.slane %v3614, 1
        %v3617 = vsel %vm1020, %v3613, %v3616
        %v3618 = vshrl.u32 %v3563, 16
        %v3620 = vor.u32 %v3618, %v3616
        %v3621 = vshll.u32 %v3565, 16
        %v3623 = vrot.slane %v3621, 1
        %v3624 = vsel %vm1020, %v3620, %v3623
        %v3626 = vsel %vm1510, %v3575, 0
        %v3629 = vsel %vm1510, %v3582, 0
        %v3632 = vsel %vm1510, %v3589, 0
        %v3635 = vsel %vm1510, %v3596, 0
        %v3638 = vsel %vm1510, %v3603, 0
        %v3641 = vsel %vm1510, %v3610, 0
        %v3644 = vsel %vm1510, %v3617, 0
        %v3647 = vsel %vm1510, %v3624, 0
        %3649 = vmatprep.subr.bf16.mxu0 0
        %3650 = vmatpush1.bf16.msra.mxu0 0
        %3651 = vmatprep.subr.bf16.mxu0 0
        %3652 = vmatpush1.bf16.msra.mxu0 0
        %3653 = vmatprep.subr.bf16.mxu0 0
        %3654 = vmatpush1.bf16.msra.mxu0 %v2190
        %3655 = vmatprep.subr.bf16.mxu0 0
        %3656 = vmatpush1.bf16.msra.mxu0 %v2189
        %3657 = vmatprep.subr.bf16.mxu0 0
        %3658 = vmatpush1.bf16.msra.mxu0 %v2188
        %3659 = vmatprep.subr.bf16.mxu0 0
        %3660 = vmatpush1.bf16.msra.mxu0 %v2187
        %3661 = vmatprep.subr.bf16.mxu0 0
        %3662 = vmatpush1.bf16.msra.mxu0 %v2186
        %3663 = vmatprep.subr.bf16.mxu0 0
        %3664 = vmatpush1.bf16.msra.mxu0 %v2185
        %3665 = vmatprep.subr.bf16.mxu0 0
        %3666 = vmatpush2.bf16.msra.mxu0 0
        %3667 = vmatprep.subr.bf16.mxu0 0
        %3668 = vmatpush2.bf16.msra.mxu0 0
        %3669 = vmatprep.subr.bf16.mxu0 0
        %3670 = vmatpush2.bf16.msra.mxu0 0
        %3671 = vmatprep.subr.bf16.mxu0 0
        %3672 = vmatpush2.bf16.msra.mxu0 0
        %3673 = vmatprep.subr.bf16.mxu0 0
        %3674 = vmatpush2.bf16.msra.mxu0 0
        %3675 = vmatprep.subr.bf16.mxu0 0
        %3676 = vmatpush2.bf16.msra.mxu0 0
        %3677 = vmatprep.subr.bf16.mxu0 0
        %3678 = vmatpush2.bf16.msra.mxu0 0
        %3679 = vmatprep.subr.bf16.mxu0 0
        %3680 = vmatpush2.bf16.msra.mxu0 0
        %3681 = vmatprep.mubr.bf16.mxu0 0
        %3682 = vmatmul.mubr.bf16.gmra.mxu0 %v3626
        %v3683 = vpop.f32.mrf.mxu0
        %v3684 = vadd.f32 0.0, %v3683
        %v3685 = vpop.f32.mrf.mxu0
        %v3686 = vpop.f32.mrf.mxu0
        %v3687 = vadd.f32 0.0, %v3686
        %v3688 = vpop.f32.mrf.mxu0
        %3689 = vmatprep.mubr.bf16.mxu0 0
        %3690 = vmatmul.mubr.bf16.gmra.mxu0 %v3629
        %v3691 = vpop.f32.mrf.mxu0
        %v3692 = vadd.f32 0.0, %v3691
        %v3693 = vpop.f32.mrf.mxu0
        %v3694 = vpop.f32.mrf.mxu0
        %v3695 = vadd.f32 0.0, %v3694
        %v3696 = vpop.f32.mrf.mxu0
        %3697 = vmatprep.mubr.bf16.mxu0 0
        %3698 = vmatmul.mubr.bf16.gmra.mxu0 %v3632
        %v3699 = vpop.f32.mrf.mxu0
        %v3700 = vadd.f32 0.0, %v3699
        %v3701 = vpop.f32.mrf.mxu0
        %v3702 = vpop.f32.mrf.mxu0
        %v3703 = vadd.f32 0.0, %v3702
        %v3704 = vpop.f32.mrf.mxu0
        %3705 = vmatprep.mubr.bf16.mxu0 0
        %3706 = vmatmul.mubr.bf16.gmra.mxu0 %v3635
        %v3707 = vpop.f32.mrf.mxu0
        %v3708 = vadd.f32 0.0, %v3707
        %v3709 = vpop.f32.mrf.mxu0
        %v3710 = vpop.f32.mrf.mxu0
        %v3711 = vadd.f32 0.0, %v3710
        %v3712 = vpop.f32.mrf.mxu0
        %3713 = vmatprep.mubr.bf16.mxu0 0
        %3714 = vmatmul.mubr.bf16.gmra.mxu0 %v3638
        %v3715 = vpop.f32.mrf.mxu0
        %v3716 = vadd.f32 0.0, %v3715
        %v3717 = vpop.f32.mrf.mxu0
        %v3718 = vpop.f32.mrf.mxu0
        %v3719 = vadd.f32 0.0, %v3718
        %v3720 = vpop.f32.mrf.mxu0
        %3721 = vmatprep.mubr.bf16.mxu0 0
        %3722 = vmatmul.mubr.bf16.gmra.mxu0 %v3641
        %v3723 = vpop.f32.mrf.mxu0
        %v3724 = vadd.f32 0.0, %v3723
        %v3725 = vpop.f32.mrf.mxu0
        %v3726 = vpop.f32.mrf.mxu0
        %v3727 = vadd.f32 0.0, %v3726
        %v3728 = vpop.f32.mrf.mxu0
        %3729 = vmatprep.mubr.bf16.mxu0 0
        %3730 = vmatmul.mubr.bf16.gmra.mxu0 %v3644
        %v3731 = vpop.f32.mrf.mxu0
        %v3732 = vadd.f32 0.0, %v3731
        %v3733 = vpop.f32.mrf.mxu0
        %v3734 = vpop.f32.mrf.mxu0
        %v3735 = vadd.f32 0.0, %v3734
        %v3736 = vpop.f32.mrf.mxu0
        %3737 = vmatprep.mubr.bf16.mxu0 0
        %3738 = vmatmul.mubr.bf16.gmra.mxu0 %v3647
        %v3739 = vpop.f32.mrf.mxu0
        %v3740 = vadd.f32 0.0, %v3739
        %v3741 = vpop.f32.mrf.mxu0
        %v3742 = vpop.f32.mrf.mxu0
        %v3743 = vadd.f32 0.0, %v3742
        %v3744 = vpop.f32.mrf.mxu0
        %3745 = vdwg.mxu0
        %v3746 = vadd.f32 %v3276, %v3684
        %v3747 = vadd.f32 %v3279, %v3687
        %v3748 = vadd.f32 %v3284, %v3692
        %v3749 = vadd.f32 %v3287, %v3695
        %v3750 = vadd.f32 %v3292, %v3700
        %v3751 = vadd.f32 %v3295, %v3703
        %v3752 = vadd.f32 %v3300, %v3708
        %v3753 = vadd.f32 %v3303, %v3711
        %v3754 = vadd.f32 %v3308, %v3716
        %v3755 = vadd.f32 %v3311, %v3719
        %v3756 = vadd.f32 %v3316, %v3724
        %v3757 = vadd.f32 %v3319, %v3727
        %v3758 = vadd.f32 %v3324, %v3732
        %v3759 = vadd.f32 %v3327, %v3735
        %v3760 = vadd.f32 %v3332, %v3740
        %v3761 = vadd.f32 %v3335, %v3743
        %v3762 = vadd.f32 %v3746, %v2338
        %v3763 = vadd.f32 %v3747, %v2338
        %v3764 = vadd.f32 %v3748, %v2338
        %v3765 = vadd.f32 %v3749, %v2338
        %v3766 = vadd.f32 %v3750, %v2338
        %v3767 = vadd.f32 %v3751, %v2338
        %v3768 = vadd.f32 %v3752, %v2338
        %v3769 = vadd.f32 %v3753, %v2338
        %v3770 = vadd.f32 %v3754, %v2338
        %v3771 = vadd.f32 %v3755, %v2338
        %v3772 = vadd.f32 %v3756, %v2338
        %v3773 = vadd.f32 %v3757, %v2338
        %v3774 = vadd.f32 %v3758, %v2338
        %v3775 = vadd.f32 %v3759, %v2338
        %v3776 = vadd.f32 %v3760, %v2338
        %v3777 = vadd.f32 %v3761, %v2338
        %v3778 = vmax.f32 %v3762, 0.0
        %v3779 = vmax.f32 %v3763, 0.0
        %v3780 = vmax.f32 %v3764, 0.0
        %v3781 = vmax.f32 %v3765, 0.0
        %v3782 = vmax.f32 %v3766, 0.0
        %v3783 = vmax.f32 %v3767, 0.0
        %v3784 = vmax.f32 %v3768, 0.0
        %v3785 = vmax.f32 %v3769, 0.0
        %v3786 = vmax.f32 %v3770, 0.0
        %v3787 = vmax.f32 %v3771, 0.0
        %v3788 = vmax.f32 %v3772, 0.0
        %v3789 = vmax.f32 %v3773, 0.0
        %v3790 = vmax.f32 %v3774, 0.0
        %v3791 = vmax.f32 %v3775, 0.0
        %v3792 = vmax.f32 %v3776, 0.0
        %v3793 = vmax.f32 %v3777, 0.0
        %v3794 = vld [vmem:[%s194 + $0x40] sm:$0xf]
        %v3795 = vld [vmem:[%s194 + $0x44] sm:$0xf]
        %v3796 = vld [vmem:[%s194 + $0x48] sm:$0xf]
        %v3797 = vld [vmem:[%s194 + $0x4c] sm:$0xf]
        %v3798 = vld [vmem:[%s194 + $0x50] sm:$0xf]
        %v3799 = vld [vmem:[%s194 + $0x54] sm:$0xf]
        %v3800 = vld [vmem:[%s194 + $0x58] sm:$0xf]
        %v3801 = vld [vmem:[%s194 + $0x5c] sm:$0xf]
        %v3802 = vld [vmem:[%s194 + $0x60] sm:$0xf]
        %v3803 = vld [vmem:[%s194 + $0x64] sm:$0xf]
        %v3804 = vld [vmem:[%s194 + $0x68] sm:$0xf]
        %v3805 = vld [vmem:[%s194 + $0x6c] sm:$0xf]
        %v3806 = vld [vmem:[%s194 + $0x70] sm:$0xf]
        %v3807 = vld [vmem:[%s194 + $0x74] sm:$0xf]
        %v3808 = vld [vmem:[%s194 + $0x78] sm:$0xf]
        %v3809 = vld [vmem:[%s194 + $0x7c] sm:$0xf]
        %v3810 = vunpack.c.l.bf16 %v3794
        %v3811 = vunpack.c.l.bf16 %v3795
        %v3812 = vunpack.c.l.bf16 %v3796
        %v3813 = vunpack.c.l.bf16 %v3797
        %v3814 = vunpack.c.l.bf16 %v3798
        %v3815 = vunpack.c.l.bf16 %v3799
        %v3816 = vunpack.c.l.bf16 %v3800
        %v3817 = vunpack.c.l.bf16 %v3801
        %v3818 = vunpack.c.l.bf16 %v3802
        %v3819 = vunpack.c.l.bf16 %v3803
        %v3820 = vunpack.c.l.bf16 %v3804
        %v3821 = vunpack.c.l.bf16 %v3805
        %v3822 = vunpack.c.l.bf16 %v3806
        %v3823 = vunpack.c.l.bf16 %v3807
        %v3824 = vunpack.c.l.bf16 %v3808
        %v3825 = vunpack.c.l.bf16 %v3809
        %3827 = vset.pattern.permute.xlu0 36
        %3828 = vperm.xlu0 %3827, %v3810
        %v3829 = vpop.permute.xlu0 %3828
        %3832 = vset.pattern.permute.xlu0 36
        %3833 = vperm.xlu0 %3832, %v3811
        %v3834 = vpop.permute.xlu0 %3833
        %3837 = vset.pattern.permute.xlu0 36
        %3838 = vperm.xlu0 %3837, %v3812
        %v3839 = vpop.permute.xlu0 %3838
        %3842 = vset.pattern.permute.xlu0 36
        %3843 = vperm.xlu0 %3842, %v3813
        %v3844 = vpop.permute.xlu0 %3843
        %3847 = vset.pattern.permute.xlu0 36
        %3848 = vperm.xlu0 %3847, %v3814
        %v3849 = vpop.permute.xlu0 %3848
        %3852 = vset.pattern.permute.xlu0 36
        %3853 = vperm.xlu0 %3852, %v3815
        %v3854 = vpop.permute.xlu0 %3853
        %3857 = vset.pattern.permute.xlu0 36
        %3858 = vperm.xlu0 %3857, %v3816
        %v3859 = vpop.permute.xlu0 %3858
        %3862 = vset.pattern.permute.xlu0 36
        %3863 = vperm.xlu0 %3862, %v3817
        %v3864 = vpop.permute.xlu0 %3863
        %3867 = vset.pattern.permute.xlu0 36
        %3868 = vperm.xlu0 %3867, %v3818
        %v3869 = vpop.permute.xlu0 %3868
        %3872 = vset.pattern.permute.xlu0 36
        %3873 = vperm.xlu0 %3872, %v3819
        %v3874 = vpop.permute.xlu0 %3873
        %3877 = vset.pattern.permute.xlu0 36
        %3878 = vperm.xlu0 %3877, %v3820
        %v3879 = vpop.permute.xlu0 %3878
        %3882 = vset.pattern.permute.xlu0 36
        %3883 = vperm.xlu0 %3882, %v3821
        %v3884 = vpop.permute.xlu0 %3883
        %3887 = vset.pattern.permute.xlu0 36
        %3888 = vperm.xlu0 %3887, %v3822
        %v3889 = vpop.permute.xlu0 %3888
        %3892 = vset.pattern.permute.xlu0 36
        %3893 = vperm.xlu0 %3892, %v3823
        %v3894 = vpop.permute.xlu0 %3893
        %3897 = vset.pattern.permute.xlu0 36
        %3898 = vperm.xlu0 %3897, %v3824
        %v3899 = vpop.permute.xlu0 %3898
        %3902 = vset.pattern.permute.xlu0 36
        %3903 = vperm.xlu0 %3902, %v3825
        %v3904 = vpop.permute.xlu0 %3903
        %v3906 = vmul.f32 %v3778, %v3829
        %v3907 = vmul.f32 %v3779, %v3834
        %v3908 = vmul.f32 %v3780, %v3839
        %v3909 = vmul.f32 %v3781, %v3844
        %v3910 = vmul.f32 %v3782, %v3849
        %v3911 = vmul.f32 %v3783, %v3854
        %v3912 = vmul.f32 %v3784, %v3859
        %v3913 = vmul.f32 %v3785, %v3864
        %v3914 = vmul.f32 %v3786, %v3869
        %v3915 = vmul.f32 %v3787, %v3874
        %v3916 = vmul.f32 %v3788, %v3879
        %v3917 = vmul.f32 %v3789, %v3884
        %v3918 = vmul.f32 %v3790, %v3889
        %v3919 = vmul.f32 %v3791, %v3894
        %v3920 = vmul.f32 %v3792, %v3899
        %v3921 = vmul.f32 %v3793, %v3904
        %v3922 = vsel %vm1149, %v3906, 0.0
        %v3923 = vsel %vm1149, %v3907, 0.0
        %v3924 = vadd.f32 %v3922, %v3923
        %v3925 = vsel %vm1149, %v3908, 0.0
        %v3926 = vadd.f32 %v3924, %v3925
        %v3927 = vsel %vm1149, %v3909, 0.0
        %v3928 = vadd.f32 %v3926, %v3927
        %v3929 = vsel %vm1149, %v3910, 0.0
        %v3930 = vadd.f32 %v3928, %v3929
        %v3931 = vsel %vm1149, %v3911, 0.0
        %v3932 = vadd.f32 %v3930, %v3931
        %v3933 = vsel %vm1149, %v3912, 0.0
        %v3934 = vadd.f32 %v3932, %v3933
        %v3935 = vsel %vm1149, %v3913, 0.0
        %v3936 = vadd.f32 %v3934, %v3935
        %v3937 = vsel %vm1149, %v3914, 0.0
        %v3938 = vadd.f32 %v3936, %v3937
        %v3939 = vsel %vm1149, %v3915, 0.0
        %v3940 = vadd.f32 %v3938, %v3939
        %v3941 = vsel %vm1149, %v3916, 0.0
        %v3942 = vadd.f32 %v3940, %v3941
        %v3943 = vsel %vm1149, %v3917, 0.0
        %v3944 = vadd.f32 %v3942, %v3943
        %v3945 = vsel %vm1149, %v3918, 0.0
        %v3946 = vadd.f32 %v3944, %v3945
        %v3947 = vsel %vm1149, %v3919, 0.0
        %v3948 = vadd.f32 %v3946, %v3947
        %v3949 = vsel %vm1149, %v3920, 0.0
        %v3950 = vadd.f32 %v3948, %v3949
        %v3951 = vsel %vm1149, %v3921, 0.0
        %v3952 = vadd.f32 %v3950, %v3951
        %v3953 = vrot.slane %v3952, 4
        %v3954 = vadd.f32 %v3952, %v3953
        %v3955 = vrot.slane %v3954, 2
        %v3956 = vadd.f32 %v3954, %v3955
        %v3957 = vrot.slane %v3956, 1
        %v3958 = vadd.f32 %v3956, %v3957
        %v3959 = vadd.f32 %v2537, %v3958
        %v3960 = vld [vmem:[#allocation2 + $0x80] sm:$0xc]
        %v3961 = vld [vmem:[#allocation2 + $0x84] sm:$0xf]
        %v3962 = vld [vmem:[#allocation2 + $0x88] sm:$0xf]
        %v3963 = vld [vmem:[#allocation2 + $0x8c] sm:$0xf]
        %v3964 = vld [vmem:[#allocation2 + $0x90] sm:$0xf]
        %v3965 = vld [vmem:[#allocation2 + $0x94] sm:$0xf]
        %v3966 = vld [vmem:[#allocation2 + $0x98] sm:$0xf]
        %v3967 = vld [vmem:[#allocation2 + $0x9c] sm:$0xf]
        %v3968 = vld [vmem:[#allocation2 + $0xa0] sm:$0xf]
        %v3969 = vld [vmem:[#allocation2 + $0xa4] sm:$0x1]
        %v3970 = vld [vmem:[#allocation2 + $0x80] sm:$0x8]
        %v3971 = vld [vmem:[#allocation2 + $0xa4] sm:$0x3]
        %v3982 = vunpack.c.l.b16 %v3960
        %v3983 = vunpack.c.l.b16 %v3961
        %v3984 = vunpack.c.l.b16 %v3962
        %v3985 = vunpack.c.l.b16 %v3963
        %v3986 = vunpack.c.l.b16 %v3964
        %v3987 = vunpack.c.l.b16 %v3965
        %v3988 = vunpack.c.l.b16 %v3966
        %v3989 = vunpack.c.l.b16 %v3967
        %v3990 = vunpack.c.l.b16 %v3968
        %v3991 = vunpack.c.l.b16 %v3969
        %v3992 = vpack.c.b16 %v3983, %v3982
        %v3993 = vpack.c.b16 %v3985, %v3984
        %v3994 = vpack.c.b16 %v3987, %v3986
        %v3995 = vpack.c.b16 %v3989, %v3988
        %v3996 = vpack.c.b16 %v3991, %v3990
        %v3998 = vunpack.c.l.b16 %v3970
        %v3999 = vpack.c.b16 %v3983, %v3998
        %v4001 = vshrl.u32 %v3999, 16
        %v4003 = vshll.u32 %v3999, 16
        %v4005 = vrot.slane %v4003, 1
        %v4006 = vor.u32 %v4001, %v4005
        %v4008 = vshll.u32 %v3993, 16
        %v4010 = vrot.slane %v4008, 1
        %v4011 = vsel %vm1020, %v4006, %v4010
        %v4012 = vshrl.u32 %v3993, 16
        %v4014 = vor.u32 %v4012, %v4010
        %v4016 = vshll.u32 %v3994, 16
        %v4018 = vrot.slane %v4016, 1
        %v4019 = vsel %vm1020, %v4014, %v4018
        %v4020 = vshrl.u32 %v3994, 16
        %v4022 = vor.u32 %v4020, %v4018
        %v4024 = vshll.u32 %v3995, 16
        %v4026 = vrot.slane %v4024, 1
        %v4027 = vsel %vm1020, %v4022, %v4026
        %v4028 = vshrl.u32 %v3995, 16
        %v4030 = vor.u32 %v4028, %v4026
        %v4032 = vshll.u32 %v3996, 16
        %v4034 = vrot.slane %v4032, 1
        %v4035 = vsel %vm1020, %v4030, %v4034
        %v4036 = vshrl.u32 %v3996, 16
        %v4038 = vor.u32 %v4036, %v4034
        %4039 = vrot.lane.b32.xlu0 %v4011, 32
        %v4040 = vpop.permute.xlu0 %4039
        %4041 = vrot.lane.b32.xlu0 %v4019, 32
        %v4042 = vpop.permute.xlu0 %4041
        %4043 = vrot.lane.b32.xlu0 %v4027, 32
        %v4044 = vpop.permute.xlu0 %4043
        %4045 = vrot.lane.b32.xlu0 %v4035, 32
        %v4046 = vpop.permute.xlu0 %4045
        %4047 = vrot.lane.b32.xlu0 %v4038, 32
        %v4048 = vpop.permute.xlu0 %4047
        %v4050 = vunpack.c.l.b16 %v3971
        %v4051 = vpack.c.b16 %v4050, %v3990
        %v4052 = vrot.slane %v3999, 1
        %v4053 = vrot.slane %v3993, 1
        %v4054 = vsel %vm1113, %v4052, %v4053
        %v4055 = vrot.slane %v3994, 1
        %v4056 = vsel %vm1113, %v4053, %v4055
        %v4057 = vrot.slane %v3995, 1
        %v4058 = vsel %vm1113, %v4055, %v4057
        %v4059 = vrot.slane %v4051, 1
        %v4060 = vsel %vm1113, %v4057, %v4059
        %4061 = vrot.lane.b32.xlu0 %v4054, 64
        %v4062 = vpop.permute.xlu0 %4061
        %4063 = vrot.lane.b32.xlu0 %v4056, 64
        %v4064 = vpop.permute.xlu0 %4063
        %4065 = vrot.lane.b32.xlu0 %v4058, 64
        %v4066 = vpop.permute.xlu0 %4065
        %4067 = vrot.lane.b32.xlu0 %v4060, 64
        %v4068 = vpop.permute.xlu0 %4067
        %4069 = vrot.lane.b32.xlu0 %v4059, 64
        %v4070 = vpop.permute.xlu0 %4069
        %v4073 = vsel %vm1149, %v3992, %v4040
        %v4075 = vsel %vm1149, %v3993, %v4042
        %v4077 = vsel %vm1149, %v3994, %v4044
        %v4079 = vsel %vm1149, %v3995, %v4046
        %v4081 = vsel %vm1149, %v3996, %v4048
        %v4083 = vsel %vm1169, %v4073, %v4062
        %v4085 = vsel %vm1169, %v4075, %v4064
        %v4087 = vsel %vm1169, %v4077, %v4066
        %v4089 = vsel %vm1169, %v4079, %v4068
        %v4091 = vsel %vm1169, %v4081, %v4070
        %v4092 = vld [vmem:[#allocation2 + $0x88] sm:$0x8]
        %v4093 = vld [vmem:[#allocation2 + $0xa4] sm:$0xf]
        %v4094 = vld [vmem:[#allocation2 + $0xa8] sm:$0xf]
        %v4095 = vld [vmem:[#allocation2 + $0xac] sm:$0x3]
        %v4096 = vld [vmem:[#allocation2 + $0xac] sm:$0x7]
        %v4101 = vunpack.c.l.b16 %v4092
        %v4102 = vunpack.c.l.b16 %v4093
        %v4103 = vunpack.c.l.b16 %v4094
        %v4104 = vunpack.c.l.b16 %v4095
        %v4105 = vpack.c.b16 %v3985, %v4101
        %v4106 = vpack.c.b16 %v4102, %v3990
        %v4107 = vpack.c.b16 %v4104, %v4103
        %v4108 = vpack.c.b16 %v3986, %v3985
        %v4109 = vpack.c.b16 %v3988, %v3987
        %v4110 = vpack.c.b16 %v3990, %v3989
        %v4111 = vpack.c.b16 %v4103, %v4102
        %v4112 = vpack.c.b16 %v4104, %v4104
        %v4114 = vshrl.u32 %v4108, 16
        %v4116 = vrot.slane %v4114, 4
        %v4117 = vshll.u32 %v4108, 16
        %v4119 = vrot.slane %v4117, 5
        %v4120 = vor.u32 %v4116, %v4119
        %v4122 = vshrl.u32 %v4109, 16
        %v4124 = vrot.slane %v4122, 4
        %v4125 = vshll.u32 %v4109, 16
        %v4127 = vrot.slane %v4125, 5
        %v4128 = vor.u32 %v4124, %v4127
        %v4129 = vsel %vm1221, %v4120, %v4128
        %v4131 = vshrl.u32 %v4110, 16
        %v4133 = vrot.slane %v4131, 4
        %v4134 = vshll.u32 %v4110, 16
        %v4136 = vrot.slane %v4134, 5
        %v4137 = vor.u32 %v4133, %v4136
        %v4138 = vsel %vm1221, %v4128, %v4137
        %v4140 = vshrl.u32 %v4111, 16
        %v4142 = vrot.slane %v4140, 4
        %v4143 = vshll.u32 %v4111, 16
        %v4145 = vrot.slane %v4143, 5
        %v4146 = vor.u32 %v4142, %v4145
        %v4147 = vsel %vm1221, %v4137, %v4146
        %v4149 = vshrl.u32 %v4112, 16
        %v4151 = vrot.slane %v4149, 4
        %v4152 = vshll.u32 %v4112, 16
        %v4154 = vrot.slane %v4152, 5
        %v4155 = vor.u32 %v4151, %v4154
        %v4156 = vsel %vm1221, %v4146, %v4155
        %4157 = vrot.lane.b32.xlu0 %v4120, 32
        %v4158 = vpop.permute.xlu0 %4157
        %4159 = vrot.lane.b32.xlu0 %v4129, 32
        %v4160 = vpop.permute.xlu0 %4159
        %4161 = vrot.lane.b32.xlu0 %v4138, 32
        %v4162 = vpop.permute.xlu0 %4161
        %4163 = vrot.lane.b32.xlu0 %v4147, 32
        %v4164 = vpop.permute.xlu0 %4163
        %4165 = vrot.lane.b32.xlu0 %v4156, 32
        %v4166 = vpop.permute.xlu0 %4165
        %v4168 = vunpack.c.l.b16 %v4096
        %v4169 = vpack.c.b16 %v4168, %v4168
        %v4170 = vrot.slane %v4108, 5
        %v4171 = vrot.slane %v4109, 5
        %v4172 = vsel %vm1314, %v4170, %v4171
        %v4173 = vrot.slane %v4110, 5
        %v4174 = vsel %vm1314, %v4171, %v4173
        %v4175 = vrot.slane %v4111, 5
        %v4176 = vsel %vm1314, %v4173, %v4175
        %v4177 = vrot.slane %v4169, 5
        %v4178 = vsel %vm1314, %v4175, %v4177
        %4179 = vrot.lane.b32.xlu0 %v4170, 64
        %v4180 = vpop.permute.xlu0 %4179
        %4181 = vrot.lane.b32.xlu0 %v4172, 64
        %v4182 = vpop.permute.xlu0 %4181
        %4183 = vrot.lane.b32.xlu0 %v4174, 64
        %v4184 = vpop.permute.xlu0 %4183
        %4185 = vrot.lane.b32.xlu0 %v4176, 64
        %v4186 = vpop.permute.xlu0 %4185
        %4187 = vrot.lane.b32.xlu0 %v4178, 64
        %v4188 = vpop.permute.xlu0 %4187
        %v4191 = vsel %vm1149, %v4105, %v4158
        %v4193 = vsel %vm1149, %v3994, %v4160
        %v4195 = vsel %vm1149, %v3995, %v4162
        %v4198 = vsel %vm1149, %v4106, %v4164
        %v4201 = vsel %vm1149, %v4107, %v4166
        %v4203 = vsel %vm1169, %v4191, %v4180
        %v4205 = vsel %vm1169, %v4193, %v4182
        %v4207 = vsel %vm1169, %v4195, %v4184
        %v4209 = vsel %vm1169, %v4198, %v4186
        %v4211 = vsel %vm1169, %v4201, %v4188
        %v4212 = vshrl.u32 %v4203, 16
        %v4214 = vrot.slane %v4212, 3
        %v4215 = vshll.u32 %v4203, 16
        %v4217 = vrot.slane %v4215, 4
        %v4218 = vor.u32 %v4214, %v4217
        %v4219 = vshrl.u32 %v4205, 16
        %v4221 = vrot.slane %v4219, 3
        %v4222 = vshll.u32 %v4205, 16
        %v4224 = vrot.slane %v4222, 4
        %v4225 = vor.u32 %v4221, %v4224
        %v4226 = vsel %vm1402, %v4218, %v4225
        %v4227 = vshrl.u32 %v4207, 16
        %v4229 = vrot.slane %v4227, 3
        %v4230 = vshll.u32 %v4207, 16
        %v4232 = vrot.slane %v4230, 4
        %v4233 = vor.u32 %v4229, %v4232
        %v4234 = vsel %vm1402, %v4225, %v4233
        %v4235 = vshrl.u32 %v4209, 16
        %v4237 = vrot.slane %v4235, 3
        %v4238 = vshll.u32 %v4209, 16
        %v4240 = vrot.slane %v4238, 4
        %v4241 = vor.u32 %v4237, %v4240
        %v4242 = vsel %vm1402, %v4233, %v4241
        %v4243 = vshrl.u32 %v4211, 16
        %v4245 = vrot.slane %v4243, 3
        %v4246 = vshll.u32 %v4211, 16
        %v4248 = vrot.slane %v4246, 4
        %v4249 = vor.u32 %v4245, %v4248
        %v4250 = vsel %vm1402, %v4241, %v4249
        %v4252 = vsel %vm1510, %v4226, 0
        %v4255 = vsel %vm1510, %v4234, 0
        %v4258 = vsel %vm1510, %v4242, 0
        %v4261 = vsel %vm1510, %v4250, 0
        %v4264 = vsel %vm1510, %v4249, 0
        %4266 = vmatprep.subr.bf16.mxu0 0
        %4267 = vmatpush1.bf16.msra.mxu0 0
        %4268 = vmatprep.subr.bf16.mxu0 0
        %4269 = vmatpush1.bf16.msra.mxu0 0
        %4270 = vmatprep.subr.bf16.mxu0 0
        %4271 = vmatpush1.bf16.msra.mxu0 %v1503
        %4272 = vmatprep.subr.bf16.mxu0 0
        %4273 = vmatpush1.bf16.msra.mxu0 %v1502
        %4274 = vmatprep.subr.bf16.mxu0 0
        %4275 = vmatpush1.bf16.msra.mxu0 %v1501
        %4276 = vmatprep.subr.bf16.mxu0 0
        %4277 = vmatpush1.bf16.msra.mxu0 %v1500
        %4278 = vmatprep.subr.bf16.mxu0 0
        %4279 = vmatpush1.bf16.msra.mxu0 %v1499
        %4280 = vmatprep.subr.bf16.mxu0 0
        %4281 = vmatpush1.bf16.msra.mxu0 %v1498
        %4282 = vmatprep.subr.bf16.mxu0 0
        %4283 = vmatpush2.bf16.msra.mxu0 0
        %4284 = vmatprep.subr.bf16.mxu0 0
        %4285 = vmatpush2.bf16.msra.mxu0 0
        %4286 = vmatprep.subr.bf16.mxu0 0
        %4287 = vmatpush2.bf16.msra.mxu0 0
        %4288 = vmatprep.subr.bf16.mxu0 0
        %4289 = vmatpush2.bf16.msra.mxu0 0
        %4290 = vmatprep.subr.bf16.mxu0 0
        %4291 = vmatpush2.bf16.msra.mxu0 0
        %4292 = vmatprep.subr.bf16.mxu0 0
        %4293 = vmatpush2.bf16.msra.mxu0 0
        %4294 = vmatprep.subr.bf16.mxu0 0
        %4295 = vmatpush2.bf16.msra.mxu0 0
        %4296 = vmatprep.subr.bf16.mxu0 0
        %4297 = vmatpush2.bf16.msra.mxu0 0
        %4298 = vmatprep.mubr.bf16.mxu0 0
        %4299 = vmatmul.mubr.bf16.gmra.mxu0 %v4252
        %v4300 = vpop.f32.mrf.mxu0
        %v4301 = vadd.f32 0.0, %v4300
        %v4302 = vpop.f32.mrf.mxu0
        %v4303 = vpop.f32.mrf.mxu0
        %v4304 = vadd.f32 0.0, %v4303
        %v4305 = vpop.f32.mrf.mxu0
        %4306 = vmatprep.mubr.bf16.mxu0 0
        %4307 = vmatmul.mubr.bf16.gmra.mxu0 %v4255
        %v4308 = vpop.f32.mrf.mxu0
        %v4309 = vadd.f32 0.0, %v4308
        %v4310 = vpop.f32.mrf.mxu0
        %v4311 = vpop.f32.mrf.mxu0
        %v4312 = vadd.f32 0.0, %v4311
        %v4313 = vpop.f32.mrf.mxu0
        %4314 = vmatprep.mubr.bf16.mxu0 0
        %4315 = vmatmul.mubr.bf16.gmra.mxu0 %v4258
        %v4316 = vpop.f32.mrf.mxu0
        %v4317 = vadd.f32 0.0, %v4316
        %v4318 = vpop.f32.mrf.mxu0
        %v4319 = vpop.f32.mrf.mxu0
        %v4320 = vadd.f32 0.0, %v4319
        %v4321 = vpop.f32.mrf.mxu0
        %4322 = vmatprep.mubr.bf16.mxu0 0
        %4323 = vmatmul.mubr.bf16.gmra.mxu0 %v4261
        %v4324 = vpop.f32.mrf.mxu0
        %v4325 = vadd.f32 0.0, %v4324
        %v4326 = vpop.f32.mrf.mxu0
        %v4327 = vpop.f32.mrf.mxu0
        %v4328 = vadd.f32 0.0, %v4327
        %v4329 = vpop.f32.mrf.mxu0
        %4330 = vmatprep.mubr.bf16.mxu0 0
        %4331 = vmatmul.mubr.bf16.gmra.mxu0 %v4264
        %v4332 = vpop.f32.mrf.mxu0
        %v4333 = vadd.f32 0.0, %v4332
        %v4334 = vpop.f32.mrf.mxu0
        %v4335 = vpop.f32.mrf.mxu0
        %v4336 = vpop.f32.mrf.mxu0
        %4337 = vdwg.mxu0
        %v4338 = vshrl.u32 %v4083, 16
        %v4340 = vrot.slane %v4338, 2
        %v4341 = vshll.u32 %v4083, 16
        %v4343 = vrot.slane %v4341, 3
        %v4344 = vor.u32 %v4340, %v4343
        %v4345 = vshrl.u32 %v4085, 16
        %v4347 = vrot.slane %v4345, 2
        %v4348 = vshll.u32 %v4085, 16
        %v4350 = vrot.slane %v4348, 3
        %v4351 = vor.u32 %v4347, %v4350
        %v4352 = vsel %vm1632, %v4344, %v4351
        %v4353 = vshrl.u32 %v4087, 16
        %v4355 = vrot.slane %v4353, 2
        %v4356 = vshll.u32 %v4087, 16
        %v4358 = vrot.slane %v4356, 3
        %v4359 = vor.u32 %v4355, %v4358
        %v4360 = vsel %vm1632, %v4351, %v4359
        %v4361 = vshrl.u32 %v4089, 16
        %v4363 = vrot.slane %v4361, 2
        %v4364 = vshll.u32 %v4089, 16
        %v4366 = vrot.slane %v4364, 3
        %v4367 = vor.u32 %v4363, %v4366
        %v4368 = vsel %vm1632, %v4359, %v4367
        %v4369 = vshrl.u32 %v4091, 16
        %v4371 = vrot.slane %v4369, 2
        %v4372 = vshll.u32 %v4091, 16
        %v4374 = vrot.slane %v4372, 3
        %v4375 = vor.u32 %v4371, %v4374
        %v4376 = vsel %vm1632, %v4367, %v4375
        %v4378 = vsel %vm1510, %v4352, 0
        %v4381 = vsel %vm1510, %v4360, 0
        %v4384 = vsel %vm1510, %v4368, 0
        %v4387 = vsel %vm1510, %v4376, 0
        %v4390 = vsel %vm1510, %v4375, 0
        %4392 = vmatprep.subr.bf16.mxu0 0
        %4393 = vmatpush1.bf16.msra.mxu0 0
        %4394 = vmatprep.subr.bf16.mxu0 0
        %4395 = vmatpush1.bf16.msra.mxu0 0
        %4396 = vmatprep.subr.bf16.mxu0 0
        %4397 = vmatpush1.bf16.msra.mxu0 %v1733
        %4398 = vmatprep.subr.bf16.mxu0 0
        %4399 = vmatpush1.bf16.msra.mxu0 %v1732
        %4400 = vmatprep.subr.bf16.mxu0 0
        %4401 = vmatpush1.bf16.msra.mxu0 %v1731
        %4402 = vmatprep.subr.bf16.mxu0 0
        %4403 = vmatpush1.bf16.msra.mxu0 %v1730
        %4404 = vmatprep.subr.bf16.mxu0 0
        %4405 = vmatpush1.bf16.msra.mxu0 %v1729
        %4406 = vmatprep.subr.bf16.mxu0 0
        %4407 = vmatpush1.bf16.msra.mxu0 %v1728
        %4408 = vmatprep.subr.bf16.mxu0 0
        %4409 = vmatpush2.bf16.msra.mxu0 0
        %4410 = vmatprep.subr.bf16.mxu0 0
        %4411 = vmatpush2.bf16.msra.mxu0 0
        %4412 = vmatprep.subr.bf16.mxu0 0
        %4413 = vmatpush2.bf16.msra.mxu0 0
        %4414 = vmatprep.subr.bf16.mxu0 0
        %4415 = vmatpush2.bf16.msra.mxu0 0
        %4416 = vmatprep.subr.bf16.mxu0 0
        %4417 = vmatpush2.bf16.msra.mxu0 0
        %4418 = vmatprep.subr.bf16.mxu0 0
        %4419 = vmatpush2.bf16.msra.mxu0 0
        %4420 = vmatprep.subr.bf16.mxu0 0
        %4421 = vmatpush2.bf16.msra.mxu0 0
        %4422 = vmatprep.subr.bf16.mxu0 0
        %4423 = vmatpush2.bf16.msra.mxu0 0
        %4424 = vmatprep.mubr.bf16.mxu0 0
        %4425 = vmatmul.mubr.bf16.gmra.mxu0 %v4378
        %v4426 = vpop.f32.mrf.mxu0
        %v4427 = vadd.f32 %v4301, %v4426
        %v4428 = vpop.f32.mrf.mxu0
        %v4429 = vpop.f32.mrf.mxu0
        %v4430 = vadd.f32 %v4304, %v4429
        %v4431 = vpop.f32.mrf.mxu0
        %4432 = vmatprep.mubr.bf16.mxu0 0
        %4433 = vmatmul.mubr.bf16.gmra.mxu0 %v4381
        %v4434 = vpop.f32.mrf.mxu0
        %v4435 = vadd.f32 %v4309, %v4434
        %v4436 = vpop.f32.mrf.mxu0
        %v4437 = vpop.f32.mrf.mxu0
        %v4438 = vadd.f32 %v4312, %v4437
        %v4439 = vpop.f32.mrf.mxu0
        %4440 = vmatprep.mubr.bf16.mxu0 0
        %4441 = vmatmul.mubr.bf16.gmra.mxu0 %v4384
        %v4442 = vpop.f32.mrf.mxu0
        %v4443 = vadd.f32 %v4317, %v4442
        %v4444 = vpop.f32.mrf.mxu0
        %v4445 = vpop.f32.mrf.mxu0
        %v4446 = vadd.f32 %v4320, %v4445
        %v4447 = vpop.f32.mrf.mxu0
        %4448 = vmatprep.mubr.bf16.mxu0 0
        %4449 = vmatmul.mubr.bf16.gmra.mxu0 %v4387
        %v4450 = vpop.f32.mrf.mxu0
        %v4451 = vadd.f32 %v4325, %v4450
        %v4452 = vpop.f32.mrf.mxu0
        %v4453 = vpop.f32.mrf.mxu0
        %v4454 = vadd.f32 %v4328, %v4453
        %v4455 = vpop.f32.mrf.mxu0
        %4456 = vmatprep.mubr.bf16.mxu0 0
        %4457 = vmatmul.mubr.bf16.gmra.mxu0 %v4390
        %v4458 = vpop.f32.mrf.mxu0
        %v4459 = vadd.f32 %v4333, %v4458
        %v4460 = vpop.f32.mrf.mxu0
        %v4461 = vpop.f32.mrf.mxu0
        %v4462 = vpop.f32.mrf.mxu0
        %4463 = vdwg.mxu0
        %v4464 = vld [vmem:[#allocation2 + $0x94] sm:$0xf]
        %v4465 = vld [vmem:[#allocation2 + $0x98] sm:$0xf]
        %v4466 = vld [vmem:[#allocation2 + $0x9c] sm:$0xf]
        %v4467 = vld [vmem:[#allocation2 + $0xa0] sm:$0xf]
        %v4468 = vld [vmem:[#allocation2 + $0xa4] sm:$0xf]
        %v4469 = vld [vmem:[#allocation2 + $0xa8] sm:$0xf]
        %v4470 = vld [vmem:[#allocation2 + $0xac] sm:$0xf]
        %v4471 = vld [vmem:[#allocation2 + $0xb0] sm:$0xf]
        %v4472 = vld [vmem:[#allocation2 + $0xb4] sm:$0x7]
        %v4473 = vld [vmem:[#allocation2 + $0x94] sm:$0xe]
        %v4474 = vld [vmem:[#allocation2 + $0xb4] sm:$0xf]
        %v4484 = vunpack.c.l.b16 %v4464
        %v4485 = vunpack.c.l.b16 %v4465
        %v4486 = vunpack.c.l.b16 %v4466
        %v4487 = vunpack.c.l.b16 %v4467
        %v4488 = vunpack.c.l.b16 %v4468
        %v4489 = vunpack.c.l.b16 %v4469
        %v4490 = vunpack.c.l.b16 %v4470
        %v4491 = vunpack.c.l.b16 %v4471
        %v4492 = vunpack.c.l.b16 %v4472
        %v4493 = vpack.c.b16 %v4485, %v4484
        %v4494 = vpack.c.b16 %v4487, %v4486
        %v4495 = vpack.c.b16 %v4489, %v4488
        %v4496 = vpack.c.b16 %v4491, %v4490
        %v4497 = vpack.c.b16 %v4492, %v4492
        %v4499 = vunpack.c.l.b16 %v4473
        %v4500 = vpack.c.b16 %v4485, %v4499
        %v4502 = vshrl.u32 %v4500, 16
        %v4504 = vshll.u32 %v4500, 16
        %v4506 = vrot.slane %v4504, 1
        %v4507 = vor.u32 %v4502, %v4506
        %v4509 = vshll.u32 %v4494, 16
        %v4511 = vrot.slane %v4509, 1
        %v4512 = vsel %vm1020, %v4507, %v4511
        %v4513 = vshrl.u32 %v4494, 16
        %v4515 = vor.u32 %v4513, %v4511
        %v4517 = vshll.u32 %v4495, 16
        %v4519 = vrot.slane %v4517, 1
        %v4520 = vsel %vm1020, %v4515, %v4519
        %v4521 = vshrl.u32 %v4495, 16
        %v4523 = vor.u32 %v4521, %v4519
        %v4525 = vshll.u32 %v4496, 16
        %v4527 = vrot.slane %v4525, 1
        %v4528 = vsel %vm1020, %v4523, %v4527
        %v4529 = vshrl.u32 %v4496, 16
        %v4531 = vor.u32 %v4529, %v4527
        %v4533 = vshll.u32 %v4497, 16
        %v4535 = vrot.slane %v4533, 1
        %v4536 = vsel %vm1020, %v4531, %v4535
        %v4537 = vshrl.u32 %v4497, 16
        %v4539 = vor.u32 %v4537, %v4535
        %4540 = vrot.lane.b32.xlu0 %v4512, 32
        %v4541 = vpop.permute.xlu0 %4540
        %4542 = vrot.lane.b32.xlu0 %v4520, 32
        %v4543 = vpop.permute.xlu0 %4542
        %4544 = vrot.lane.b32.xlu0 %v4528, 32
        %v4545 = vpop.permute.xlu0 %4544
        %4546 = vrot.lane.b32.xlu0 %v4536, 32
        %v4547 = vpop.permute.xlu0 %4546
        %4548 = vrot.lane.b32.xlu0 %v4539, 32
        %v4549 = vpop.permute.xlu0 %4548
        %v4551 = vunpack.c.l.b16 %v4474
        %v4552 = vpack.c.b16 %v4551, %v4551
        %v4553 = vrot.slane %v4500, 1
        %v4554 = vrot.slane %v4494, 1
        %v4555 = vsel %vm1113, %v4553, %v4554
        %v4556 = vrot.slane %v4495, 1
        %v4557 = vsel %vm1113, %v4554, %v4556
        %v4558 = vrot.slane %v4496, 1
        %v4559 = vsel %vm1113, %v4556, %v4558
        %v4560 = vrot.slane %v4552, 1
        %v4561 = vsel %vm1113, %v4558, %v4560
        %4562 = vrot.lane.b32.xlu0 %v4555, 64
        %v4563 = vpop.permute.xlu0 %4562
        %4564 = vrot.lane.b32.xlu0 %v4557, 64
        %v4565 = vpop.permute.xlu0 %4564
        %4566 = vrot.lane.b32.xlu0 %v4559, 64
        %v4567 = vpop.permute.xlu0 %4566
        %4568 = vrot.lane.b32.xlu0 %v4561, 64
        %v4569 = vpop.permute.xlu0 %4568
        %4570 = vrot.lane.b32.xlu0 %v4560, 64
        %v4571 = vpop.permute.xlu0 %4570
        %v4574 = vsel %vm1149, %v4493, %v4541
        %v4576 = vsel %vm1149, %v4494, %v4543
        %v4578 = vsel %vm1149, %v4495, %v4545
        %v4580 = vsel %vm1149, %v4496, %v4547
        %v4582 = vsel %vm1149, %v4497, %v4549
        %v4584 = vsel %vm1169, %v4574, %v4563
        %v4586 = vsel %vm1169, %v4576, %v4565
        %v4588 = vsel %vm1169, %v4578, %v4567
        %v4590 = vsel %vm1169, %v4580, %v4569
        %v4592 = vsel %vm1169, %v4582, %v4571
        %v4593 = vshrl.u32 %v4584, 16
        %v4595 = vshll.u32 %v4584, 16
        %v4597 = vrot.slane %v4595, 1
        %v4598 = vor.u32 %v4593, %v4597
        %v4599 = vshll.u32 %v4586, 16
        %v4601 = vrot.slane %v4599, 1
        %v4602 = vsel %vm1020, %v4598, %v4601
        %v4603 = vshrl.u32 %v4586, 16
        %v4605 = vor.u32 %v4603, %v4601
        %v4606 = vshll.u32 %v4588, 16
        %v4608 = vrot.slane %v4606, 1
        %v4609 = vsel %vm1020, %v4605, %v4608
        %v4610 = vshrl.u32 %v4588, 16
        %v4612 = vor.u32 %v4610, %v4608
        %v4613 = vshll.u32 %v4590, 16
        %v4615 = vrot.slane %v4613, 1
        %v4616 = vsel %vm1020, %v4612, %v4615
        %v4617 = vshrl.u32 %v4590, 16
        %v4619 = vor.u32 %v4617, %v4615
        %v4620 = vshll.u32 %v4592, 16
        %v4622 = vrot.slane %v4620, 1
        %v4623 = vsel %vm1020, %v4619, %v4622
        %v4624 = vshrl.u32 %v4592, 16
        %v4626 = vor.u32 %v4624, %v4622
        %v4628 = vsel %vm1510, %v4602, 0
        %v4631 = vsel %vm1510, %v4609, 0
        %v4634 = vsel %vm1510, %v4616, 0
        %v4637 = vsel %vm1510, %v4623, 0
        %v4640 = vsel %vm1510, %v4626, 0
        %4642 = vmatprep.subr.bf16.mxu0 0
        %4643 = vmatpush1.bf16.msra.mxu0 0
        %4644 = vmatprep.subr.bf16.mxu0 0
        %4645 = vmatpush1.bf16.msra.mxu0 0
        %4646 = vmatprep.subr.bf16.mxu0 0
        %4647 = vmatpush1.bf16.msra.mxu0 %v2190
        %4648 = vmatprep.subr.bf16.mxu0 0
        %4649 = vmatpush1.bf16.msra.mxu0 %v2189
        %4650 = vmatprep.subr.bf16.mxu0 0
        %4651 = vmatpush1.bf16.msra.mxu0 %v2188
        %4652 = vmatprep.subr.bf16.mxu0 0
        %4653 = vmatpush1.bf16.msra.mxu0 %v2187
        %4654 = vmatprep.subr.bf16.mxu0 0
        %4655 = vmatpush1.bf16.msra.mxu0 %v2186
        %4656 = vmatprep.subr.bf16.mxu0 0
        %4657 = vmatpush1.bf16.msra.mxu0 %v2185
        %4658 = vmatprep.subr.bf16.mxu0 0
        %4659 = vmatpush2.bf16.msra.mxu0 0
        %4660 = vmatprep.subr.bf16.mxu0 0
        %4661 = vmatpush2.bf16.msra.mxu0 0
        %4662 = vmatprep.subr.bf16.mxu0 0
        %4663 = vmatpush2.bf16.msra.mxu0 0
        %4664 = vmatprep.subr.bf16.mxu0 0
        %4665 = vmatpush2.bf16.msra.mxu0 0
        %4666 = vmatprep.subr.bf16.mxu0 0
        %4667 = vmatpush2.bf16.msra.mxu0 0
        %4668 = vmatprep.subr.bf16.mxu0 0
        %4669 = vmatpush2.bf16.msra.mxu0 0
        %4670 = vmatprep.subr.bf16.mxu0 0
        %4671 = vmatpush2.bf16.msra.mxu0 0
        %4672 = vmatprep.subr.bf16.mxu0 0
        %4673 = vmatpush2.bf16.msra.mxu0 0
        %4674 = vmatprep.mubr.bf16.mxu0 0
        %4675 = vmatmul.mubr.bf16.gmra.mxu0 %v4628
        %v4676 = vpop.f32.mrf.mxu0
        %v4677 = vadd.f32 0.0, %v4676
        %v4678 = vpop.f32.mrf.mxu0
        %v4679 = vpop.f32.mrf.mxu0
        %v4680 = vadd.f32 0.0, %v4679
        %v4681 = vpop.f32.mrf.mxu0
        %4682 = vmatprep.mubr.bf16.mxu0 0
        %4683 = vmatmul.mubr.bf16.gmra.mxu0 %v4631
        %v4684 = vpop.f32.mrf.mxu0
        %v4685 = vadd.f32 0.0, %v4684
        %v4686 = vpop.f32.mrf.mxu0
        %v4687 = vpop.f32.mrf.mxu0
        %v4688 = vadd.f32 0.0, %v4687
        %v4689 = vpop.f32.mrf.mxu0
        %4690 = vmatprep.mubr.bf16.mxu0 0
        %4691 = vmatmul.mubr.bf16.gmra.mxu0 %v4634
        %v4692 = vpop.f32.mrf.mxu0
        %v4693 = vadd.f32 0.0, %v4692
        %v4694 = vpop.f32.mrf.mxu0
        %v4695 = vpop.f32.mrf.mxu0
        %v4696 = vadd.f32 0.0, %v4695
        %v4697 = vpop.f32.mrf.mxu0
        %4698 = vmatprep.mubr.bf16.mxu0 0
        %4699 = vmatmul.mubr.bf16.gmra.mxu0 %v4637
        %v4700 = vpop.f32.mrf.mxu0
        %v4701 = vadd.f32 0.0, %v4700
        %v4702 = vpop.f32.mrf.mxu0
        %v4703 = vpop.f32.mrf.mxu0
        %v4704 = vadd.f32 0.0, %v4703
        %v4705 = vpop.f32.mrf.mxu0
        %4706 = vmatprep.mubr.bf16.mxu0 0
        %4707 = vmatmul.mubr.bf16.gmra.mxu0 %v4640
        %v4708 = vpop.f32.mrf.mxu0
        %v4709 = vadd.f32 0.0, %v4708
        %v4710 = vpop.f32.mrf.mxu0
        %v4711 = vpop.f32.mrf.mxu0
        %v4712 = vpop.f32.mrf.mxu0
        %4713 = vdwg.mxu0
        %v4714 = vadd.f32 %v4427, %v4677
        %v4715 = vadd.f32 %v4430, %v4680
        %v4716 = vadd.f32 %v4435, %v4685
        %v4717 = vadd.f32 %v4438, %v4688
        %v4718 = vadd.f32 %v4443, %v4693
        %v4719 = vadd.f32 %v4446, %v4696
        %v4720 = vadd.f32 %v4451, %v4701
        %v4721 = vadd.f32 %v4454, %v4704
        %v4722 = vadd.f32 %v4459, %v4709
        %v4723 = vadd.f32 %v4714, %v2338
        %v4724 = vadd.f32 %v4715, %v2338
        %v4725 = vadd.f32 %v4716, %v2338
        %v4726 = vadd.f32 %v4717, %v2338
        %v4727 = vadd.f32 %v4718, %v2338
        %v4728 = vadd.f32 %v4719, %v2338
        %v4729 = vadd.f32 %v4720, %v2338
        %v4730 = vadd.f32 %v4721, %v2338
        %v4731 = vadd.f32 %v4722, %v2338
        %v4732 = vmax.f32 %v4723, 0.0
        %v4733 = vmax.f32 %v4724, 0.0
        %v4734 = vmax.f32 %v4725, 0.0
        %v4735 = vmax.f32 %v4726, 0.0
        %v4736 = vmax.f32 %v4727, 0.0
        %v4737 = vmax.f32 %v4728, 0.0
        %v4738 = vmax.f32 %v4729, 0.0
        %v4739 = vmax.f32 %v4730, 0.0
        %v4740 = vmax.f32 %v4731, 0.0
        %v4741 = vld [vmem:[%s194 + $0x80] sm:$0xf]
        %v4742 = vld [vmem:[%s194 + $0x84] sm:$0xf]
        %v4743 = vld [vmem:[%s194 + $0x88] sm:$0xf]
        %v4744 = vld [vmem:[%s194 + $0x8c] sm:$0xf]
        %v4745 = vld [vmem:[%s194 + $0x90] sm:$0xf]
        %v4746 = vld [vmem:[%s194 + $0x94] sm:$0xf]
        %v4747 = vld [vmem:[%s194 + $0x98] sm:$0xf]
        %v4748 = vld [vmem:[%s194 + $0x9c] sm:$0xf]
        %v4749 = vld [vmem:[%s194 + $0xa0] sm:$0x3]
        %v4750 = vunpack.c.l.bf16 %v4741
        %v4751 = vunpack.c.l.bf16 %v4742
        %v4752 = vunpack.c.l.bf16 %v4743
        %v4753 = vunpack.c.l.bf16 %v4744
        %v4754 = vunpack.c.l.bf16 %v4745
        %v4755 = vunpack.c.l.bf16 %v4746
        %v4756 = vunpack.c.l.bf16 %v4747
        %v4757 = vunpack.c.l.bf16 %v4748
        %v4758 = vunpack.c.l.bf16 %v4749
        %4760 = vset.pattern.permute.xlu0 36
        %4761 = vperm.xlu0 %4760, %v4750
        %v4762 = vpop.permute.xlu0 %4761
        %4765 = vset.pattern.permute.xlu0 36
        %4766 = vperm.xlu0 %4765, %v4751
        %v4767 = vpop.permute.xlu0 %4766
        %4770 = vset.pattern.permute.xlu0 36
        %4771 = vperm.xlu0 %4770, %v4752
        %v4772 = vpop.permute.xlu0 %4771
        %4775 = vset.pattern.permute.xlu0 36
        %4776 = vperm.xlu0 %4775, %v4753
        %v4777 = vpop.permute.xlu0 %4776
        %4780 = vset.pattern.permute.xlu0 36
        %4781 = vperm.xlu0 %4780, %v4754
        %v4782 = vpop.permute.xlu0 %4781
        %4785 = vset.pattern.permute.xlu0 36
        %4786 = vperm.xlu0 %4785, %v4755
        %v4787 = vpop.permute.xlu0 %4786
        %4790 = vset.pattern.permute.xlu0 36
        %4791 = vperm.xlu0 %4790, %v4756
        %v4792 = vpop.permute.xlu0 %4791
        %4795 = vset.pattern.permute.xlu0 36
        %4796 = vperm.xlu0 %4795, %v4757
        %v4797 = vpop.permute.xlu0 %4796
        %4800 = vset.pattern.permute.xlu0 36
        %4801 = vperm.xlu0 %4800, %v4758
        %v4802 = vpop.permute.xlu0 %4801
        %v4804 = vmul.f32 %v4732, %v4762
        %v4805 = vmul.f32 %v4733, %v4767
        %v4806 = vmul.f32 %v4734, %v4772
        %v4807 = vmul.f32 %v4735, %v4777
        %v4808 = vmul.f32 %v4736, %v4782
        %v4809 = vmul.f32 %v4737, %v4787
        %v4810 = vmul.f32 %v4738, %v4792
        %v4811 = vmul.f32 %v4739, %v4797
        %v4812 = vmul.f32 %v4740, %v4802
        %v4813 = vsel %vm1149, %v4804, 0.0
        %v4814 = vsel %vm1149, %v4805, 0.0
        %v4815 = vadd.f32 %v4813, %v4814
        %v4816 = vsel %vm1149, %v4806, 0.0
        %v4817 = vadd.f32 %v4815, %v4816
        %v4818 = vsel %vm1149, %v4807, 0.0
        %v4819 = vadd.f32 %v4817, %v4818
        %v4820 = vsel %vm1149, %v4808, 0.0
        %v4821 = vadd.f32 %v4819, %v4820
        %v4822 = vsel %vm1149, %v4809, 0.0
        %v4823 = vadd.f32 %v4821, %v4822
        %v4824 = vsel %vm1149, %v4810, 0.0
        %v4825 = vadd.f32 %v4823, %v4824
        %v4826 = vsel %vm1149, %v4811, 0.0
        %v4827 = vadd.f32 %v4825, %v4826
        %v4828 = vsel %vm196, %v4812, 0.0
        %v4829 = vadd.f32 %v4827, %v4828
        %v4830 = vrot.slane %v4829, 4
        %v4831 = vadd.f32 %v4829, %v4830
        %v4832 = vrot.slane %v4831, 2
        %v4833 = vadd.f32 %v4831, %v4832
        %v4834 = vrot.slane %v4833, 1
        %v4835 = vadd.f32 %v4833, %v4834
        %v4836 = vadd.f32 %v3959, %v4835
        %v4837 = vmul.f32 %v4836, 0.00390625
        %vm4838 = vcmask 253952
        %4839 = vst.msk [vmem:[%s189] sm:$0x1] %vm4838, %v4837
        %s4840 = sand.u32 %s115, 1
        %s4841 = scalar_lea.sflag [#allocation4], %s4840
        %s4842 = sand.u32 %s115, 1
        %s4843 = scalar_lea.vmem [#allocation3], %s4842
        // Predicated region
        $region37: #{_forward_pallas.1} parent=35 // pred_check
          %p4844 = pneg %p125
        $region38: #{_forward_pallas.1} parent=35 // pred_check_branch
          %4846 = sbr.rel (%p4844) target = $region40
        $region39: #{_forward_pallas.1} parent=35 // pred_region
          %s4848 = ssub.s32 16, 16
          %4849 = vsyncadd %s4841, %s4848
          %s4850 = smul.addr %s18, 16
          %s4851 = scalar_lea.hbm %s4, %s4850
          %s4853 = sshll.u32 %s4843, 4
          %s4854 = int_to_ptr.vmem [resolvable:$true] %s4853
          %4856 = dma.vmem_to_hbm [thread:$0]  %s4854, 16, %s4851, %s4841
        $region40: #{_forward_pallas.1} parent=35 // pred_fallthru
          _
      $region36: #{_forward_pallas.1} parent=5 // pred_fallthru
        _
      %p4857 = scmp.le.s32.totalorder 2, %s13
      // Predicated region
      $region41: #{_forward_pallas.1} parent=5 // pred_check
        %p4858 = pneg %p4857
      $region42: #{_forward_pallas.1} parent=5 // pred_check_branch
        %4860 = sbr.rel (%p4858) target = $region44
      $region43: #{_forward_pallas.1} parent=5 // pred_region
        %s4861 = ssub.s32 %s13, 2
        // Predicated region
        $region45: #{_forward_pallas.1} parent=43 // pred_check
          %p4862 = pneg %p131
        $region46: #{_forward_pallas.1} parent=43 // pred_check_branch
          %4864 = sbr.rel (%p4862) target = $region48
        $region47: #{_forward_pallas.1} parent=43 // pred_region
          %s4865 = sand.u32 %s116, 1
          %s4866 = scalar_lea.sflag [#allocation4], %s4865
          %s4867 = sand.u32 %s116, 1
          %s4868 = scalar_lea.vmem [#allocation3], %s4867
          %4869 = dma.done %s4866, 16
        $region48: #{_forward_pallas.1} parent=43 // pred_fallthru
          _
      $region44: #{_forward_pallas.1} parent=5 // pred_fallthru
        _
    $region6: #{_forward_pallas.1} parent=1 // loop_footer
      %s17 = sadd.s32 1, %s13
    $region7: #{_forward_pallas.1} parent=1 // loop_footer_branch
      %12 = sbr.rel target = $region3
    $region8: #{_forward_pallas.1} parent=1 // loop_exit
      _
    %4870 = vsyncpa [#allocation4], 1
    %s4871 = scalar_lea.sflag [#allocation4], 1
    %4872 = vsyncpa %s4871, 1

</llo_original>
